<compile_context>
chip_gen: v7x
topology: tpu7x:2x2x1
jax: 0.10.0
libtpu: 0.0.40
codegen_flags: <defaults>
</compile_context>

<pallas_src>
import jax
import jax.numpy as jnp
from jax.experimental import pallas as pl
from jax.experimental.pallas import tpu as pltpu

BN_EPS = 1e-5
MIN_TILE_B = 128   # multiple of 128 so the lane-dense output block is layout-legal
MAX_TILE_B = 512   # good MXU efficiency; fits comfortably under v7x's 64 MiB VMEM


def _round_up(x, m):
    return ((x + m - 1) // m) * m


def _pick_tile_b(batch):
    """Tile size: >=2 grid steps once batch > MIN_TILE_B (v7x megacore), capped at MAX_TILE_B."""
    half = _round_up(pl.cdiv(batch, 2), MIN_TILE_B)
    return max(MIN_TILE_B, min(MAX_TILE_B, half))


def mlp_kernel(
    x_ref,
    w1_ref, b1_ref,
    w2_ref, b2_ref,
    w3_ref, b3_ref,
    w4_ref, b4_ref,
    w5_ref, b5_ref,
    o_ref,
):
    # fc1 (+ folded bn1) + relu -- bf16 matmul (cast done in-kernel on the VPU), f32 accumulate.
    h = jnp.dot(x_ref[...].astype(jnp.bfloat16), w1_ref[...],
                preferred_element_type=jnp.float32)
    h = jnp.maximum(h + b1_ref[...], 0.0)
    # TODO(synk): dropout1 (p=0.3) is identity in eval mode; train-mode stochastic dropout not emitted.

    # fc2 (+ folded bn2) + relu
    h = jnp.dot(h.astype(jnp.bfloat16), w2_ref[...], preferred_element_type=jnp.float32)
    h = jnp.maximum(h + b2_ref[...], 0.0)
    # TODO(synk): dropout2 (p=0.3) is identity in eval mode.

    # fc3 + relu
    h = jnp.dot(h.astype(jnp.bfloat16), w3_ref[...], preferred_element_type=jnp.float32)
    h = jnp.maximum(h + b3_ref[...], 0.0)

    # fc4 + relu (output zero-padded 64 -> 128 lanes so the tail is lane-dense; pads stay 0)
    h = jnp.dot(h.astype(jnp.bfloat16), w4_ref[...], preferred_element_type=jnp.float32)
    h = jnp.maximum(h + b4_ref[...], 0.0)                  # (tile_b, 128)

    # fc5 (128 -> 1): transpose once on the XLU, then sublane-axis multiply+reduce on the VPU.
    # Result lands directly as a lane-dense (1, tile_b) row (avoids an N=1 MXU pass and
    # avoids masked single-lane stores).
    hT = jnp.transpose(h)                                  # (128, tile_b)
    out_row = jnp.sum(hT * w5_ref[...], axis=0, keepdims=True) + b5_ref[...]   # (1, tile_b)
    o_ref[...] = out_row.astype(o_ref.dtype)


def fold_params(p):
    """Fold BN1/BN2 (eval mode) + biases into fc1/fc2; pad fc4/fc5 to 128 lanes; bf16 matmul weights."""
    s1 = p["g1"] * jax.lax.rsqrt(p["v1"] + BN_EPS)          # (1, 512)
    s2 = p["g2"] * jax.lax.rsqrt(p["v2"] + BN_EPS)          # (1, 256)
    w4 = jnp.pad(p["w4"], ((0, 0), (0, 64)))                # (128, 128), zero-padded columns
    b4 = jnp.pad(p["b4"], ((0, 0), (0, 64)))                # (1, 128)
    w5 = jnp.pad(p["w5"], ((0, 64), (0, 0)))                # (128, 1), f32 column for the VPU head
    return {
        "w1": (p["w1"] * s1).astype(jnp.bfloat16),
        "b1": (p["b1"] - p["m1"]) * s1 + p["be1"],
        "w2": (p["w2"] * s2).astype(jnp.bfloat16),
        "b2": (p["b2"] - p["m2"]) * s2 + p["be2"],
        "w3": p["w3"].astype(jnp.bfloat16),
        "b3": p["b3"],
        "w4": w4.astype(jnp.bfloat16),
        "b4": b4,
        "w5": w5,                                            # keep f32 (VPU/XLU path)
        "b5": p["b5"],                                       # (1, 1)
    }


def mlp_forward(x, fp, tile_b=None):
    """x: (B, input_size) float32. fp: folded params from fold_params()."""
    B, D = x.shape
    if tile_b is None:
        tile_b = _pick_tile_b(B)
    n_tiles = pl.cdiv(B, tile_b)
    B_pad = n_tiles * tile_b
    if B_pad != B:
        x = jnp.pad(x, ((0, B_pad - B), (0, 0)))

    weight_args = (fp["w1"], fp["b1"], fp["w2"], fp["b2"], fp["w3"], fp["b3"],
                   fp["w4"], fp["b4"], fp["w5"], fp["b5"])

    # Cost / VMEM accounting (used for the scheduler hint and the explicit vmem limit).
    param_bytes = sum(int(a.size) * a.dtype.itemsize for a in weight_args)
    x_tile_bytes = tile_b * D * 4
    out_tile_bytes = tile_b * 4
    act_bytes = tile_b * (512 + 512 + 256 + 256 + 128 + 128) * 4   # rough live intermediates
    vmem_limit = int(2 * param_bytes + 2 * (x_tile_bytes + out_tile_bytes)
                     + 2 * act_bytes + (8 << 20))
    vmem_limit = max(vmem_limit, 32 << 20)
    vmem_limit = min(vmem_limit, 64 << 20)                          # <= v7x physical VMEM

    flops = 2 * B_pad * (D * 512 + 512 * 256 + 256 * 128 + 128 * 128 + 128)
    bytes_accessed = int(param_bytes + B_pad * D * 4 + B_pad * 4)

    def resident_spec(arr, single_buffer):
        # Full-array block, constant index_map -> loaded once, stays VMEM-resident across the grid.
        idx_map = lambda *_: (0,) * arr.ndim
        if single_buffer:
            # Constant blocks never change: single-buffer them to halve resident-weight VMEM.
            return pl.BlockSpec(arr.shape, idx_map, pipeline_mode=pl.Buffered(1))
        return pl.BlockSpec(arr.shape, idx_map)

    def run(single_buffer_weights):
        in_specs = ([pl.BlockSpec((tile_b, D), lambda i: (i, 0))]
                    + [resident_spec(a, single_buffer_weights) for a in weight_args])
        # Lane-dense output: (1, B_pad) array, (1, tile_b) blocks -> unmasked stores.
        out_specs = pl.BlockSpec((1, tile_b), lambda i: (0, i))
        return pl.pallas_call(
            mlp_kernel,
            out_shape=jax.ShapeDtypeStruct((1, B_pad), jnp.float32),
            grid=(n_tiles,),
            in_specs=in_specs,
            out_specs=out_specs,
            compiler_params=pltpu.CompilerParams(
                dimension_semantics=("parallel",),
                vmem_limit_bytes=vmem_limit),
            cost_estimate=pl.CostEstimate(
                flops=flops, transcendentals=0, bytes_accessed=bytes_accessed),
        )(x, *weight_args)

    try:
        out_row = run(single_buffer_weights=True)
    except Exception:
        # pl.Buffered(1) not supported on this jax version -> fall back to default double-buffering.
        out_row = run(single_buffer_weights=False)

    return out_row[0, :B].reshape(B, 1)


def init_params(key, input_size):
    """Deterministic parameter init. Weights stored (in, out); biases/BN params as (1, out)."""
    dims = [(input_size, 512), (512, 256), (256, 128), (128, 64), (64, 1)]
    params = {}
    keys = jax.random.split(key, 2 * len(dims))
    for i, (fan_in, fan_out) in enumerate(dims):
        bound = 1.0 / jnp.sqrt(fan_in)
        params[f"w{i + 1}"] = jax.random.uniform(
            keys[2 * i], (fan_in, fan_out), jnp.float32, -bound, bound)
        params[f"b{i + 1}"] = jax.random.uniform(
            keys[2 * i + 1], (1, fan_out), jnp.float32, -bound, bound)
    # BatchNorm1d params / running stats (deterministic, slightly non-trivial).
    for idx, n in [(1, 512), (2, 256)]:
        r = jnp.arange(n, dtype=jnp.float32)
        params[f"g{idx}"] = (1.0 + 0.01 * r).reshape(1, n)       # gamma
        params[f"be{idx}"] = (0.01 * r - 0.5).reshape(1, n)      # beta
        params[f"m{idx}"] = (0.001 * r).reshape(1, n)            # running_mean
        params[f"v{idx}"] = (1.0 + 0.002 * r).reshape(1, n)      # running_var
    return params


def mlp_reference_f32(x, p):
    """Pure-f32 reference matching the PyTorch module (eval mode)."""
    h = x @ p["w1"] + p["b1"]
    h = (h - p["m1"]) * (p["g1"] / jnp.sqrt(p["v1"] + BN_EPS)) + p["be1"]
    h = jnp.maximum(h, 0.0)
    h = h @ p["w2"] + p["b2"]
    h = (h - p["m2"]) * (p["g2"] / jnp.sqrt(p["v2"] + BN_EPS)) + p["be2"]
    h = jnp.maximum(h, 0.0)
    h = jnp.maximum(h @ p["w3"] + p["b3"], 0.0)
    h = jnp.maximum(h @ p["w4"] + p["b4"], 0.0)
    return h @ p["w5"] + p["b5"]


def mlp_reference_folded(x, fp):
    """Reference mimicking the kernel's folded-BN / bf16-matmul / padded-tail numerics."""
    h = jnp.dot(x.astype(jnp.bfloat16), fp["w1"], preferred_element_type=jnp.float32)
    h = jnp.maximum(h + fp["b1"], 0.0)
    h = jnp.dot(h.astype(jnp.bfloat16), fp["w2"], preferred_element_type=jnp.float32)
    h = jnp.maximum(h + fp["b2"], 0.0)
    h = jnp.dot(h.astype(jnp.bfloat16), fp["w3"], preferred_element_type=jnp.float32)
    h = jnp.maximum(h + fp["b3"], 0.0)
    h = jnp.dot(h.astype(jnp.bfloat16), fp["w4"], preferred_element_type=jnp.float32)
    h = jnp.maximum(h + fp["b4"], 0.0)
    return jnp.dot(h, fp["w5"]) + fp["b5"]


if __name__ == "__main__":
    key = jax.random.PRNGKey(0)
    k_x, k_p = jax.random.split(key)

    batch = 8
    input_size = 32
    x = jax.random.normal(k_x, (batch, input_size), jnp.float32)
    params = init_params(k_p, input_size)
    folded = fold_params(params)

    out = mlp_forward(x, folded)
    out = jax.block_until_ready(out)
    assert out.shape == (batch, 1), out.shape

    # Tight check against a reference with identical (folded, bf16-matmul) numerics.
    ref_folded = mlp_reference_folded(x, folded)
    assert jnp.allclose(out, ref_folded, atol=5e-2, rtol=1e-2), \
        float(jnp.max(jnp.abs(out - ref_folded)))

    # Looser sanity check against the pure-f32 PyTorch-semantics reference (bf16 rounding).
    ref_f32 = mlp_reference_f32(x, params)
    assert jnp.allclose(out, ref_f32, atol=5e-1, rtol=5e-2), \
        float(jnp.max(jnp.abs(out - ref_f32)))

    print("KERNEL_OK")
</pallas_src>

<mosaic_0001>
module attributes {stable_mosaic.version = 11 : i64} {
  func.func @mlp_kernel(%arg0: i32, %arg1: memref<128x32xf32, #tpu.memory_space<vmem>>, %arg2: memref<32x512xbf16, #tpu.memory_space<vmem>>, %arg3: memref<1x512xf32, #tpu.memory_space<vmem>>, %arg4: memref<512x256xbf16, #tpu.memory_space<vmem>>, %arg5: memref<1x256xf32, #tpu.memory_space<vmem>>, %arg6: memref<256x128xbf16, #tpu.memory_space<vmem>>, %arg7: memref<1x128xf32, #tpu.memory_space<vmem>>, %arg8: memref<128x128xbf16, #tpu.memory_space<vmem>>, %arg9: memref<1x128xf32, #tpu.memory_space<vmem>>, %arg10: memref<128x1xf32, #tpu.memory_space<vmem>>, %arg11: memref<1x1xf32, #tpu.memory_space<vmem>>, %arg12: memref<1x128xf32, #tpu.memory_space<vmem>>) attributes {dimension_semantics = [#tpu.dimension_semantics<parallel>], iteration_bounds = array<i64: 1>, scalar_prefetch = 0 : i64, scratch_operands = 0 : i64, tpu.core_type = #tpu.core_type<tc>, window_params = [{transform_indices = @transform_0, window_bounds = array<i64: 128, 32>}, {pipeline_mode = #tpu.pipeline_mode<synchronous>, transform_indices = @transform_1, window_bounds = array<i64: 32, 512>}, {pipeline_mode = #tpu.pipeline_mode<synchronous>, transform_indices = @transform_2, window_bounds = array<i64: 1, 512>}, {pipeline_mode = #tpu.pipeline_mode<synchronous>, transform_indices = @transform_3, window_bounds = array<i64: 512, 256>}, {pipeline_mode = #tpu.pipeline_mode<synchronous>, transform_indices = @transform_4, window_bounds = array<i64: 1, 256>}, {pipeline_mode = #tpu.pipeline_mode<synchronous>, transform_indices = @transform_5, window_bounds = array<i64: 256, 128>}, {pipeline_mode = #tpu.pipeline_mode<synchronous>, transform_indices = @transform_6, window_bounds = array<i64: 1, 128>}, {pipeline_mode = #tpu.pipeline_mode<synchronous>, transform_indices = @transform_7, window_bounds = array<i64: 128, 128>}, {pipeline_mode = #tpu.pipeline_mode<synchronous>, transform_indices = @transform_8, window_bounds = array<i64: 1, 128>}, {pipeline_mode = #tpu.pipeline_mode<synchronous>, transform_indices = @transform_9, window_bounds = array<i64: 128, 1>}, {pipeline_mode = #tpu.pipeline_mode<synchronous>, transform_indices = @transform_10, window_bounds = array<i64: 1, 1>}, {transform_indices = @transform_11, window_bounds = array<i64: 1, 128>}]} {
    %c0 = arith.constant 0 : index
    %c0_0 = arith.constant 0 : index
    %0 = vector.load %arg1[%c0, %c0_0] : memref<128x32xf32, #tpu.memory_space<vmem>>, vector<128x32xf32>
    %1 = arith.truncf %0 : vector<128x32xf32> to vector<128x32xbf16>
    %c0_1 = arith.constant 0 : index
    %c0_2 = arith.constant 0 : index
    %2 = vector.load %arg2[%c0_1, %c0_2] : memref<32x512xbf16, #tpu.memory_space<vmem>>, vector<32x512xbf16>
    %cst = arith.constant dense<0.000000e+00> : vector<128x512xf32>
    %3 = tpu.matmul %1, %2, %cst {dimension_numbers = #tpu.dot_dimension_numbers<[1], [0], [0], [1], [0, 0, 1, 1], [], []>} : vector<128x32xbf16>, vector<32x512xbf16>, vector<128x512xf32> -> vector<128x512xf32>
    %c0_3 = arith.constant 0 : index
    %c0_4 = arith.constant 0 : index
    %4 = vector.load %arg3[%c0_3, %c0_4] : memref<1x512xf32, #tpu.memory_space<vmem>>, vector<1x512xf32>
    %5 = vector.broadcast %4 : vector<1x512xf32> to vector<128x512xf32>
    %6 = arith.addf %3, %5 : vector<128x512xf32>
    %cst_5 = arith.constant 0.000000e+00 : f32
    %7 = vector.broadcast %cst_5 : f32 to vector<128x512xf32>
    %8 = arith.maximumf %6, %7 : vector<128x512xf32>
    %9 = arith.truncf %8 : vector<128x512xf32> to vector<128x512xbf16>
    %c0_6 = arith.constant 0 : index
    %c0_7 = arith.constant 0 : index
    %10 = vector.load %arg4[%c0_6, %c0_7] : memref<512x256xbf16, #tpu.memory_space<vmem>>, vector<512x256xbf16>
    %cst_8 = arith.constant dense<0.000000e+00> : vector<128x256xf32>
    %11 = tpu.matmul %9, %10, %cst_8 {dimension_numbers = #tpu.dot_dimension_numbers<[1], [0], [0], [1], [0, 0, 1, 1], [], []>} : vector<128x512xbf16>, vector<512x256xbf16>, vector<128x256xf32> -> vector<128x256xf32>
    %c0_9 = arith.constant 0 : index
    %c0_10 = arith.constant 0 : index
    %12 = vector.load %arg5[%c0_9, %c0_10] : memref<1x256xf32, #tpu.memory_space<vmem>>, vector<1x256xf32>
    %13 = vector.broadcast %12 : vector<1x256xf32> to vector<128x256xf32>
    %14 = arith.addf %11, %13 : vector<128x256xf32>
    %cst_11 = arith.constant 0.000000e+00 : f32
    %15 = vector.broadcast %cst_11 : f32 to vector<128x256xf32>
    %16 = arith.maximumf %14, %15 : vector<128x256xf32>
    %17 = arith.truncf %16 : vector<128x256xf32> to vector<128x256xbf16>
    %c0_12 = arith.constant 0 : index
    %c0_13 = arith.constant 0 : index
    %18 = vector.load %arg6[%c0_12, %c0_13] : memref<256x128xbf16, #tpu.memory_space<vmem>>, vector<256x128xbf16>
    %cst_14 = arith.constant dense<0.000000e+00> : vector<128x128xf32>
    %19 = tpu.matmul %17, %18, %cst_14 {dimension_numbers = #tpu.dot_dimension_numbers<[1], [0], [0], [1], [0, 0, 1, 1], [], []>} : vector<128x256xbf16>, vector<256x128xbf16>, vector<128x128xf32> -> vector<128x128xf32>
    %c0_15 = arith.constant 0 : index
    %c0_16 = arith.constant 0 : index
    %20 = vector.load %arg7[%c0_15, %c0_16] : memref<1x128xf32, #tpu.memory_space<vmem>>, vector<1x128xf32>
    %21 = vector.broadcast %20 : vector<1x128xf32> to vector<128x128xf32>
    %22 = arith.addf %19, %21 : vector<128x128xf32>
    %cst_17 = arith.constant 0.000000e+00 : f32
    %23 = vector.broadcast %cst_17 : f32 to vector<128x128xf32>
    %24 = arith.maximumf %22, %23 : vector<128x128xf32>
    %25 = arith.truncf %24 : vector<128x128xf32> to vector<128x128xbf16>
    %c0_18 = arith.constant 0 : index
    %c0_19 = arith.constant 0 : index
    %26 = vector.load %arg8[%c0_18, %c0_19] : memref<128x128xbf16, #tpu.memory_space<vmem>>, vector<128x128xbf16>
    %cst_20 = arith.constant dense<0.000000e+00> : vector<128x128xf32>
    %27 = tpu.matmul %25, %26, %cst_20 {dimension_numbers = #tpu.dot_dimension_numbers<[1], [0], [0], [1], [0, 0, 1, 1], [], []>} : vector<128x128xbf16>, vector<128x128xbf16>, vector<128x128xf32> -> vector<128x128xf32>
    %c0_21 = arith.constant 0 : index
    %c0_22 = arith.constant 0 : index
    %28 = vector.load %arg9[%c0_21, %c0_22] : memref<1x128xf32, #tpu.memory_space<vmem>>, vector<1x128xf32>
    %29 = vector.broadcast %28 : vector<1x128xf32> to vector<128x128xf32>
    %30 = arith.addf %27, %29 : vector<128x128xf32>
    %cst_23 = arith.constant 0.000000e+00 : f32
    %31 = vector.broadcast %cst_23 : f32 to vector<128x128xf32>
    %32 = arith.maximumf %30, %31 : vector<128x128xf32>
    %33 = tpu.transpose %32, [1, 0] : vector<128x128xf32> -> vector<128x128xf32>
    %c0_24 = arith.constant 0 : index
    %c0_25 = arith.constant 0 : index
    %34 = vector.load %arg10[%c0_24, %c0_25] : memref<128x1xf32, #tpu.memory_space<vmem>>, vector<128x1xf32>
    %35 = vector.broadcast %34 : vector<128x1xf32> to vector<128x128xf32>
    %36 = arith.mulf %33, %35 : vector<128x128xf32>
    %cst_26 = arith.constant dense<0.000000e+00> : vector<128xf32>
    %37 = vector.multi_reduction <add>, %36, %cst_26 [0] : vector<128x128xf32> to vector<128xf32>
    %38 = vector.shape_cast %37 : vector<128xf32> to vector<1x128xf32>
    %c0_27 = arith.constant 0 : index
    %c0_28 = arith.constant 0 : index
    %39 = vector.load %arg11[%c0_27, %c0_28] : memref<1x1xf32, #tpu.memory_space<vmem>>, vector<1x1xf32>
    %40 = vector.broadcast %39 : vector<1x1xf32> to vector<1x128xf32>
    %41 = arith.addf %38, %40 : vector<1x128xf32>
    %c0_29 = arith.constant 0 : index
    %c0_30 = arith.constant 0 : index
    %42 = vector.load %arg12[%c0_29, %c0_30] : memref<1x128xf32, #tpu.memory_space<vmem>>, vector<1x128xf32>
    tpu.vector_store %arg12[%c0_29, %c0_30], %41 {strides = array<i32>} : memref<1x128xf32, #tpu.memory_space<vmem>>, vector<1x128xf32>,
    return
  }
  func.func @transform_0(%arg0: i32) -> (i32, i32) {
    %c0_i32 = arith.constant 0 : i32
    %c0_i32_0 = arith.constant 0 : i32
    return %arg0, %c0_i32 : i32, i32
  }
  func.func @transform_1(%arg0: i32) -> (i32, i32) {
    %c0_i32 = arith.constant 0 : i32
    %c0_i32_0 = arith.constant 0 : i32
    %c0_i32_1 = arith.constant 0 : i32
    return %c0_i32, %c0_i32_0 : i32, i32
  }
  func.func @transform_2(%arg0: i32) -> (i32, i32) {
    %c0_i32 = arith.constant 0 : i32
    %c0_i32_0 = arith.constant 0 : i32
    %c0_i32_1 = arith.constant 0 : i32
    return %c0_i32, %c0_i32_0 : i32, i32
  }
  func.func @transform_3(%arg0: i32) -> (i32, i32) {
    %c0_i32 = arith.constant 0 : i32
    %c0_i32_0 = arith.constant 0 : i32
    %c0_i32_1 = arith.constant 0 : i32
    return %c0_i32, %c0_i32_0 : i32, i32
  }
  func.func @transform_4(%arg0: i32) -> (i32, i32) {
    %c0_i32 = arith.constant 0 : i32
    %c0_i32_0 = arith.constant 0 : i32
    %c0_i32_1 = arith.constant 0 : i32
    return %c0_i32, %c0_i32_0 : i32, i32
  }
  func.func @transform_5(%arg0: i32) -> (i32, i32) {
    %c0_i32 = arith.constant 0 : i32
    %c0_i32_0 = arith.constant 0 : i32
    %c0_i32_1 = arith.constant 0 : i32
    return %c0_i32, %c0_i32_0 : i32, i32
  }
  func.func @transform_6(%arg0: i32) -> (i32, i32) {
    %c0_i32 = arith.constant 0 : i32
    %c0_i32_0 = arith.constant 0 : i32
    %c0_i32_1 = arith.constant 0 : i32
    return %c0_i32, %c0_i32_0 : i32, i32
  }
  func.func @transform_7(%arg0: i32) -> (i32, i32) {
    %c0_i32 = arith.constant 0 : i32
    %c0_i32_0 = arith.constant 0 : i32
    %c0_i32_1 = arith.constant 0 : i32
    return %c0_i32, %c0_i32_0 : i32, i32
  }
  func.func @transform_8(%arg0: i32) -> (i32, i32) {
    %c0_i32 = arith.constant 0 : i32
    %c0_i32_0 = arith.constant 0 : i32
    %c0_i32_1 = arith.constant 0 : i32
    return %c0_i32, %c0_i32_0 : i32, i32
  }
  func.func @transform_9(%arg0: i32) -> (i32, i32) {
    %c0_i32 = arith.constant 0 : i32
    %c0_i32_0 = arith.constant 0 : i32
    %c0_i32_1 = arith.constant 0 : i32
    return %c0_i32, %c0_i32_0 : i32, i32
  }
  func.func @transform_10(%arg0: i32) -> (i32, i32) {
    %c0_i32 = arith.constant 0 : i32
    %c0_i32_0 = arith.constant 0 : i32
    %c0_i32_1 = arith.constant 0 : i32
    return %c0_i32, %c0_i32_0 : i32, i32
  }
  func.func @transform_11(%arg0: i32) -> (i32, i32) {
    %c0_i32 = arith.constant 0 : i32
    %c0_i32_0 = arith.constant 0 : i32
    return %c0_i32, %arg0 : i32, i32
  }
}

module attributes {stable_mosaic.version = 11 : i64} {
  func.func @mlp_kernel(%arg0: i32, %arg1: memref<128x32xf32, #tpu.memory_space<vmem>>, %arg2: memref<32x512xbf16, #tpu.memory_space<vmem>>, %arg3: memref<1x512xf32, #tpu.memory_space<vmem>>, %arg4: memref<512x256xbf16, #tpu.memory_space<vmem>>, %arg5: memref<1x256xf32, #tpu.memory_space<vmem>>, %arg6: memref<256x128xbf16, #tpu.memory_space<vmem>>, %arg7: memref<1x128xf32, #tpu.memory_space<vmem>>, %arg8: memref<128x128xbf16, #tpu.memory_space<vmem>>, %arg9: memref<1x128xf32, #tpu.memory_space<vmem>>, %arg10: memref<128x1xf32, #tpu.memory_space<vmem>>, %arg11: memref<1x1xf32, #tpu.memory_space<vmem>>, %arg12: memref<1x128xf32, #tpu.memory_space<vmem>>) attributes {dimension_semantics = [#tpu.dimension_semantics<parallel>], iteration_bounds = array<i64: 1>, scalar_prefetch = 0 : i64, scratch_operands = 0 : i64, tpu.core_type = #tpu.core_type<tc>, window_params = [{transform_indices = @transform_0, window_bounds = array<i64: 128, 32>}, {pipeline_mode = #tpu.pipeline_mode<synchronous>, transform_indices = @transform_1, window_bounds = array<i64: 32, 512>}, {pipeline_mode = #tpu.pipeline_mode<synchronous>, transform_indices = @transform_2, window_bounds = array<i64: 1, 512>}, {pipeline_mode = #tpu.pipeline_mode<synchronous>, transform_indices = @transform_3, window_bounds = array<i64: 512, 256>}, {pipeline_mode = #tpu.pipeline_mode<synchronous>, transform_indices = @transform_4, window_bounds = array<i64: 1, 256>}, {pipeline_mode = #tpu.pipeline_mode<synchronous>, transform_indices = @transform_5, window_bounds = array<i64: 256, 128>}, {pipeline_mode = #tpu.pipeline_mode<synchronous>, transform_indices = @transform_6, window_bounds = array<i64: 1, 128>}, {pipeline_mode = #tpu.pipeline_mode<synchronous>, transform_indices = @transform_7, window_bounds = array<i64: 128, 128>}, {pipeline_mode = #tpu.pipeline_mode<synchronous>, transform_indices = @transform_8, window_bounds = array<i64: 1, 128>}, {pipeline_mode = #tpu.pipeline_mode<synchronous>, transform_indices = @transform_9, window_bounds = array<i64: 128, 1>}, {pipeline_mode = #tpu.pipeline_mode<synchronous>, transform_indices = @transform_10, window_bounds = array<i64: 1, 1>}, {transform_indices = @transform_11, window_bounds = array<i64: 1, 128>}]} {
    %c0 = arith.constant 0 : index
    %c0_0 = arith.constant 0 : index
    %0 = vector.load %arg1[%c0, %c0_0] : memref<128x32xf32, #tpu.memory_space<vmem>>, vector<128x32xf32>
    %1 = arith.truncf %0 : vector<128x32xf32> to vector<128x32xbf16>
    %c0_1 = arith.constant 0 : index
    %c0_2 = arith.constant 0 : index
    %2 = vector.load %arg2[%c0_1, %c0_2] : memref<32x512xbf16, #tpu.memory_space<vmem>>, vector<32x512xbf16>
    %cst = arith.constant dense<0.000000e+00> : vector<128x512xf32>
    %3 = tpu.matmul %1, %2, %cst {dimension_numbers = #tpu.dot_dimension_numbers<[1], [0], [0], [1], [0, 0, 1, 1], [], []>} : vector<128x32xbf16>, vector<32x512xbf16>, vector<128x512xf32> -> vector<128x512xf32>
    %c0_3 = arith.constant 0 : index
    %c0_4 = arith.constant 0 : index
    %4 = vector.load %arg3[%c0_3, %c0_4] : memref<1x512xf32, #tpu.memory_space<vmem>>, vector<1x512xf32>
    %5 = vector.broadcast %4 : vector<1x512xf32> to vector<128x512xf32>
    %6 = arith.addf %3, %5 : vector<128x512xf32>
    %cst_5 = arith.constant 0.000000e+00 : f32
    %7 = vector.broadcast %cst_5 : f32 to vector<128x512xf32>
    %8 = arith.maximumf %6, %7 : vector<128x512xf32>
    %9 = arith.truncf %8 : vector<128x512xf32> to vector<128x512xbf16>
    %c0_6 = arith.constant 0 : index
    %c0_7 = arith.constant 0 : index
    %10 = vector.load %arg4[%c0_6, %c0_7] : memref<512x256xbf16, #tpu.memory_space<vmem>>, vector<512x256xbf16>
    %cst_8 = arith.constant dense<0.000000e+00> : vector<128x256xf32>
    %11 = tpu.matmul %9, %10, %cst_8 {dimension_numbers = #tpu.dot_dimension_numbers<[1], [0], [0], [1], [0, 0, 1, 1], [], []>} : vector<128x512xbf16>, vector<512x256xbf16>, vector<128x256xf32> -> vector<128x256xf32>
    %c0_9 = arith.constant 0 : index
    %c0_10 = arith.constant 0 : index
    %12 = vector.load %arg5[%c0_9, %c0_10] : memref<1x256xf32, #tpu.memory_space<vmem>>, vector<1x256xf32>
    %13 = vector.broadcast %12 : vector<1x256xf32> to vector<128x256xf32>
    %14 = arith.addf %11, %13 : vector<128x256xf32>
    %cst_11 = arith.constant 0.000000e+00 : f32
    %15 = vector.broadcast %cst_11 : f32 to vector<128x256xf32>
    %16 = arith.maximumf %14, %15 : vector<128x256xf32>
    %17 = arith.truncf %16 : vector<128x256xf32> to vector<128x256xbf16>
    %c0_12 = arith.constant 0 : index
    %c0_13 = arith.constant 0 : index
    %18 = vector.load %arg6[%c0_12, %c0_13] : memref<256x128xbf16, #tpu.memory_space<vmem>>, vector<256x128xbf16>
    %cst_14 = arith.constant dense<0.000000e+00> : vector<128x128xf32>
    %19 = tpu.matmul %17, %18, %cst_14 {dimension_numbers = #tpu.dot_dimension_numbers<[1], [0], [0], [1], [0, 0, 1, 1], [], []>} : vector<128x256xbf16>, vector<256x128xbf16>, vector<128x128xf32> -> vector<128x128xf32>
    %c0_15 = arith.constant 0 : index
    %c0_16 = arith.constant 0 : index
    %20 = vector.load %arg7[%c0_15, %c0_16] : memref<1x128xf32, #tpu.memory_space<vmem>>, vector<1x128xf32>
    %21 = vector.broadcast %20 : vector<1x128xf32> to vector<128x128xf32>
    %22 = arith.addf %19, %21 : vector<128x128xf32>
    %cst_17 = arith.constant 0.000000e+00 : f32
    %23 = vector.broadcast %cst_17 : f32 to vector<128x128xf32>
    %24 = arith.maximumf %22, %23 : vector<128x128xf32>
    %25 = arith.truncf %24 : vector<128x128xf32> to vector<128x128xbf16>
    %c0_18 = arith.constant 0 : index
    %c0_19 = arith.constant 0 : index
    %26 = vector.load %arg8[%c0_18, %c0_19] : memref<128x128xbf16, #tpu.memory_space<vmem>>, vector<128x128xbf16>
    %cst_20 = arith.constant dense<0.000000e+00> : vector<128x128xf32>
    %27 = tpu.matmul %25, %26, %cst_20 {dimension_numbers = #tpu.dot_dimension_numbers<[1], [0], [0], [1], [0, 0, 1, 1], [], []>} : vector<128x128xbf16>, vector<128x128xbf16>, vector<128x128xf32> -> vector<128x128xf32>
    %c0_21 = arith.constant 0 : index
    %c0_22 = arith.constant 0 : index
    %28 = vector.load %arg9[%c0_21, %c0_22] : memref<1x128xf32, #tpu.memory_space<vmem>>, vector<1x128xf32>
    %29 = vector.broadcast %28 : vector<1x128xf32> to vector<128x128xf32>
    %30 = arith.addf %27, %29 : vector<128x128xf32>
    %cst_23 = arith.constant 0.000000e+00 : f32
    %31 = vector.broadcast %cst_23 : f32 to vector<128x128xf32>
    %32 = arith.maximumf %30, %31 : vector<128x128xf32>
    %33 = tpu.transpose %32, [1, 0] : vector<128x128xf32> -> vector<128x128xf32>
    %c0_24 = arith.constant 0 : index
    %c0_25 = arith.constant 0 : index
    %34 = vector.load %arg10[%c0_24, %c0_25] : memref<128x1xf32, #tpu.memory_space<vmem>>, vector<128x1xf32>
    %35 = vector.broadcast %34 : vector<128x1xf32> to vector<128x128xf32>
    %36 = arith.mulf %33, %35 : vector<128x128xf32>
    %cst_26 = arith.constant dense<0.000000e+00> : vector<128xf32>
    %37 = vector.multi_reduction <add>, %36, %cst_26 [0] : vector<128x128xf32> to vector<128xf32>
    %38 = vector.shape_cast %37 : vector<128xf32> to vector<1x128xf32>
    %c0_27 = arith.constant 0 : index
    %c0_28 = arith.constant 0 : index
    %39 = vector.load %arg11[%c0_27, %c0_28] : memref<1x1xf32, #tpu.memory_space<vmem>>, vector<1x1xf32>
    %40 = vector.broadcast %39 : vector<1x1xf32> to vector<1x128xf32>
    %41 = arith.addf %38, %40 : vector<1x128xf32>
    %c0_29 = arith.constant 0 : index
    %c0_30 = arith.constant 0 : index
    %42 = vector.load %arg12[%c0_29, %c0_30] : memref<1x128xf32, #tpu.memory_space<vmem>>, vector<1x128xf32>
    tpu.vector_store %arg12[%c0_29, %c0_30], %41 {strides = array<i32>} : memref<1x128xf32, #tpu.memory_space<vmem>>, vector<1x128xf32>,
    return
  }
  func.func @transform_0(%arg0: i32) -> (i32, i32) {
    %c0_i32 = arith.constant 0 : i32
    %c0_i32_0 = arith.constant 0 : i32
    return %arg0, %c0_i32 : i32, i32
  }
  func.func @transform_1(%arg0: i32) -> (i32, i32) {
    %c0_i32 = arith.constant 0 : i32
    %c0_i32_0 = arith.constant 0 : i32
    %c0_i32_1 = arith.constant 0 : i32
    return %c0_i32, %c0_i32_0 : i32, i32
  }
  func.func @transform_2(%arg0: i32) -> (i32, i32) {
    %c0_i32 = arith.constant 0 : i32
    %c0_i32_0 = arith.constant 0 : i32
    %c0_i32_1 = arith.constant 0 : i32
    return %c0_i32, %c0_i32_0 : i32, i32
  }
  func.func @transform_3(%arg0: i32) -> (i32, i32) {
    %c0_i32 = arith.constant 0 : i32
    %c0_i32_0 = arith.constant 0 : i32
    %c0_i32_1 = arith.constant 0 : i32
    return %c0_i32, %c0_i32_0 : i32, i32
  }
  func.func @transform_4(%arg0: i32) -> (i32, i32) {
    %c0_i32 = arith.constant 0 : i32
    %c0_i32_0 = arith.constant 0 : i32
    %c0_i32_1 = arith.constant 0 : i32
    return %c0_i32, %c0_i32_0 : i32, i32
  }
  func.func @transform_5(%arg0: i32) -> (i32, i32) {
    %c0_i32 = arith.constant 0 : i32
    %c0_i32_0 = arith.constant 0 : i32
    %c0_i32_1 = arith.constant 0 : i32
    return %c0_i32, %c0_i32_0 : i32, i32
  }
  func.func @transform_6(%arg0: i32) -> (i32, i32) {
    %c0_i32 = arith.constant 0 : i32
    %c0_i32_0 = arith.constant 0 : i32
    %c0_i32_1 = arith.constant 0 : i32
    return %c0_i32, %c0_i32_0 : i32, i32
  }
  func.func @transform_7(%arg0: i32) -> (i32, i32) {
    %c0_i32 = arith.constant 0 : i32
    %c0_i32_0 = arith.constant 0 : i32
    %c0_i32_1 = arith.constant 0 : i32
    return %c0_i32, %c0_i32_0 : i32, i32
  }
  func.func @transform_8(%arg0: i32) -> (i32, i32) {
    %c0_i32 = arith.constant 0 : i32
    %c0_i32_0 = arith.constant 0 : i32
    %c0_i32_1 = arith.constant 0 : i32
    return %c0_i32, %c0_i32_0 : i32, i32
  }
  func.func @transform_9(%arg0: i32) -> (i32, i32) {
    %c0_i32 = arith.constant 0 : i32
    %c0_i32_0 = arith.constant 0 : i32
    %c0_i32_1 = arith.constant 0 : i32
    return %c0_i32, %c0_i32_0 : i32, i32
  }
  func.func @transform_10(%arg0: i32) -> (i32, i32) {
    %c0_i32 = arith.constant 0 : i32
    %c0_i32_0 = arith.constant 0 : i32
    %c0_i32_1 = arith.constant 0 : i32
    return %c0_i32, %c0_i32_0 : i32, i32
  }
  func.func @transform_11(%arg0: i32) -> (i32, i32) {
    %c0_i32 = arith.constant 0 : i32
    %c0_i32_0 = arith.constant 0 : i32
    return %c0_i32, %arg0 : i32, i32
  }
}

</mosaic_0001>

<llo_original>
// kernel: tpu_custom_call.1
$region0: #{tpu_custom_call.1}
  #allocation0 [shape = 'u32[]', space=smem, size = 0x4, offset = 0x4, fixed_abs, tag = 'smem constant byte address 0x4 - core index']
  #allocation1 [shape = 'u32[144,128]{1,0:T(1,128)}', space=vmem, size = 0x12000, scoped, tag = 'internal scratch']
  #allocation2 [shape = 'f32[1,1]{1,0:T(1,128)S(1)}', space=vmem, size = 0x200, scoped, tag = 'scoped memory for tpu_custom_call.1']
  %s0 = inlined_call_operand.vmem [shape: f32[128,32], index: 0, kind: input, shape index: {}]
  %s1 = inlined_call_operand.vmem [shape: bf16[32,512], index: 1, kind: input, shape index: {}]
  %s2 = inlined_call_operand.vmem [shape: f32[1,512], index: 2, kind: input, shape index: {}]
  %s3 = inlined_call_operand.hbm [shape: bf16[512,256], index: 3, kind: input, shape index: {}]
  %s4 = inlined_call_operand.vmem [shape: f32[1,256], index: 4, kind: input, shape index: {}]
  %s5 = inlined_call_operand.vmem [shape: bf16[256,128], index: 5, kind: input, shape index: {}]
  %s6 = inlined_call_operand.vmem [shape: f32[1,128], index: 6, kind: input, shape index: {}]
  %s7 = inlined_call_operand.vmem [shape: bf16[128,128], index: 7, kind: input, shape index: {}]
  %s8 = inlined_call_operand.vmem [shape: f32[1,128], index: 8, kind: input, shape index: {}]
  %s9 = inlined_call_operand.vmem [shape: f32[128,1], index: 9, kind: input, shape index: {}]
  %s10 = inlined_call_operand.<no memory space> [shape: f32[1,1], index: 10, kind: input, shape index: {}]
  %s11 = inlined_call_operand.hbm [shape: f32[1,128], index: 11, kind: output, shape index: {}]
  %s12 = sld [smem:[#allocation0]]
  $region58: #{tpu_custom_call.1} parent=0
    _
  %s14 = ssub.s32 1, %s12
  %s15 = scalar_select 0, %s14, %s12
  %v16 = vstv %s10
  %17 = vst [vmem:[#allocation2] sm:$0x1] %v16
  $region1: #{tpu_custom_call.1} parent=0
    #allocation3 [shape = 'u8[262144]{0}', space=vmem, size = 0x40000, scoped, tag = 'input window, operand 3, single buffered']
    #allocation4 [shape = 's32[1]{0}', space=sflag, size = 0x4, scoped, tag = 'scoped memory for tpu_custom_call.1']
    #allocation5 [shape = 's32[1]{0}', space=sflag, size = 0x4, scoped, tag = 'scoped memory for tpu_custom_call.1']
    #allocation6 [shape = 'u8[512]{0}', space=vmem, size = 0x400, scoped, tag = 'output window, operand 0, single buffered']
    %18 = vsyncpa [#allocation4], 0
    %19 = vsyncpa [#allocation5], 0
    // Predicated region
    $region2: #{tpu_custom_call.1} parent=1 // pred_check
      _
    $region3: #{tpu_custom_call.1} parent=1 // pred_check_branch
      %21 = sbr.rel (0) target = $region5
    $region4: #{tpu_custom_call.1} parent=1 // pred_region
      _
    $region5: #{tpu_custom_call.1} parent=1 // pred_fallthru
      _
    // Predicated region
    $region6: #{tpu_custom_call.1} parent=1 // pred_check
      _
    $region7: #{tpu_custom_call.1} parent=1 // pred_check_branch
      %23 = sbr.rel (0) target = $region9
    $region8: #{tpu_custom_call.1} parent=1 // pred_region
      _
    $region9: #{tpu_custom_call.1} parent=1 // pred_fallthru
      _
    // Predicated region
    $region10: #{tpu_custom_call.1} parent=1 // pred_check
      _
    $region11: #{tpu_custom_call.1} parent=1 // pred_check_branch
      %25 = sbr.rel (0) target = $region13
    $region12: #{tpu_custom_call.1} parent=1 // pred_region
      _
    $region13: #{tpu_custom_call.1} parent=1 // pred_fallthru
      _
    // Predicated region
    $region14: #{tpu_custom_call.1} parent=1 // pred_check
      _
    $region15: #{tpu_custom_call.1} parent=1 // pred_check_branch
      %27 = sbr.rel (0) target = $region17
    $region16: #{tpu_custom_call.1} parent=1 // pred_region
      %s29 = ssub.s32 8192, 8192
      %30 = vsyncadd [#allocation4], %s29
      %s31 = sshll.u32 [#allocation3], 4
      %s32 = int_to_ptr.vmem [resolvable:$true] %s31
      %37 = dma.hbm_to_vmem [thread:$0]  %s3, 8192, %s32, [#allocation4], 128, 128, 8
    $region17: #{tpu_custom_call.1} parent=1 // pred_fallthru
      _
    // Predicated region
    $region18: #{tpu_custom_call.1} parent=1 // pred_check
      _
    $region19: #{tpu_custom_call.1} parent=1 // pred_check_branch
      %39 = sbr.rel (0) target = $region21
    $region20: #{tpu_custom_call.1} parent=1 // pred_region
      _
    $region21: #{tpu_custom_call.1} parent=1 // pred_fallthru
      _
    // Predicated region
    $region22: #{tpu_custom_call.1} parent=1 // pred_check
      _
    $region23: #{tpu_custom_call.1} parent=1 // pred_check_branch
      %41 = sbr.rel (0) target = $region25
    $region24: #{tpu_custom_call.1} parent=1 // pred_region
      _
    $region25: #{tpu_custom_call.1} parent=1 // pred_fallthru
      _
    // Predicated region
    $region26: #{tpu_custom_call.1} parent=1 // pred_check
      _
    $region27: #{tpu_custom_call.1} parent=1 // pred_check_branch
      %43 = sbr.rel (0) target = $region29
    $region28: #{tpu_custom_call.1} parent=1 // pred_region
      _
    $region29: #{tpu_custom_call.1} parent=1 // pred_fallthru
      _
    // Predicated region
    $region30: #{tpu_custom_call.1} parent=1 // pred_check
      _
    $region31: #{tpu_custom_call.1} parent=1 // pred_check_branch
      %45 = sbr.rel (0) target = $region33
    $region32: #{tpu_custom_call.1} parent=1 // pred_region
      _
    $region33: #{tpu_custom_call.1} parent=1 // pred_fallthru
      _
    // Predicated region
    $region34: #{tpu_custom_call.1} parent=1 // pred_check
      _
    $region35: #{tpu_custom_call.1} parent=1 // pred_check_branch
      %47 = sbr.rel (0) target = $region37
    $region36: #{tpu_custom_call.1} parent=1 // pred_region
      _
    $region37: #{tpu_custom_call.1} parent=1 // pred_fallthru
      _
    // Predicated region
    $region38: #{tpu_custom_call.1} parent=1 // pred_check
      _
    $region39: #{tpu_custom_call.1} parent=1 // pred_check_branch
      %49 = sbr.rel (0) target = $region41
    $region40: #{tpu_custom_call.1} parent=1 // pred_region
      _
    $region41: #{tpu_custom_call.1} parent=1 // pred_fallthru
      _
    // Predicated region
    $region42: #{tpu_custom_call.1} parent=1 // pred_check
      _
    $region43: #{tpu_custom_call.1} parent=1 // pred_check_branch
      %51 = sbr.rel (0) target = $region45
    $region44: #{tpu_custom_call.1} parent=1 // pred_region
      _
    $region45: #{tpu_custom_call.1} parent=1 // pred_fallthru
      _
    // Predicated region
    $region46: #{tpu_custom_call.1} parent=1 // pred_check
      _
    $region47: #{tpu_custom_call.1} parent=1 // pred_check_branch
      %53 = sbr.rel (0) target = $region49
    $region48: #{tpu_custom_call.1} parent=1 // pred_region
      %54 = dma.done [#allocation4], 8192
    $region49: #{tpu_custom_call.1} parent=1 // pred_fallthru
      _
    %v56 = vld [vmem:[%s0] sm:$0xff]
    %v57 = vld [vmem:[%s0 + $0x8] sm:$0xff]
    %v58 = vld [vmem:[%s0 + $0x10] sm:$0xff]
    %v59 = vld [vmem:[%s0 + $0x18] sm:$0xff]
    %v60 = vld [vmem:[%s0 + $0x20] sm:$0xff]
    %v61 = vld [vmem:[%s0 + $0x28] sm:$0xff]
    %v62 = vld [vmem:[%s0 + $0x30] sm:$0xff]
    %v63 = vld [vmem:[%s0 + $0x38] sm:$0xff]
    %v64 = vld [vmem:[%s0 + $0x40] sm:$0xff]
    %v65 = vld [vmem:[%s0 + $0x48] sm:$0xff]
    %v66 = vld [vmem:[%s0 + $0x50] sm:$0xff]
    %v67 = vld [vmem:[%s0 + $0x58] sm:$0xff]
    %v68 = vld [vmem:[%s0 + $0x60] sm:$0xff]
    %v69 = vld [vmem:[%s0 + $0x68] sm:$0xff]
    %v70 = vld [vmem:[%s0 + $0x70] sm:$0xff]
    %v71 = vld [vmem:[%s0 + $0x78] sm:$0xff]
    %v72 = vpack.c.bf16 %v57, %v56
    %v73 = vpack.c.bf16 %v59, %v58
    %v74 = vpack.c.bf16 %v61, %v60
    %v75 = vpack.c.bf16 %v63, %v62
    %v76 = vpack.c.bf16 %v65, %v64
    %v77 = vpack.c.bf16 %v67, %v66
    %v78 = vpack.c.bf16 %v69, %v68
    %v79 = vpack.c.bf16 %v71, %v70
    %v80 = vld [vmem:[%s1] sm:$0xff]
    %v81 = vld [vmem:[%s1 + $0x8] sm:$0xff]
    %v82 = vld [vmem:[%s1 + $0x10] sm:$0xff]
    %v83 = vld [vmem:[%s1 + $0x18] sm:$0xff]
    %v84 = vld [vmem:[%s1 + $0x20] sm:$0xff]
    %v85 = vld [vmem:[%s1 + $0x28] sm:$0xff]
    %v86 = vld [vmem:[%s1 + $0x30] sm:$0xff]
    %v87 = vld [vmem:[%s1 + $0x38] sm:$0xff]
    %v88 = vld [vmem:[%s2] sm:$0xf]
    %v90 = vlaneseq
    %v91 = vshrl.u32 %v90, 7
    %v92 = vsub.s32 0, %v91
    %v93 = vrot.slane %v88, %v92
    %v94 = vlaneseq
    %v95 = vshrl.u32 %v94, 7
    %v96 = vsub.s32 1, %v95
    %v97 = vrot.slane %v88, %v96
    %v98 = vlaneseq
    %v99 = vshrl.u32 %v98, 7
    %v100 = vsub.s32 2, %v99
    %v101 = vrot.slane %v88, %v100
    %v102 = vlaneseq
    %v103 = vshrl.u32 %v102, 7
    %v104 = vsub.s32 3, %v103
    %v105 = vrot.slane %v88, %v104
    %v118 = vunpack.c.l.b16 %v80
    %v119 = vunpack.c.h.b16 %v80
    %v120 = vunpack.c.l.b16 %v81
    %v121 = vunpack.c.h.b16 %v81
    %v122 = vunpack.c.l.b16 %v82
    %v123 = vunpack.c.h.b16 %v82
    %v124 = vunpack.c.l.b16 %v83
    %v125 = vunpack.c.h.b16 %v83
    %v126 = vunpack.c.l.b16 %v84
    %v127 = vunpack.c.h.b16 %v84
    %v128 = vunpack.c.l.b16 %v85
    %v129 = vunpack.c.h.b16 %v85
    %v130 = vunpack.c.l.b16 %v86
    %v131 = vunpack.c.h.b16 %v86
    %v132 = vunpack.c.l.b16 %v87
    %v133 = vunpack.c.h.b16 %v87
    %v134 = vpack.c.b16 %v122, %v118
    %v135 = vpack.c.b16 %v123, %v119
    %v136 = vpack.c.b16 %v124, %v120
    %v137 = vpack.c.b16 %v125, %v121
    %v138 = vpack.c.b16 %v130, %v126
    %v139 = vpack.c.b16 %v131, %v127
    %v140 = vpack.c.b16 %v132, %v128
    %v141 = vpack.c.b16 %v133, %v129
    %vm150 = vcmask 261120
    %v152 = vsel %vm150, %v72, 0
    %v155 = vsel %vm150, %v73, 0
    %v158 = vsel %vm150, %v74, 0
    %v161 = vsel %vm150, %v75, 0
    %v164 = vsel %vm150, %v76, 0
    %v167 = vsel %vm150, %v77, 0
    %v170 = vsel %vm150, %v78, 0
    %v173 = vsel %vm150, %v79, 0
    %175 = vmatprep.subr.bf16.mxu0 %v135
    %176 = vmatpush1.bf16.msra.mxu0 %v134
    %177 = vmatprep.subr.bf16.mxu0 %v139
    %178 = vmatpush1.bf16.msra.mxu0 %v138
    %179 = vmatprep.subr.bf16.mxu0 0
    %180 = vmatpush1.bf16.msra.mxu0 0
    %181 = vmatprep.subr.bf16.mxu0 0
    %182 = vmatpush1.bf16.msra.mxu0 0
    %183 = vmatprep.subr.bf16.mxu0 0
    %184 = vmatpush1.bf16.msra.mxu0 0
    %185 = vmatprep.subr.bf16.mxu0 0
    %186 = vmatpush1.bf16.msra.mxu0 0
    %187 = vmatprep.subr.bf16.mxu0 0
    %188 = vmatpush1.bf16.msra.mxu0 0
    %189 = vmatprep.subr.bf16.mxu0 0
    %190 = vmatpush1.bf16.msra.mxu0 0
    %191 = vmatprep.subr.bf16.mxu0 0
    %192 = vmatpush1.bf16.msra.mxu0 0
    %193 = vmatprep.subr.bf16.mxu0 0
    %194 = vmatpush1.bf16.msra.mxu0 0
    %195 = vmatprep.subr.bf16.mxu0 0
    %196 = vmatpush1.bf16.msra.mxu0 0
    %197 = vmatprep.subr.bf16.mxu0 0
    %198 = vmatpush1.bf16.msra.mxu0 0
    %199 = vmatprep.subr.bf16.mxu0 0
    %200 = vmatpush1.bf16.msra.mxu0 0
    %201 = vmatprep.subr.bf16.mxu0 0
    %202 = vmatpush1.bf16.msra.mxu0 0
    %203 = vmatprep.subr.bf16.mxu0 0
    %204 = vmatpush1.bf16.msra.mxu0 0
    %205 = vmatprep.subr.bf16.mxu0 0
    %206 = vmatpush1.bf16.msra.mxu0 0
    %207 = vmatprep.mubr.bf16.mxu0 0
    %208 = vmatmul.mubr.bf16.gmra.mrb[0].mxu0 %v152
    %v209 = vpop.f32.mrb[0].mxu0
    %v210 = vadd.f32 %v93, %v209
    %v211 = vpop.f32.mrb[0].mxu0
    %v212 = vadd.f32 %v97, %v211
    %v213 = vpop.f32.mrb[0].mxu0
    %v214 = vadd.f32 %v93, %v213
    %v215 = vpop.f32.mrb[0].mxu0
    %v216 = vadd.f32 %v97, %v215
    %217 = vmatprep.mubr.bf16.mxu0 0
    %218 = vmatmul.mubr.bf16.gmra.mrb[0].mxu0 %v155
    %v219 = vpop.f32.mrb[0].mxu0
    %v220 = vadd.f32 %v93, %v219
    %v221 = vpop.f32.mrb[0].mxu0
    %v222 = vadd.f32 %v97, %v221
    %v223 = vpop.f32.mrb[0].mxu0
    %v224 = vadd.f32 %v93, %v223
    %v225 = vpop.f32.mrb[0].mxu0
    %v226 = vadd.f32 %v97, %v225
    %227 = vmatprep.mubr.bf16.mxu0 0
    %228 = vmatmul.mubr.bf16.gmra.mrb[0].mxu0 %v158
    %v229 = vpop.f32.mrb[0].mxu0
    %v230 = vadd.f32 %v93, %v229
    %v231 = vpop.f32.mrb[0].mxu0
    %v232 = vadd.f32 %v97, %v231
    %v233 = vpop.f32.mrb[0].mxu0
    %v234 = vadd.f32 %v93, %v233
    %v235 = vpop.f32.mrb[0].mxu0
    %v236 = vadd.f32 %v97, %v235
    %237 = vmatprep.mubr.bf16.mxu0 0
    %238 = vmatmul.mubr.bf16.gmra.mrb[0].mxu0 %v161
    %v239 = vpop.f32.mrb[0].mxu0
    %v240 = vadd.f32 %v93, %v239
    %v241 = vpop.f32.mrb[0].mxu0
    %v242 = vadd.f32 %v97, %v241
    %v243 = vpop.f32.mrb[0].mxu0
    %v244 = vadd.f32 %v93, %v243
    %v245 = vpop.f32.mrb[0].mxu0
    %v246 = vadd.f32 %v97, %v245
    %247 = vmatprep.mubr.bf16.mxu0 0
    %248 = vmatmul.mubr.bf16.gmra.mrb[0].mxu0 %v164
    %v249 = vpop.f32.mrb[0].mxu0
    %v250 = vadd.f32 %v93, %v249
    %v251 = vpop.f32.mrb[0].mxu0
    %v252 = vadd.f32 %v97, %v251
    %v253 = vpop.f32.mrb[0].mxu0
    %v254 = vadd.f32 %v93, %v253
    %v255 = vpop.f32.mrb[0].mxu0
    %v256 = vadd.f32 %v97, %v255
    %257 = vmatprep.mubr.bf16.mxu0 0
    %258 = vmatmul.mubr.bf16.gmra.mrb[0].mxu0 %v167
    %v259 = vpop.f32.mrb[0].mxu0
    %v260 = vadd.f32 %v93, %v259
    %v261 = vpop.f32.mrb[0].mxu0
    %v262 = vadd.f32 %v97, %v261
    %v263 = vpop.f32.mrb[0].mxu0
    %v264 = vadd.f32 %v93, %v263
    %v265 = vpop.f32.mrb[0].mxu0
    %v266 = vadd.f32 %v97, %v265
    %267 = vmatprep.mubr.bf16.mxu0 0
    %268 = vmatmul.mubr.bf16.gmra.mrb[0].mxu0 %v170
    %v269 = vpop.f32.mrb[0].mxu0
    %v270 = vadd.f32 %v93, %v269
    %v271 = vpop.f32.mrb[0].mxu0
    %v272 = vadd.f32 %v97, %v271
    %v273 = vpop.f32.mrb[0].mxu0
    %v274 = vadd.f32 %v93, %v273
    %v275 = vpop.f32.mrb[0].mxu0
    %v276 = vadd.f32 %v97, %v275
    %277 = vmatprep.mubr.bf16.mxu0 0
    %278 = vmatmul.mubr.bf16.gmra.mrb[0].mxu0 %v173
    %v279 = vpop.f32.mrb[0].mxu0
    %v280 = vadd.f32 %v93, %v279
    %v281 = vpop.f32.mrb[0].mxu0
    %v282 = vadd.f32 %v97, %v281
    %v283 = vpop.f32.mrb[0].mxu0
    %v284 = vadd.f32 %v93, %v283
    %v285 = vpop.f32.mrb[0].mxu0
    %v286 = vadd.f32 %v97, %v285
    %287 = vdwg.mxu0
    %288 = vmatprep.subr.bf16.mxu0 %v137
    %289 = vmatpush1.bf16.msra.mxu0 %v136
    %290 = vmatprep.subr.bf16.mxu0 %v141
    %291 = vmatpush1.bf16.msra.mxu0 %v140
    %292 = vmatprep.subr.bf16.mxu0 0
    %293 = vmatpush1.bf16.msra.mxu0 0
    %294 = vmatprep.subr.bf16.mxu0 0
    %295 = vmatpush1.bf16.msra.mxu0 0
    %296 = vmatprep.subr.bf16.mxu0 0
    %297 = vmatpush1.bf16.msra.mxu0 0
    %298 = vmatprep.subr.bf16.mxu0 0
    %299 = vmatpush1.bf16.msra.mxu0 0
    %300 = vmatprep.subr.bf16.mxu0 0
    %301 = vmatpush1.bf16.msra.mxu0 0
    %302 = vmatprep.subr.bf16.mxu0 0
    %303 = vmatpush1.bf16.msra.mxu0 0
    %304 = vmatprep.subr.bf16.mxu0 0
    %305 = vmatpush1.bf16.msra.mxu0 0
    %306 = vmatprep.subr.bf16.mxu0 0
    %307 = vmatpush1.bf16.msra.mxu0 0
    %308 = vmatprep.subr.bf16.mxu0 0
    %309 = vmatpush1.bf16.msra.mxu0 0
    %310 = vmatprep.subr.bf16.mxu0 0
    %311 = vmatpush1.bf16.msra.mxu0 0
    %312 = vmatprep.subr.bf16.mxu0 0
    %313 = vmatpush1.bf16.msra.mxu0 0
    %314 = vmatprep.subr.bf16.mxu0 0
    %315 = vmatpush1.bf16.msra.mxu0 0
    %316 = vmatprep.subr.bf16.mxu0 0
    %317 = vmatpush1.bf16.msra.mxu0 0
    %318 = vmatprep.subr.bf16.mxu0 0
    %319 = vmatpush1.bf16.msra.mxu0 0
    %320 = vmatprep.mubr.bf16.mxu0 0
    %321 = vmatmul.mubr.bf16.gmra.mrb[0].mxu0 %v152
    %v322 = vpop.f32.mrb[0].mxu0
    %v323 = vadd.f32 %v101, %v322
    %v324 = vpop.f32.mrb[0].mxu0
    %v325 = vadd.f32 %v105, %v324
    %v326 = vpop.f32.mrb[0].mxu0
    %v327 = vadd.f32 %v101, %v326
    %v328 = vpop.f32.mrb[0].mxu0
    %v329 = vadd.f32 %v105, %v328
    %330 = vmatprep.mubr.bf16.mxu0 0
    %331 = vmatmul.mubr.bf16.gmra.mrb[0].mxu0 %v155
    %v332 = vpop.f32.mrb[0].mxu0
    %v333 = vadd.f32 %v101, %v332
    %v334 = vpop.f32.mrb[0].mxu0
    %v335 = vadd.f32 %v105, %v334
    %v336 = vpop.f32.mrb[0].mxu0
    %v337 = vadd.f32 %v101, %v336
    %v338 = vpop.f32.mrb[0].mxu0
    %v339 = vadd.f32 %v105, %v338
    %340 = vmatprep.mubr.bf16.mxu0 0
    %341 = vmatmul.mubr.bf16.gmra.mrb[0].mxu0 %v158
    %v342 = vpop.f32.mrb[0].mxu0
    %v343 = vadd.f32 %v101, %v342
    %v344 = vpop.f32.mrb[0].mxu0
    %v345 = vadd.f32 %v105, %v344
    %v346 = vpop.f32.mrb[0].mxu0
    %v347 = vadd.f32 %v101, %v346
    %v348 = vpop.f32.mrb[0].mxu0
    %v349 = vadd.f32 %v105, %v348
    %350 = vmatprep.mubr.bf16.mxu0 0
    %351 = vmatmul.mubr.bf16.gmra.mrb[0].mxu0 %v161
    %v352 = vpop.f32.mrb[0].mxu0
    %v353 = vadd.f32 %v101, %v352
    %v354 = vpop.f32.mrb[0].mxu0
    %v355 = vadd.f32 %v105, %v354
    %v356 = vpop.f32.mrb[0].mxu0
    %v357 = vadd.f32 %v101, %v356
    %v358 = vpop.f32.mrb[0].mxu0
    %v359 = vadd.f32 %v105, %v358
    %360 = vmatprep.mubr.bf16.mxu0 0
    %361 = vmatmul.mubr.bf16.gmra.mrb[0].mxu0 %v164
    %v362 = vpop.f32.mrb[0].mxu0
    %v363 = vadd.f32 %v101, %v362
    %v364 = vpop.f32.mrb[0].mxu0
    %v365 = vadd.f32 %v105, %v364
    %v366 = vpop.f32.mrb[0].mxu0
    %v367 = vadd.f32 %v101, %v366
    %v368 = vpop.f32.mrb[0].mxu0
    %v369 = vadd.f32 %v105, %v368
    %370 = vmatprep.mubr.bf16.mxu0 0
    %371 = vmatmul.mubr.bf16.gmra.mrb[0].mxu0 %v167
    %v372 = vpop.f32.mrb[0].mxu0
    %v373 = vadd.f32 %v101, %v372
    %v374 = vpop.f32.mrb[0].mxu0
    %v375 = vadd.f32 %v105, %v374
    %v376 = vpop.f32.mrb[0].mxu0
    %v377 = vadd.f32 %v101, %v376
    %v378 = vpop.f32.mrb[0].mxu0
    %v379 = vadd.f32 %v105, %v378
    %380 = vmatprep.mubr.bf16.mxu0 0
    %381 = vmatmul.mubr.bf16.gmra.mrb[0].mxu0 %v170
    %v382 = vpop.f32.mrb[0].mxu0
    %v383 = vadd.f32 %v101, %v382
    %v384 = vpop.f32.mrb[0].mxu0
    %v385 = vadd.f32 %v105, %v384
    %v386 = vpop.f32.mrb[0].mxu0
    %v387 = vadd.f32 %v101, %v386
    %v388 = vpop.f32.mrb[0].mxu0
    %v389 = vadd.f32 %v105, %v388
    %390 = vmatprep.mubr.bf16.mxu0 0
    %391 = vmatmul.mubr.bf16.gmra.mrb[0].mxu0 %v173
    %v392 = vpop.f32.mrb[0].mxu0
    %v393 = vadd.f32 %v101, %v392
    %v394 = vpop.f32.mrb[0].mxu0
    %v395 = vadd.f32 %v105, %v394
    %v396 = vpop.f32.mrb[0].mxu0
    %v397 = vadd.f32 %v101, %v396
    %v398 = vpop.f32.mrb[0].mxu0
    %v399 = vadd.f32 %v105, %v398
    %400 = vdwg.mxu0
    %v401 = vmax.f32 %v210, 0.0
    %v402 = vmax.f32 %v212, 0.0
    %v403 = vmax.f32 %v323, 0.0
    %v404 = vmax.f32 %v325, 0.0
    %v405 = vmax.f32 %v214, 0.0
    %v406 = vmax.f32 %v216, 0.0
    %v407 = vmax.f32 %v327, 0.0
    %v408 = vmax.f32 %v329, 0.0
    %v409 = vmax.f32 %v220, 0.0
    %v410 = vmax.f32 %v222, 0.0
    %v411 = vmax.f32 %v333, 0.0
    %v412 = vmax.f32 %v335, 0.0
    %v413 = vmax.f32 %v224, 0.0
    %v414 = vmax.f32 %v226, 0.0
    %v415 = vmax.f32 %v337, 0.0
    %v416 = vmax.f32 %v339, 0.0
    %v417 = vmax.f32 %v230, 0.0
    %v418 = vmax.f32 %v232, 0.0
    %v419 = vmax.f32 %v343, 0.0
    %v420 = vmax.f32 %v345, 0.0
    %v421 = vmax.f32 %v234, 0.0
    %v422 = vmax.f32 %v236, 0.0
    %v423 = vmax.f32 %v347, 0.0
    %v424 = vmax.f32 %v349, 0.0
    %v425 = vmax.f32 %v240, 0.0
    %v426 = vmax.f32 %v242, 0.0
    %v427 = vmax.f32 %v353, 0.0
    %v428 = vmax.f32 %v355, 0.0
    %v429 = vmax.f32 %v244, 0.0
    %v430 = vmax.f32 %v246, 0.0
    %v431 = vmax.f32 %v357, 0.0
    %v432 = vmax.f32 %v359, 0.0
    %v433 = vmax.f32 %v250, 0.0
    %v434 = vmax.f32 %v252, 0.0
    %v435 = vmax.f32 %v363, 0.0
    %v436 = vmax.f32 %v365, 0.0
    %v437 = vmax.f32 %v254, 0.0
    %v438 = vmax.f32 %v256, 0.0
    %v439 = vmax.f32 %v367, 0.0
    %v440 = vmax.f32 %v369, 0.0
    %v441 = vmax.f32 %v260, 0.0
    %v442 = vmax.f32 %v262, 0.0
    %v443 = vmax.f32 %v373, 0.0
    %v444 = vmax.f32 %v375, 0.0
    %v445 = vmax.f32 %v264, 0.0
    %v446 = vmax.f32 %v266, 0.0
    %v447 = vmax.f32 %v377, 0.0
    %v448 = vmax.f32 %v379, 0.0
    %v449 = vmax.f32 %v270, 0.0
    %v450 = vmax.f32 %v272, 0.0
    %v451 = vmax.f32 %v383, 0.0
    %v452 = vmax.f32 %v385, 0.0
    %v453 = vmax.f32 %v274, 0.0
    %v454 = vmax.f32 %v276, 0.0
    %v455 = vmax.f32 %v387, 0.0
    %v456 = vmax.f32 %v389, 0.0
    %v457 = vmax.f32 %v280, 0.0
    %v458 = vmax.f32 %v282, 0.0
    %v459 = vmax.f32 %v393, 0.0
    %v460 = vmax.f32 %v395, 0.0
    %v461 = vmax.f32 %v284, 0.0
    %v462 = vmax.f32 %v286, 0.0
    %v463 = vmax.f32 %v397, 0.0
    %v464 = vmax.f32 %v399, 0.0
    %v465 = vpack.c.bf16 %v405, %v401
    %v466 = vpack.c.bf16 %v406, %v402
    %v467 = vpack.c.bf16 %v407, %v403
    %v468 = vpack.c.bf16 %v408, %v404
    %v469 = vpack.c.bf16 %v413, %v409
    %v470 = vpack.c.bf16 %v414, %v410
    %v471 = vpack.c.bf16 %v415, %v411
    %v472 = vpack.c.bf16 %v416, %v412
    %v473 = vpack.c.bf16 %v421, %v417
    %v474 = vpack.c.bf16 %v422, %v418
    %v475 = vpack.c.bf16 %v423, %v419
    %v476 = vpack.c.bf16 %v424, %v420
    %v477 = vpack.c.bf16 %v429, %v425
    %v478 = vpack.c.bf16 %v430, %v426
    %v479 = vpack.c.bf16 %v431, %v427
    %v480 = vpack.c.bf16 %v432, %v428
    %v481 = vpack.c.bf16 %v437, %v433
    %v482 = vpack.c.bf16 %v438, %v434
    %v483 = vpack.c.bf16 %v439, %v435
    %v484 = vpack.c.bf16 %v440, %v436
    %v485 = vpack.c.bf16 %v445, %v441
    %v486 = vpack.c.bf16 %v446, %v442
    %v487 = vpack.c.bf16 %v447, %v443
    %v488 = vpack.c.bf16 %v448, %v444
    %v489 = vpack.c.bf16 %v453, %v449
    %v490 = vpack.c.bf16 %v454, %v450
    %v491 = vpack.c.bf16 %v455, %v451
    %v492 = vpack.c.bf16 %v456, %v452
    %v493 = vpack.c.bf16 %v461, %v457
    %v494 = vpack.c.bf16 %v462, %v458
    %v495 = vpack.c.bf16 %v463, %v459
    %v496 = vpack.c.bf16 %v464, %v460
    %v497 = vld [vmem:[#allocation3] sm:$0xff]
    %v498 = vld [vmem:[#allocation3 + $0x8] sm:$0xff]
    %v499 = vld [vmem:[#allocation3 + $0x10] sm:$0xff]
    %v500 = vld [vmem:[#allocation3 + $0x18] sm:$0xff]
    %v501 = vld [vmem:[#allocation3 + $0x20] sm:$0xff]
    %v502 = vld [vmem:[#allocation3 + $0x28] sm:$0xff]
    %v503 = vld [vmem:[#allocation3 + $0x30] sm:$0xff]
    %v504 = vld [vmem:[#allocation3 + $0x38] sm:$0xff]
    %v505 = vld [vmem:[#allocation3 + $0x40] sm:$0xff]
    %v506 = vld [vmem:[#allocation3 + $0x48] sm:$0xff]
    %v507 = vld [vmem:[#allocation3 + $0x50] sm:$0xff]
    %v508 = vld [vmem:[#allocation3 + $0x58] sm:$0xff]
    %v509 = vld [vmem:[#allocation3 + $0x60] sm:$0xff]
    %v510 = vld [vmem:[#allocation3 + $0x68] sm:$0xff]
    %v511 = vld [vmem:[#allocation3 + $0x70] sm:$0xff]
    %v512 = vld [vmem:[#allocation3 + $0x78] sm:$0xff]
    %v513 = vld [vmem:[#allocation3 + $0x80] sm:$0xff]
    %v514 = vld [vmem:[#allocation3 + $0x88] sm:$0xff]
    %v515 = vld [vmem:[#allocation3 + $0x90] sm:$0xff]
    %v516 = vld [vmem:[#allocation3 + $0x98] sm:$0xff]
    %v517 = vld [vmem:[#allocation3 + $0xa0] sm:$0xff]
    %v518 = vld [vmem:[#allocation3 + $0xa8] sm:$0xff]
    %v519 = vld [vmem:[#allocation3 + $0xb0] sm:$0xff]
    %v520 = vld [vmem:[#allocation3 + $0xb8] sm:$0xff]
    %v521 = vld [vmem:[#allocation3 + $0xc0] sm:$0xff]
    %v522 = vld [vmem:[#allocation3 + $0xc8] sm:$0xff]
    %v523 = vld [vmem:[#allocation3 + $0xd0] sm:$0xff]
    %v524 = vld [vmem:[#allocation3 + $0xd8] sm:$0xff]
    %v525 = vld [vmem:[#allocation3 + $0xe0] sm:$0xff]
    %v526 = vld [vmem:[#allocation3 + $0xe8] sm:$0xff]
    %v527 = vld [vmem:[#allocation3 + $0xf0] sm:$0xff]
    %v528 = vld [vmem:[#allocation3 + $0xf8] sm:$0xff]
    %v529 = vld [vmem:[#allocation3 + $0x100] sm:$0xff]
    %v530 = vld [vmem:[#allocation3 + $0x108] sm:$0xff]
    %v531 = vld [vmem:[#allocation3 + $0x110] sm:$0xff]
    %v532 = vld [vmem:[#allocation3 + $0x118] sm:$0xff]
    %v533 = vld [vmem:[#allocation3 + $0x120] sm:$0xff]
    %v534 = vld [vmem:[#allocation3 + $0x128] sm:$0xff]
    %v535 = vld [vmem:[#allocation3 + $0x130] sm:$0xff]
    %v536 = vld [vmem:[#allocation3 + $0x138] sm:$0xff]
    %v537 = vld [vmem:[#allocation3 + $0x140] sm:$0xff]
    %v538 = vld [vmem:[#allocation3 + $0x148] sm:$0xff]
    %v539 = vld [vmem:[#allocation3 + $0x150] sm:$0xff]
    %v540 = vld [vmem:[#allocation3 + $0x158] sm:$0xff]
    %v541 = vld [vmem:[#allocation3 + $0x160] sm:$0xff]
    %v542 = vld [vmem:[#allocation3 + $0x168] sm:$0xff]
    %v543 = vld [vmem:[#allocation3 + $0x170] sm:$0xff]
    %v544 = vld [vmem:[#allocation3 + $0x178] sm:$0xff]
    %v545 = vld [vmem:[#allocation3 + $0x180] sm:$0xff]
    %v546 = vld [vmem:[#allocation3 + $0x188] sm:$0xff]
    %v547 = vld [vmem:[#allocation3 + $0x190] sm:$0xff]
    %v548 = vld [vmem:[#allocation3 + $0x198] sm:$0xff]
    %v549 = vld [vmem:[#allocation3 + $0x1a0] sm:$0xff]
    %v550 = vld [vmem:[#allocation3 + $0x1a8] sm:$0xff]
    %v551 = vld [vmem:[#allocation3 + $0x1b0] sm:$0xff]
    %v552 = vld [vmem:[#allocation3 + $0x1b8] sm:$0xff]
    %v553 = vld [vmem:[#allocation3 + $0x1c0] sm:$0xff]
    %v554 = vld [vmem:[#allocation3 + $0x1c8] sm:$0xff]
    %v555 = vld [vmem:[#allocation3 + $0x1d0] sm:$0xff]
    %v556 = vld [vmem:[#allocation3 + $0x1d8] sm:$0xff]
    %v557 = vld [vmem:[#allocation3 + $0x1e0] sm:$0xff]
    %v558 = vld [vmem:[#allocation3 + $0x1e8] sm:$0xff]
    %v559 = vld [vmem:[#allocation3 + $0x1f0] sm:$0xff]
    %v560 = vld [vmem:[#allocation3 + $0x1f8] sm:$0xff]
    %v561 = vld [vmem:[%s4] sm:$0x3]
    %v563 = vlaneseq
    %v564 = vshrl.u32 %v563, 7
    %v565 = vsub.s32 0, %v564
    %v566 = vrot.slane %v561, %v565
    %v567 = vlaneseq
    %v568 = vshrl.u32 %v567, 7
    %v569 = vsub.s32 1, %v568
    %v570 = vrot.slane %v561, %v569
    %v637 = vunpack.c.l.b16 %v497
    %v638 = vunpack.c.h.b16 %v497
    %v639 = vunpack.c.l.b16 %v498
    %v640 = vunpack.c.h.b16 %v498
    %v641 = vunpack.c.l.b16 %v499
    %v642 = vunpack.c.h.b16 %v499
    %v643 = vunpack.c.l.b16 %v500
    %v644 = vunpack.c.h.b16 %v500
    %v645 = vunpack.c.l.b16 %v501
    %v646 = vunpack.c.h.b16 %v501
    %v647 = vunpack.c.l.b16 %v502
    %v648 = vunpack.c.h.b16 %v502
    %v649 = vunpack.c.l.b16 %v503
    %v650 = vunpack.c.h.b16 %v503
    %v651 = vunpack.c.l.b16 %v504
    %v652 = vunpack.c.h.b16 %v504
    %v653 = vunpack.c.l.b16 %v505
    %v654 = vunpack.c.h.b16 %v505
    %v655 = vunpack.c.l.b16 %v506
    %v656 = vunpack.c.h.b16 %v506
    %v657 = vunpack.c.l.b16 %v507
    %v658 = vunpack.c.h.b16 %v507
    %v659 = vunpack.c.l.b16 %v508
    %v660 = vunpack.c.h.b16 %v508
    %v661 = vunpack.c.l.b16 %v509
    %v662 = vunpack.c.h.b16 %v509
    %v663 = vunpack.c.l.b16 %v510
    %v664 = vunpack.c.h.b16 %v510
    %v665 = vunpack.c.l.b16 %v511
    %v666 = vunpack.c.h.b16 %v511
    %v667 = vunpack.c.l.b16 %v512
    %v668 = vunpack.c.h.b16 %v512
    %v669 = vunpack.c.l.b16 %v513
    %v670 = vunpack.c.h.b16 %v513
    %v671 = vunpack.c.l.b16 %v514
    %v672 = vunpack.c.h.b16 %v514
    %v673 = vunpack.c.l.b16 %v515
    %v674 = vunpack.c.h.b16 %v515
    %v675 = vunpack.c.l.b16 %v516
    %v676 = vunpack.c.h.b16 %v516
    %v677 = vunpack.c.l.b16 %v517
    %v678 = vunpack.c.h.b16 %v517
    %v679 = vunpack.c.l.b16 %v518
    %v680 = vunpack.c.h.b16 %v518
    %v681 = vunpack.c.l.b16 %v519
    %v682 = vunpack.c.h.b16 %v519
    %v683 = vunpack.c.l.b16 %v520
    %v684 = vunpack.c.h.b16 %v520
    %v685 = vunpack.c.l.b16 %v521
    %v686 = vunpack.c.h.b16 %v521
    %v687 = vunpack.c.l.b16 %v522
    %v688 = vunpack.c.h.b16 %v522
    %v689 = vunpack.c.l.b16 %v523
    %v690 = vunpack.c.h.b16 %v523
    %v691 = vunpack.c.l.b16 %v524
    %v692 = vunpack.c.h.b16 %v524
    %v693 = vunpack.c.l.b16 %v525
    %v694 = vunpack.c.h.b16 %v525
    %v695 = vunpack.c.l.b16 %v526
    %v696 = vunpack.c.h.b16 %v526
    %v697 = vunpack.c.l.b16 %v527
    %v698 = vunpack.c.h.b16 %v527
    %v699 = vunpack.c.l.b16 %v528
    %v700 = vunpack.c.h.b16 %v528
    %v701 = vunpack.c.l.b16 %v529
    %v702 = vunpack.c.h.b16 %v529
    %v703 = vunpack.c.l.b16 %v530
    %v704 = vunpack.c.h.b16 %v530
    %v705 = vunpack.c.l.b16 %v531
    %v706 = vunpack.c.h.b16 %v531
    %v707 = vunpack.c.l.b16 %v532
    %v708 = vunpack.c.h.b16 %v532
    %v709 = vunpack.c.l.b16 %v533
    %v710 = vunpack.c.h.b16 %v533
    %v711 = vunpack.c.l.b16 %v534
    %v712 = vunpack.c.h.b16 %v534
    %v713 = vunpack.c.l.b16 %v535
    %v714 = vunpack.c.h.b16 %v535
    %v715 = vunpack.c.l.b16 %v536
    %v716 = vunpack.c.h.b16 %v536
    %v717 = vunpack.c.l.b16 %v537
    %v718 = vunpack.c.h.b16 %v537
    %v719 = vunpack.c.l.b16 %v538
    %v720 = vunpack.c.h.b16 %v538
    %v721 = vunpack.c.l.b16 %v539
    %v722 = vunpack.c.h.b16 %v539
    %v723 = vunpack.c.l.b16 %v540
    %v724 = vunpack.c.h.b16 %v540
    %v725 = vunpack.c.l.b16 %v541
    %v726 = vunpack.c.h.b16 %v541
    %v727 = vunpack.c.l.b16 %v542
    %v728 = vunpack.c.h.b16 %v542
    %v729 = vunpack.c.l.b16 %v543
    %v730 = vunpack.c.h.b16 %v543
    %v731 = vunpack.c.l.b16 %v544
    %v732 = vunpack.c.h.b16 %v544
    %v733 = vunpack.c.l.b16 %v545
    %v734 = vunpack.c.h.b16 %v545
    %v735 = vunpack.c.l.b16 %v546
    %v736 = vunpack.c.h.b16 %v546
    %v737 = vunpack.c.l.b16 %v547
    %v738 = vunpack.c.h.b16 %v547
    %v739 = vunpack.c.l.b16 %v548
    %v740 = vunpack.c.h.b16 %v548
    %v741 = vunpack.c.l.b16 %v549
    %v742 = vunpack.c.h.b16 %v549
    %v743 = vunpack.c.l.b16 %v550
    %v744 = vunpack.c.h.b16 %v550
    %v745 = vunpack.c.l.b16 %v551
    %v746 = vunpack.c.h.b16 %v551
    %v747 = vunpack.c.l.b16 %v552
    %v748 = vunpack.c.h.b16 %v552
    %v749 = vunpack.c.l.b16 %v553
    %v750 = vunpack.c.h.b16 %v553
    %v751 = vunpack.c.l.b16 %v554
    %v752 = vunpack.c.h.b16 %v554
    %v753 = vunpack.c.l.b16 %v555
    %v754 = vunpack.c.h.b16 %v555
    %v755 = vunpack.c.l.b16 %v556
    %v756 = vunpack.c.h.b16 %v556
    %v757 = vunpack.c.l.b16 %v557
    %v758 = vunpack.c.h.b16 %v557
    %v759 = vunpack.c.l.b16 %v558
    %v760 = vunpack.c.h.b16 %v558
    %v761 = vunpack.c.l.b16 %v559
    %v762 = vunpack.c.h.b16 %v559
    %v763 = vunpack.c.l.b16 %v560
    %v764 = vunpack.c.h.b16 %v560
    %v765 = vpack.c.b16 %v639, %v637
    %v766 = vpack.c.b16 %v640, %v638
    %v767 = vpack.c.b16 %v643, %v641
    %v768 = vpack.c.b16 %v644, %v642
    %v769 = vpack.c.b16 %v647, %v645
    %v770 = vpack.c.b16 %v648, %v646
    %v771 = vpack.c.b16 %v651, %v649
    %v772 = vpack.c.b16 %v652, %v650
    %v773 = vpack.c.b16 %v655, %v653
    %v774 = vpack.c.b16 %v656, %v654
    %v775 = vpack.c.b16 %v659, %v657
    %v776 = vpack.c.b16 %v660, %v658
    %v777 = vpack.c.b16 %v663, %v661
    %v778 = vpack.c.b16 %v664, %v662
    %v779 = vpack.c.b16 %v667, %v665
    %v780 = vpack.c.b16 %v668, %v666
    %v781 = vpack.c.b16 %v671, %v669
    %v782 = vpack.c.b16 %v672, %v670
    %v783 = vpack.c.b16 %v675, %v673
    %v784 = vpack.c.b16 %v676, %v674
    %v785 = vpack.c.b16 %v679, %v677
    %v786 = vpack.c.b16 %v680, %v678
    %v787 = vpack.c.b16 %v683, %v681
    %v788 = vpack.c.b16 %v684, %v682
    %v789 = vpack.c.b16 %v687, %v685
    %v790 = vpack.c.b16 %v688, %v686
    %v791 = vpack.c.b16 %v691, %v689
    %v792 = vpack.c.b16 %v692, %v690
    %v793 = vpack.c.b16 %v695, %v693
    %v794 = vpack.c.b16 %v696, %v694
    %v795 = vpack.c.b16 %v699, %v697
    %v796 = vpack.c.b16 %v700, %v698
    %v797 = vpack.c.b16 %v703, %v701
    %v798 = vpack.c.b16 %v704, %v702
    %v799 = vpack.c.b16 %v707, %v705
    %v800 = vpack.c.b16 %v708, %v706
    %v801 = vpack.c.b16 %v711, %v709
    %v802 = vpack.c.b16 %v712, %v710
    %v803 = vpack.c.b16 %v715, %v713
    %v804 = vpack.c.b16 %v716, %v714
    %v805 = vpack.c.b16 %v719, %v717
    %v806 = vpack.c.b16 %v720, %v718
    %v807 = vpack.c.b16 %v723, %v721
    %v808 = vpack.c.b16 %v724, %v722
    %v809 = vpack.c.b16 %v727, %v725
    %v810 = vpack.c.b16 %v728, %v726
    %v811 = vpack.c.b16 %v731, %v729
    %v812 = vpack.c.b16 %v732, %v730
    %v813 = vpack.c.b16 %v735, %v733
    %v814 = vpack.c.b16 %v736, %v734
    %v815 = vpack.c.b16 %v739, %v737
    %v816 = vpack.c.b16 %v740, %v738
    %v817 = vpack.c.b16 %v743, %v741
    %v818 = vpack.c.b16 %v744, %v742
    %v819 = vpack.c.b16 %v747, %v745
    %v820 = vpack.c.b16 %v748, %v746
    %v821 = vpack.c.b16 %v751, %v749
    %v822 = vpack.c.b16 %v752, %v750
    %v823 = vpack.c.b16 %v755, %v753
    %v824 = vpack.c.b16 %v756, %v754
    %v825 = vpack.c.b16 %v759, %v757
    %v826 = vpack.c.b16 %v760, %v758
    %v827 = vpack.c.b16 %v763, %v761
    %v828 = vpack.c.b16 %v764, %v762
    %893 = vmatprep.subr.bf16.mxu0 %v766
    %894 = vmatpush1.bf16.msra.mxu0 %v765
    %895 = vmatprep.subr.bf16.mxu0 %v768
    %896 = vmatpush1.bf16.msra.mxu0 %v767
    %897 = vmatprep.subr.bf16.mxu0 %v770
    %898 = vmatpush1.bf16.msra.mxu0 %v769
    %899 = vmatprep.subr.bf16.mxu0 %v772
    %900 = vmatpush1.bf16.msra.mxu0 %v771
    %901 = vmatprep.subr.bf16.mxu0 %v774
    %902 = vmatpush1.bf16.msra.mxu0 %v773
    %903 = vmatprep.subr.bf16.mxu0 %v776
    %904 = vmatpush1.bf16.msra.mxu0 %v775
    %905 = vmatprep.subr.bf16.mxu0 %v778
    %906 = vmatpush1.bf16.msra.mxu0 %v777
    %907 = vmatprep.subr.bf16.mxu0 %v780
    %908 = vmatpush1.bf16.msra.mxu0 %v779
    %909 = vmatprep.subr.bf16.mxu0 %v782
    %910 = vmatpush1.bf16.msra.mxu0 %v781
    %911 = vmatprep.subr.bf16.mxu0 %v784
    %912 = vmatpush1.bf16.msra.mxu0 %v783
    %913 = vmatprep.subr.bf16.mxu0 %v786
    %914 = vmatpush1.bf16.msra.mxu0 %v785
    %915 = vmatprep.subr.bf16.mxu0 %v788
    %916 = vmatpush1.bf16.msra.mxu0 %v787
    %917 = vmatprep.subr.bf16.mxu0 %v790
    %918 = vmatpush1.bf16.msra.mxu0 %v789
    %919 = vmatprep.subr.bf16.mxu0 %v792
    %920 = vmatpush1.bf16.msra.mxu0 %v791
    %921 = vmatprep.subr.bf16.mxu0 %v794
    %922 = vmatpush1.bf16.msra.mxu0 %v793
    %923 = vmatprep.subr.bf16.mxu0 %v796
    %924 = vmatpush1.bf16.msra.mxu0 %v795
    %925 = vmatprep.mubr.bf16.mxu0 %v466
    %926 = vmatmul.mubr.bf16.gmra.mrb[0].mxu0 %v465
    %v927 = vpop.f32.mrb[0].mxu0
    %v928 = vadd.f32 %v566, %v927
    %v929 = vpop.f32.mrb[0].mxu0
    %v930 = vadd.f32 %v570, %v929
    %v931 = vpop.f32.mrb[0].mxu0
    %v932 = vadd.f32 %v566, %v931
    %v933 = vpop.f32.mrb[0].mxu0
    %v934 = vadd.f32 %v570, %v933
    %935 = vmatprep.mubr.bf16.mxu0 %v470
    %936 = vmatmul.mubr.bf16.gmra.mrb[0].mxu0 %v469
    %v937 = vpop.f32.mrb[0].mxu0
    %v938 = vadd.f32 %v566, %v937
    %v939 = vpop.f32.mrb[0].mxu0
    %v940 = vadd.f32 %v570, %v939
    %v941 = vpop.f32.mrb[0].mxu0
    %v942 = vadd.f32 %v566, %v941
    %v943 = vpop.f32.mrb[0].mxu0
    %v944 = vadd.f32 %v570, %v943
    %945 = vmatprep.mubr.bf16.mxu0 %v474
    %946 = vmatmul.mubr.bf16.gmra.mrb[0].mxu0 %v473
    %v947 = vpop.f32.mrb[0].mxu0
    %v948 = vadd.f32 %v566, %v947
    %v949 = vpop.f32.mrb[0].mxu0
    %v950 = vadd.f32 %v570, %v949
    %v951 = vpop.f32.mrb[0].mxu0
    %v952 = vadd.f32 %v566, %v951
    %v953 = vpop.f32.mrb[0].mxu0
    %v954 = vadd.f32 %v570, %v953
    %955 = vmatprep.mubr.bf16.mxu0 %v478
    %956 = vmatmul.mubr.bf16.gmra.mrb[0].mxu0 %v477
    %v957 = vpop.f32.mrb[0].mxu0
    %v958 = vadd.f32 %v566, %v957
    %v959 = vpop.f32.mrb[0].mxu0
    %v960 = vadd.f32 %v570, %v959
    %v961 = vpop.f32.mrb[0].mxu0
    %v962 = vadd.f32 %v566, %v961
    %v963 = vpop.f32.mrb[0].mxu0
    %v964 = vadd.f32 %v570, %v963
    %965 = vmatprep.mubr.bf16.mxu0 %v482
    %966 = vmatmul.mubr.bf16.gmra.mrb[0].mxu0 %v481
    %v967 = vpop.f32.mrb[0].mxu0
    %v968 = vadd.f32 %v566, %v967
    %v969 = vpop.f32.mrb[0].mxu0
    %v970 = vadd.f32 %v570, %v969
    %v971 = vpop.f32.mrb[0].mxu0
    %v972 = vadd.f32 %v566, %v971
    %v973 = vpop.f32.mrb[0].mxu0
    %v974 = vadd.f32 %v570, %v973
    %975 = vmatprep.mubr.bf16.mxu0 %v486
    %976 = vmatmul.mubr.bf16.gmra.mrb[0].mxu0 %v485
    %v977 = vpop.f32.mrb[0].mxu0
    %v978 = vadd.f32 %v566, %v977
    %v979 = vpop.f32.mrb[0].mxu0
    %v980 = vadd.f32 %v570, %v979
    %v981 = vpop.f32.mrb[0].mxu0
    %v982 = vadd.f32 %v566, %v981
    %v983 = vpop.f32.mrb[0].mxu0
    %v984 = vadd.f32 %v570, %v983
    %985 = vmatprep.mubr.bf16.mxu0 %v490
    %986 = vmatmul.mubr.bf16.gmra.mrb[0].mxu0 %v489
    %v987 = vpop.f32.mrb[0].mxu0
    %v988 = vadd.f32 %v566, %v987
    %v989 = vpop.f32.mrb[0].mxu0
    %v990 = vadd.f32 %v570, %v989
    %v991 = vpop.f32.mrb[0].mxu0
    %v992 = vadd.f32 %v566, %v991
    %v993 = vpop.f32.mrb[0].mxu0
    %v994 = vadd.f32 %v570, %v993
    %995 = vmatprep.mubr.bf16.mxu0 %v494
    %996 = vmatmul.mubr.bf16.gmra.mrb[0].mxu0 %v493
    %v997 = vpop.f32.mrb[0].mxu0
    %v998 = vadd.f32 %v566, %v997
    %v999 = vpop.f32.mrb[0].mxu0
    %v1000 = vadd.f32 %v570, %v999
    %v1001 = vpop.f32.mrb[0].mxu0
    %v1002 = vadd.f32 %v566, %v1001
    %v1003 = vpop.f32.mrb[0].mxu0
    %v1004 = vadd.f32 %v570, %v1003
    %1005 = vdwg.mxu0
    %1006 = vmatprep.subr.bf16.mxu0 %v798
    %1007 = vmatpush1.bf16.msra.mxu0 %v797
    %1008 = vmatprep.subr.bf16.mxu0 %v800
    %1009 = vmatpush1.bf16.msra.mxu0 %v799
    %1010 = vmatprep.subr.bf16.mxu0 %v802
    %1011 = vmatpush1.bf16.msra.mxu0 %v801
    %1012 = vmatprep.subr.bf16.mxu0 %v804
    %1013 = vmatpush1.bf16.msra.mxu0 %v803
    %1014 = vmatprep.subr.bf16.mxu0 %v806
    %1015 = vmatpush1.bf16.msra.mxu0 %v805
    %1016 = vmatprep.subr.bf16.mxu0 %v808
    %1017 = vmatpush1.bf16.msra.mxu0 %v807
    %1018 = vmatprep.subr.bf16.mxu0 %v810
    %1019 = vmatpush1.bf16.msra.mxu0 %v809
    %1020 = vmatprep.subr.bf16.mxu0 %v812
    %1021 = vmatpush1.bf16.msra.mxu0 %v811
    %1022 = vmatprep.subr.bf16.mxu0 %v814
    %1023 = vmatpush1.bf16.msra.mxu0 %v813
    %1024 = vmatprep.subr.bf16.mxu0 %v816
    %1025 = vmatpush1.bf16.msra.mxu0 %v815
    %1026 = vmatprep.subr.bf16.mxu0 %v818
    %1027 = vmatpush1.bf16.msra.mxu0 %v817
    %1028 = vmatprep.subr.bf16.mxu0 %v820
    %1029 = vmatpush1.bf16.msra.mxu0 %v819
    %1030 = vmatprep.subr.bf16.mxu0 %v822
    %1031 = vmatpush1.bf16.msra.mxu0 %v821
    %1032 = vmatprep.subr.bf16.mxu0 %v824
    %1033 = vmatpush1.bf16.msra.mxu0 %v823
    %1034 = vmatprep.subr.bf16.mxu0 %v826
    %1035 = vmatpush1.bf16.msra.mxu0 %v825
    %1036 = vmatprep.subr.bf16.mxu0 %v828
    %1037 = vmatpush1.bf16.msra.mxu0 %v827
    %1038 = vmatprep.mubr.bf16.mxu0 %v468
    %1039 = vmatmul.mubr.bf16.gmra.mrb[0].mxu0 %v467
    %v1040 = vpop.f32.mrb[0].mxu0
    %v1041 = vadd.f32 %v928, %v1040
    %v1042 = vpop.f32.mrb[0].mxu0
    %v1043 = vadd.f32 %v930, %v1042
    %v1044 = vpop.f32.mrb[0].mxu0
    %v1045 = vadd.f32 %v932, %v1044
    %v1046 = vpop.f32.mrb[0].mxu0
    %v1047 = vadd.f32 %v934, %v1046
    %1048 = vmatprep.mubr.bf16.mxu0 %v472
    %1049 = vmatmul.mubr.bf16.gmra.mrb[0].mxu0 %v471
    %v1050 = vpop.f32.mrb[0].mxu0
    %v1051 = vadd.f32 %v938, %v1050
    %v1052 = vpop.f32.mrb[0].mxu0
    %v1053 = vadd.f32 %v940, %v1052
    %v1054 = vpop.f32.mrb[0].mxu0
    %v1055 = vadd.f32 %v942, %v1054
    %v1056 = vpop.f32.mrb[0].mxu0
    %v1057 = vadd.f32 %v944, %v1056
    %1058 = vmatprep.mubr.bf16.mxu0 %v476
    %1059 = vmatmul.mubr.bf16.gmra.mrb[0].mxu0 %v475
    %v1060 = vpop.f32.mrb[0].mxu0
    %v1061 = vadd.f32 %v948, %v1060
    %v1062 = vpop.f32.mrb[0].mxu0
    %v1063 = vadd.f32 %v950, %v1062
    %v1064 = vpop.f32.mrb[0].mxu0
    %v1065 = vadd.f32 %v952, %v1064
    %v1066 = vpop.f32.mrb[0].mxu0
    %v1067 = vadd.f32 %v954, %v1066
    %1068 = vmatprep.mubr.bf16.mxu0 %v480
    %1069 = vmatmul.mubr.bf16.gmra.mrb[0].mxu0 %v479
    %v1070 = vpop.f32.mrb[0].mxu0
    %v1071 = vadd.f32 %v958, %v1070
    %v1072 = vpop.f32.mrb[0].mxu0
    %v1073 = vadd.f32 %v960, %v1072
    %v1074 = vpop.f32.mrb[0].mxu0
    %v1075 = vadd.f32 %v962, %v1074
    %v1076 = vpop.f32.mrb[0].mxu0
    %v1077 = vadd.f32 %v964, %v1076
    %1078 = vmatprep.mubr.bf16.mxu0 %v484
    %1079 = vmatmul.mubr.bf16.gmra.mrb[0].mxu0 %v483
    %v1080 = vpop.f32.mrb[0].mxu0
    %v1081 = vadd.f32 %v968, %v1080
    %v1082 = vpop.f32.mrb[0].mxu0
    %v1083 = vadd.f32 %v970, %v1082
    %v1084 = vpop.f32.mrb[0].mxu0
    %v1085 = vadd.f32 %v972, %v1084
    %v1086 = vpop.f32.mrb[0].mxu0
    %v1087 = vadd.f32 %v974, %v1086
    %1088 = vmatprep.mubr.bf16.mxu0 %v488
    %1089 = vmatmul.mubr.bf16.gmra.mrb[0].mxu0 %v487
    %v1090 = vpop.f32.mrb[0].mxu0
    %v1091 = vadd.f32 %v978, %v1090
    %v1092 = vpop.f32.mrb[0].mxu0
    %v1093 = vadd.f32 %v980, %v1092
    %v1094 = vpop.f32.mrb[0].mxu0
    %v1095 = vadd.f32 %v982, %v1094
    %v1096 = vpop.f32.mrb[0].mxu0
    %v1097 = vadd.f32 %v984, %v1096
    %1098 = vmatprep.mubr.bf16.mxu0 %v492
    %1099 = vmatmul.mubr.bf16.gmra.mrb[0].mxu0 %v491
    %v1100 = vpop.f32.mrb[0].mxu0
    %v1101 = vadd.f32 %v988, %v1100
    %v1102 = vpop.f32.mrb[0].mxu0
    %v1103 = vadd.f32 %v990, %v1102
    %v1104 = vpop.f32.mrb[0].mxu0
    %v1105 = vadd.f32 %v992, %v1104
    %v1106 = vpop.f32.mrb[0].mxu0
    %v1107 = vadd.f32 %v994, %v1106
    %1108 = vmatprep.mubr.bf16.mxu0 %v496
    %1109 = vmatmul.mubr.bf16.gmra.mrb[0].mxu0 %v495
    %v1110 = vpop.f32.mrb[0].mxu0
    %v1111 = vadd.f32 %v998, %v1110
    %v1112 = vpop.f32.mrb[0].mxu0
    %v1113 = vadd.f32 %v1000, %v1112
    %v1114 = vpop.f32.mrb[0].mxu0
    %v1115 = vadd.f32 %v1002, %v1114
    %v1116 = vpop.f32.mrb[0].mxu0
    %v1117 = vadd.f32 %v1004, %v1116
    %1118 = vdwg.mxu0
    %v1119 = vmax.f32 %v1041, 0.0
    %v1120 = vmax.f32 %v1043, 0.0
    %v1121 = vmax.f32 %v1045, 0.0
    %v1122 = vmax.f32 %v1047, 0.0
    %v1123 = vmax.f32 %v1051, 0.0
    %v1124 = vmax.f32 %v1053, 0.0
    %v1125 = vmax.f32 %v1055, 0.0
    %v1126 = vmax.f32 %v1057, 0.0
    %v1127 = vmax.f32 %v1061, 0.0
    %v1128 = vmax.f32 %v1063, 0.0
    %v1129 = vmax.f32 %v1065, 0.0
    %v1130 = vmax.f32 %v1067, 0.0
    %v1131 = vmax.f32 %v1071, 0.0
    %v1132 = vmax.f32 %v1073, 0.0
    %v1133 = vmax.f32 %v1075, 0.0
    %v1134 = vmax.f32 %v1077, 0.0
    %v1135 = vmax.f32 %v1081, 0.0
    %v1136 = vmax.f32 %v1083, 0.0
    %v1137 = vmax.f32 %v1085, 0.0
    %v1138 = vmax.f32 %v1087, 0.0
    %v1139 = vmax.f32 %v1091, 0.0
    %v1140 = vmax.f32 %v1093, 0.0
    %v1141 = vmax.f32 %v1095, 0.0
    %v1142 = vmax.f32 %v1097, 0.0
    %v1143 = vmax.f32 %v1101, 0.0
    %v1144 = vmax.f32 %v1103, 0.0
    %v1145 = vmax.f32 %v1105, 0.0
    %v1146 = vmax.f32 %v1107, 0.0
    %v1147 = vmax.f32 %v1111, 0.0
    %v1148 = vmax.f32 %v1113, 0.0
    %v1149 = vmax.f32 %v1115, 0.0
    %v1150 = vmax.f32 %v1117, 0.0
    %v1151 = vpack.c.bf16 %v1121, %v1119
    %v1152 = vpack.c.bf16 %v1122, %v1120
    %v1153 = vpack.c.bf16 %v1125, %v1123
    %v1154 = vpack.c.bf16 %v1126, %v1124
    %v1155 = vpack.c.bf16 %v1129, %v1127
    %v1156 = vpack.c.bf16 %v1130, %v1128
    %v1157 = vpack.c.bf16 %v1133, %v1131
    %v1158 = vpack.c.bf16 %v1134, %v1132
    %v1159 = vpack.c.bf16 %v1137, %v1135
    %v1160 = vpack.c.bf16 %v1138, %v1136
    %v1161 = vpack.c.bf16 %v1141, %v1139
    %v1162 = vpack.c.bf16 %v1142, %v1140
    %v1163 = vpack.c.bf16 %v1145, %v1143
    %v1164 = vpack.c.bf16 %v1146, %v1144
    %v1165 = vpack.c.bf16 %v1149, %v1147
    %v1166 = vpack.c.bf16 %v1150, %v1148
    %v1167 = vld [vmem:[%s5] sm:$0xf]
    %v1168 = vld [vmem:[%s5 + $0x4] sm:$0xf]
    %v1169 = vld [vmem:[%s5 + $0x8] sm:$0xf]
    %v1170 = vld [vmem:[%s5 + $0xc] sm:$0xf]
    %v1171 = vld [vmem:[%s5 + $0x10] sm:$0xf]
    %v1172 = vld [vmem:[%s5 + $0x14] sm:$0xf]
    %v1173 = vld [vmem:[%s5 + $0x18] sm:$0xf]
    %v1174 = vld [vmem:[%s5 + $0x1c] sm:$0xf]
    %v1175 = vld [vmem:[%s5 + $0x20] sm:$0xf]
    %v1176 = vld [vmem:[%s5 + $0x24] sm:$0xf]
    %v1177 = vld [vmem:[%s5 + $0x28] sm:$0xf]
    %v1178 = vld [vmem:[%s5 + $0x2c] sm:$0xf]
    %v1179 = vld [vmem:[%s5 + $0x30] sm:$0xf]
    %v1180 = vld [vmem:[%s5 + $0x34] sm:$0xf]
    %v1181 = vld [vmem:[%s5 + $0x38] sm:$0xf]
    %v1182 = vld [vmem:[%s5 + $0x3c] sm:$0xf]
    %v1183 = vld [vmem:[%s5 + $0x40] sm:$0xf]
    %v1184 = vld [vmem:[%s5 + $0x44] sm:$0xf]
    %v1185 = vld [vmem:[%s5 + $0x48] sm:$0xf]
    %v1186 = vld [vmem:[%s5 + $0x4c] sm:$0xf]
    %v1187 = vld [vmem:[%s5 + $0x50] sm:$0xf]
    %v1188 = vld [vmem:[%s5 + $0x54] sm:$0xf]
    %v1189 = vld [vmem:[%s5 + $0x58] sm:$0xf]
    %v1190 = vld [vmem:[%s5 + $0x5c] sm:$0xf]
    %v1191 = vld [vmem:[%s5 + $0x60] sm:$0xf]
    %v1192 = vld [vmem:[%s5 + $0x64] sm:$0xf]
    %v1193 = vld [vmem:[%s5 + $0x68] sm:$0xf]
    %v1194 = vld [vmem:[%s5 + $0x6c] sm:$0xf]
    %v1195 = vld [vmem:[%s5 + $0x70] sm:$0xf]
    %v1196 = vld [vmem:[%s5 + $0x74] sm:$0xf]
    %v1197 = vld [vmem:[%s5 + $0x78] sm:$0xf]
    %v1198 = vld [vmem:[%s5 + $0x7c] sm:$0xf]
    %v1199 = vld [vmem:[%s6] sm:$0x1]
    %v1201 = vlaneseq
    %v1202 = vshrl.u32 %v1201, 7
    %v1203 = vsub.s32 0, %v1202
    %v1204 = vrot.slane %v1199, %v1203
    %v1238 = vunpack.c.l.b16 %v1167
    %v1239 = vunpack.c.l.b16 %v1168
    %v1240 = vunpack.c.l.b16 %v1169
    %v1241 = vunpack.c.l.b16 %v1170
    %v1242 = vunpack.c.l.b16 %v1171
    %v1243 = vunpack.c.l.b16 %v1172
    %v1244 = vunpack.c.l.b16 %v1173
    %v1245 = vunpack.c.l.b16 %v1174
    %v1246 = vunpack.c.l.b16 %v1175
    %v1247 = vunpack.c.l.b16 %v1176
    %v1248 = vunpack.c.l.b16 %v1177
    %v1249 = vunpack.c.l.b16 %v1178
    %v1250 = vunpack.c.l.b16 %v1179
    %v1251 = vunpack.c.l.b16 %v1180
    %v1252 = vunpack.c.l.b16 %v1181
    %v1253 = vunpack.c.l.b16 %v1182
    %v1254 = vunpack.c.l.b16 %v1183
    %v1255 = vunpack.c.l.b16 %v1184
    %v1256 = vunpack.c.l.b16 %v1185
    %v1257 = vunpack.c.l.b16 %v1186
    %v1258 = vunpack.c.l.b16 %v1187
    %v1259 = vunpack.c.l.b16 %v1188
    %v1260 = vunpack.c.l.b16 %v1189
    %v1261 = vunpack.c.l.b16 %v1190
    %v1262 = vunpack.c.l.b16 %v1191
    %v1263 = vunpack.c.l.b16 %v1192
    %v1264 = vunpack.c.l.b16 %v1193
    %v1265 = vunpack.c.l.b16 %v1194
    %v1266 = vunpack.c.l.b16 %v1195
    %v1267 = vunpack.c.l.b16 %v1196
    %v1268 = vunpack.c.l.b16 %v1197
    %v1269 = vunpack.c.l.b16 %v1198
    %v1270 = vpack.c.b16 %v1239, %v1238
    %v1271 = vpack.c.b16 %v1241, %v1240
    %v1272 = vpack.c.b16 %v1243, %v1242
    %v1273 = vpack.c.b16 %v1245, %v1244
    %v1274 = vpack.c.b16 %v1247, %v1246
    %v1275 = vpack.c.b16 %v1249, %v1248
    %v1276 = vpack.c.b16 %v1251, %v1250
    %v1277 = vpack.c.b16 %v1253, %v1252
    %v1278 = vpack.c.b16 %v1255, %v1254
    %v1279 = vpack.c.b16 %v1257, %v1256
    %v1280 = vpack.c.b16 %v1259, %v1258
    %v1281 = vpack.c.b16 %v1261, %v1260
    %v1282 = vpack.c.b16 %v1263, %v1262
    %v1283 = vpack.c.b16 %v1265, %v1264
    %v1284 = vpack.c.b16 %v1267, %v1266
    %v1285 = vpack.c.b16 %v1269, %v1268
    %1302 = vmatprep.subr.bf16.mxu0 0
    %1303 = vmatpush1.bf16.msra.mxu0 %v1270
    %1304 = vmatprep.subr.bf16.mxu0 0
    %1305 = vmatpush1.bf16.msra.mxu0 %v1271
    %1306 = vmatprep.subr.bf16.mxu0 0
    %1307 = vmatpush1.bf16.msra.mxu0 %v1272
    %1308 = vmatprep.subr.bf16.mxu0 0
    %1309 = vmatpush1.bf16.msra.mxu0 %v1273
    %1310 = vmatprep.subr.bf16.mxu0 0
    %1311 = vmatpush1.bf16.msra.mxu0 %v1274
    %1312 = vmatprep.subr.bf16.mxu0 0
    %1313 = vmatpush1.bf16.msra.mxu0 %v1275
    %1314 = vmatprep.subr.bf16.mxu0 0
    %1315 = vmatpush1.bf16.msra.mxu0 %v1276
    %1316 = vmatprep.subr.bf16.mxu0 0
    %1317 = vmatpush1.bf16.msra.mxu0 %v1277
    %1318 = vmatprep.subr.bf16.mxu0 0
    %1319 = vmatpush1.bf16.msra.mxu0 %v1278
    %1320 = vmatprep.subr.bf16.mxu0 0
    %1321 = vmatpush1.bf16.msra.mxu0 %v1279
    %1322 = vmatprep.subr.bf16.mxu0 0
    %1323 = vmatpush1.bf16.msra.mxu0 %v1280
    %1324 = vmatprep.subr.bf16.mxu0 0
    %1325 = vmatpush1.bf16.msra.mxu0 %v1281
    %1326 = vmatprep.subr.bf16.mxu0 0
    %1327 = vmatpush1.bf16.msra.mxu0 %v1282
    %1328 = vmatprep.subr.bf16.mxu0 0
    %1329 = vmatpush1.bf16.msra.mxu0 %v1283
    %1330 = vmatprep.subr.bf16.mxu0 0
    %1331 = vmatpush1.bf16.msra.mxu0 %v1284
    %1332 = vmatprep.subr.bf16.mxu0 0
    %1333 = vmatpush1.bf16.msra.mxu0 %v1285
    %1334 = vmatprep.mubr.bf16.mxu0 %v1152
    %1335 = vmatmul.mubr.bf16.gmra.mrb[0].mxu0 %v1151
    %v1336 = vpop.f32.mrb[0].mxu0
    %v1337 = vadd.f32 %v1204, %v1336
    %v1338 = vpop.f32.mrb[0].mxu0
    %v1339 = vpop.f32.mrb[0].mxu0
    %v1340 = vadd.f32 %v1204, %v1339
    %v1341 = vpop.f32.mrb[0].mxu0
    %1342 = vmatprep.mubr.bf16.mxu0 %v1154
    %1343 = vmatmul.mubr.bf16.gmra.mrb[0].mxu0 %v1153
    %v1344 = vpop.f32.mrb[0].mxu0
    %v1345 = vadd.f32 %v1204, %v1344
    %v1346 = vpop.f32.mrb[0].mxu0
    %v1347 = vpop.f32.mrb[0].mxu0
    %v1348 = vadd.f32 %v1204, %v1347
    %v1349 = vpop.f32.mrb[0].mxu0
    %1350 = vmatprep.mubr.bf16.mxu0 %v1156
    %1351 = vmatmul.mubr.bf16.gmra.mrb[0].mxu0 %v1155
    %v1352 = vpop.f32.mrb[0].mxu0
    %v1353 = vadd.f32 %v1204, %v1352
    %v1354 = vpop.f32.mrb[0].mxu0
    %v1355 = vpop.f32.mrb[0].mxu0
    %v1356 = vadd.f32 %v1204, %v1355
    %v1357 = vpop.f32.mrb[0].mxu0
    %1358 = vmatprep.mubr.bf16.mxu0 %v1158
    %1359 = vmatmul.mubr.bf16.gmra.mrb[0].mxu0 %v1157
    %v1360 = vpop.f32.mrb[0].mxu0
    %v1361 = vadd.f32 %v1204, %v1360
    %v1362 = vpop.f32.mrb[0].mxu0
    %v1363 = vpop.f32.mrb[0].mxu0
    %v1364 = vadd.f32 %v1204, %v1363
    %v1365 = vpop.f32.mrb[0].mxu0
    %1366 = vmatprep.mubr.bf16.mxu0 %v1160
    %1367 = vmatmul.mubr.bf16.gmra.mrb[0].mxu0 %v1159
    %v1368 = vpop.f32.mrb[0].mxu0
    %v1369 = vadd.f32 %v1204, %v1368
    %v1370 = vpop.f32.mrb[0].mxu0
    %v1371 = vpop.f32.mrb[0].mxu0
    %v1372 = vadd.f32 %v1204, %v1371
    %v1373 = vpop.f32.mrb[0].mxu0
    %1374 = vmatprep.mubr.bf16.mxu0 %v1162
    %1375 = vmatmul.mubr.bf16.gmra.mrb[0].mxu0 %v1161
    %v1376 = vpop.f32.mrb[0].mxu0
    %v1377 = vadd.f32 %v1204, %v1376
    %v1378 = vpop.f32.mrb[0].mxu0
    %v1379 = vpop.f32.mrb[0].mxu0
    %v1380 = vadd.f32 %v1204, %v1379
    %v1381 = vpop.f32.mrb[0].mxu0
    %1382 = vmatprep.mubr.bf16.mxu0 %v1164
    %1383 = vmatmul.mubr.bf16.gmra.mrb[0].mxu0 %v1163
    %v1384 = vpop.f32.mrb[0].mxu0
    %v1385 = vadd.f32 %v1204, %v1384
    %v1386 = vpop.f32.mrb[0].mxu0
    %v1387 = vpop.f32.mrb[0].mxu0
    %v1388 = vadd.f32 %v1204, %v1387
    %v1389 = vpop.f32.mrb[0].mxu0
    %1390 = vmatprep.mubr.bf16.mxu0 %v1166
    %1391 = vmatmul.mubr.bf16.gmra.mrb[0].mxu0 %v1165
    %v1392 = vpop.f32.mrb[0].mxu0
    %v1393 = vadd.f32 %v1204, %v1392
    %v1394 = vpop.f32.mrb[0].mxu0
    %v1395 = vpop.f32.mrb[0].mxu0
    %v1396 = vadd.f32 %v1204, %v1395
    %v1397 = vpop.f32.mrb[0].mxu0
    %1398 = vdwg.mxu0
    %v1399 = vmax.f32 %v1337, 0.0
    %v1400 = vmax.f32 %v1340, 0.0
    %v1401 = vmax.f32 %v1345, 0.0
    %v1402 = vmax.f32 %v1348, 0.0
    %v1403 = vmax.f32 %v1353, 0.0
    %v1404 = vmax.f32 %v1356, 0.0
    %v1405 = vmax.f32 %v1361, 0.0
    %v1406 = vmax.f32 %v1364, 0.0
    %v1407 = vmax.f32 %v1369, 0.0
    %v1408 = vmax.f32 %v1372, 0.0
    %v1409 = vmax.f32 %v1377, 0.0
    %v1410 = vmax.f32 %v1380, 0.0
    %v1411 = vmax.f32 %v1385, 0.0
    %v1412 = vmax.f32 %v1388, 0.0
    %v1413 = vmax.f32 %v1393, 0.0
    %v1414 = vmax.f32 %v1396, 0.0
    %v1415 = vpack.c.bf16 %v1400, %v1399
    %v1416 = vpack.c.bf16 %v1402, %v1401
    %v1417 = vpack.c.bf16 %v1404, %v1403
    %v1418 = vpack.c.bf16 %v1406, %v1405
    %v1419 = vpack.c.bf16 %v1408, %v1407
    %v1420 = vpack.c.bf16 %v1410, %v1409
    %v1421 = vpack.c.bf16 %v1412, %v1411
    %v1422 = vpack.c.bf16 %v1414, %v1413
    %v1423 = vld [vmem:[%s7] sm:$0xf]
    %v1424 = vld [vmem:[%s7 + $0x4] sm:$0xf]
    %v1425 = vld [vmem:[%s7 + $0x8] sm:$0xf]
    %v1426 = vld [vmem:[%s7 + $0xc] sm:$0xf]
    %v1427 = vld [vmem:[%s7 + $0x10] sm:$0xf]
    %v1428 = vld [vmem:[%s7 + $0x14] sm:$0xf]
    %v1429 = vld [vmem:[%s7 + $0x18] sm:$0xf]
    %v1430 = vld [vmem:[%s7 + $0x1c] sm:$0xf]
    %v1431 = vld [vmem:[%s7 + $0x20] sm:$0xf]
    %v1432 = vld [vmem:[%s7 + $0x24] sm:$0xf]
    %v1433 = vld [vmem:[%s7 + $0x28] sm:$0xf]
    %v1434 = vld [vmem:[%s7 + $0x2c] sm:$0xf]
    %v1435 = vld [vmem:[%s7 + $0x30] sm:$0xf]
    %v1436 = vld [vmem:[%s7 + $0x34] sm:$0xf]
    %v1437 = vld [vmem:[%s7 + $0x38] sm:$0xf]
    %v1438 = vld [vmem:[%s7 + $0x3c] sm:$0xf]
    %v1439 = vld [vmem:[%s8] sm:$0x1]
    %v1441 = vlaneseq
    %v1442 = vshrl.u32 %v1441, 7
    %v1443 = vsub.s32 0, %v1442
    %v1444 = vrot.slane %v1439, %v1443
    %v1462 = vunpack.c.l.b16 %v1423
    %v1463 = vunpack.c.l.b16 %v1424
    %v1464 = vunpack.c.l.b16 %v1425
    %v1465 = vunpack.c.l.b16 %v1426
    %v1466 = vunpack.c.l.b16 %v1427
    %v1467 = vunpack.c.l.b16 %v1428
    %v1468 = vunpack.c.l.b16 %v1429
    %v1469 = vunpack.c.l.b16 %v1430
    %v1470 = vunpack.c.l.b16 %v1431
    %v1471 = vunpack.c.l.b16 %v1432
    %v1472 = vunpack.c.l.b16 %v1433
    %v1473 = vunpack.c.l.b16 %v1434
    %v1474 = vunpack.c.l.b16 %v1435
    %v1475 = vunpack.c.l.b16 %v1436
    %v1476 = vunpack.c.l.b16 %v1437
    %v1477 = vunpack.c.l.b16 %v1438
    %v1478 = vpack.c.b16 %v1463, %v1462
    %v1479 = vpack.c.b16 %v1465, %v1464
    %v1480 = vpack.c.b16 %v1467, %v1466
    %v1481 = vpack.c.b16 %v1469, %v1468
    %v1482 = vpack.c.b16 %v1471, %v1470
    %v1483 = vpack.c.b16 %v1473, %v1472
    %v1484 = vpack.c.b16 %v1475, %v1474
    %v1485 = vpack.c.b16 %v1477, %v1476
    %1494 = vmatprep.subr.bf16.mxu0 0
    %1495 = vmatpush1.bf16.msra.mxu0 %v1478
    %1496 = vmatprep.subr.bf16.mxu0 0
    %1497 = vmatpush1.bf16.msra.mxu0 %v1479
    %1498 = vmatprep.subr.bf16.mxu0 0
    %1499 = vmatpush1.bf16.msra.mxu0 %v1480
    %1500 = vmatprep.subr.bf16.mxu0 0
    %1501 = vmatpush1.bf16.msra.mxu0 %v1481
    %1502 = vmatprep.subr.bf16.mxu0 0
    %1503 = vmatpush1.bf16.msra.mxu0 %v1482
    %1504 = vmatprep.subr.bf16.mxu0 0
    %1505 = vmatpush1.bf16.msra.mxu0 %v1483
    %1506 = vmatprep.subr.bf16.mxu0 0
    %1507 = vmatpush1.bf16.msra.mxu0 %v1484
    %1508 = vmatprep.subr.bf16.mxu0 0
    %1509 = vmatpush1.bf16.msra.mxu0 %v1485
    %1510 = vmatprep.subr.bf16.mxu0 0
    %1511 = vmatpush1.bf16.msra.mxu0 0
    %1512 = vmatprep.subr.bf16.mxu0 0
    %1513 = vmatpush1.bf16.msra.mxu0 0
    %1514 = vmatprep.subr.bf16.mxu0 0
    %1515 = vmatpush1.bf16.msra.mxu0 0
    %1516 = vmatprep.subr.bf16.mxu0 0
    %1517 = vmatpush1.bf16.msra.mxu0 0
    %1518 = vmatprep.subr.bf16.mxu0 0
    %1519 = vmatpush1.bf16.msra.mxu0 0
    %1520 = vmatprep.subr.bf16.mxu0 0
    %1521 = vmatpush1.bf16.msra.mxu0 0
    %1522 = vmatprep.subr.bf16.mxu0 0
    %1523 = vmatpush1.bf16.msra.mxu0 0
    %1524 = vmatprep.subr.bf16.mxu0 0
    %1525 = vmatpush1.bf16.msra.mxu0 0
    %1526 = vmatprep.mubr.bf16.mxu0 0
    %1527 = vmatmul.mubr.bf16.gmra.mrb[0].mxu0 %v1415
    %v1528 = vpop.f32.mrb[0].mxu0
    %v1529 = vadd.f32 %v1444, %v1528
    %v1530 = vpop.f32.mrb[0].mxu0
    %v1531 = vpop.f32.mrb[0].mxu0
    %v1532 = vadd.f32 %v1444, %v1531
    %v1533 = vpop.f32.mrb[0].mxu0
    %1534 = vmatprep.mubr.bf16.mxu0 0
    %1535 = vmatmul.mubr.bf16.gmra.mrb[0].mxu0 %v1416
    %v1536 = vpop.f32.mrb[0].mxu0
    %v1537 = vadd.f32 %v1444, %v1536
    %v1538 = vpop.f32.mrb[0].mxu0
    %v1539 = vpop.f32.mrb[0].mxu0
    %v1540 = vadd.f32 %v1444, %v1539
    %v1541 = vpop.f32.mrb[0].mxu0
    %1542 = vmatprep.mubr.bf16.mxu0 0
    %1543 = vmatmul.mubr.bf16.gmra.mrb[0].mxu0 %v1417
    %v1544 = vpop.f32.mrb[0].mxu0
    %v1545 = vadd.f32 %v1444, %v1544
    %v1546 = vpop.f32.mrb[0].mxu0
    %v1547 = vpop.f32.mrb[0].mxu0
    %v1548 = vadd.f32 %v1444, %v1547
    %v1549 = vpop.f32.mrb[0].mxu0
    %1550 = vmatprep.mubr.bf16.mxu0 0
    %1551 = vmatmul.mubr.bf16.gmra.mrb[0].mxu0 %v1418
    %v1552 = vpop.f32.mrb[0].mxu0
    %v1553 = vadd.f32 %v1444, %v1552
    %v1554 = vpop.f32.mrb[0].mxu0
    %v1555 = vpop.f32.mrb[0].mxu0
    %v1556 = vadd.f32 %v1444, %v1555
    %v1557 = vpop.f32.mrb[0].mxu0
    %1558 = vmatprep.mubr.bf16.mxu0 0
    %1559 = vmatmul.mubr.bf16.gmra.mrb[0].mxu0 %v1419
    %v1560 = vpop.f32.mrb[0].mxu0
    %v1561 = vadd.f32 %v1444, %v1560
    %v1562 = vpop.f32.mrb[0].mxu0
    %v1563 = vpop.f32.mrb[0].mxu0
    %v1564 = vadd.f32 %v1444, %v1563
    %v1565 = vpop.f32.mrb[0].mxu0
    %1566 = vmatprep.mubr.bf16.mxu0 0
    %1567 = vmatmul.mubr.bf16.gmra.mrb[0].mxu0 %v1420
    %v1568 = vpop.f32.mrb[0].mxu0
    %v1569 = vadd.f32 %v1444, %v1568
    %v1570 = vpop.f32.mrb[0].mxu0
    %v1571 = vpop.f32.mrb[0].mxu0
    %v1572 = vadd.f32 %v1444, %v1571
    %v1573 = vpop.f32.mrb[0].mxu0
    %1574 = vmatprep.mubr.bf16.mxu0 0
    %1575 = vmatmul.mubr.bf16.gmra.mrb[0].mxu0 %v1421
    %v1576 = vpop.f32.mrb[0].mxu0
    %v1577 = vadd.f32 %v1444, %v1576
    %v1578 = vpop.f32.mrb[0].mxu0
    %v1579 = vpop.f32.mrb[0].mxu0
    %v1580 = vadd.f32 %v1444, %v1579
    %v1581 = vpop.f32.mrb[0].mxu0
    %1582 = vmatprep.mubr.bf16.mxu0 0
    %1583 = vmatmul.mubr.bf16.gmra.mrb[0].mxu0 %v1422
    %v1584 = vpop.f32.mrb[0].mxu0
    %v1585 = vadd.f32 %v1444, %v1584
    %v1586 = vpop.f32.mrb[0].mxu0
    %v1587 = vpop.f32.mrb[0].mxu0
    %v1588 = vadd.f32 %v1444, %v1587
    %v1589 = vpop.f32.mrb[0].mxu0
    %1590 = vdwg.mxu0
    %v1591 = vmax.f32 %v1529, 0.0
    %v1592 = vmax.f32 %v1532, 0.0
    %v1593 = vmax.f32 %v1537, 0.0
    %v1594 = vmax.f32 %v1540, 0.0
    %v1595 = vmax.f32 %v1545, 0.0
    %v1596 = vmax.f32 %v1548, 0.0
    %v1597 = vmax.f32 %v1553, 0.0
    %v1598 = vmax.f32 %v1556, 0.0
    %v1599 = vmax.f32 %v1561, 0.0
    %v1600 = vmax.f32 %v1564, 0.0
    %v1601 = vmax.f32 %v1569, 0.0
    %v1602 = vmax.f32 %v1572, 0.0
    %v1603 = vmax.f32 %v1577, 0.0
    %v1604 = vmax.f32 %v1580, 0.0
    %v1605 = vmax.f32 %v1585, 0.0
    %v1606 = vmax.f32 %v1588, 0.0
    %1607 = vxpose.xlu0.b32.start [1/16] %v1591, 128
    %1608 = vxpose.xlu0.b32.cont [2/16] %v1592, 128
    %1609 = vxpose.xlu0.b32.cont [3/16] %v1593, 128
    %1610 = vxpose.xlu0.b32.cont [4/16] %v1594, 128
    %1611 = vxpose.xlu0.b32.cont [5/16] %v1595, 128
    %1612 = vxpose.xlu0.b32.cont [6/16] %v1596, 128
    %1613 = vxpose.xlu0.b32.cont [7/16] %v1597, 128
    %1614 = vxpose.xlu0.b32.cont [8/16] %v1598, 128
    %1615 = vxpose.xlu0.b32.cont [9/16] %v1599, 128
    %1616 = vxpose.xlu0.b32.cont [10/16] %v1600, 128
    %1617 = vxpose.xlu0.b32.cont [11/16] %v1601, 128
    %1618 = vxpose.xlu0.b32.cont [12/16] %v1602, 128
    %1619 = vxpose.xlu0.b32.cont [13/16] %v1603, 128
    %1620 = vxpose.xlu0.b32.cont [14/16] %v1604, 128
    %1621 = vxpose.xlu0.b32.cont [15/16] %v1605, 128
    %1622 = vxpose.xlu0.b32.end [16/16] %v1606, 128
    %v1623 = vpop.trf.xlu0
    %v1624 = vpop.trf.xlu0
    %v1625 = vpop.trf.xlu0
    %v1626 = vpop.trf.xlu0
    %v1627 = vpop.trf.xlu0
    %v1628 = vpop.trf.xlu0
    %v1629 = vpop.trf.xlu0
    %v1630 = vpop.trf.xlu0
    %v1631 = vpop.trf.xlu0
    %v1632 = vpop.trf.xlu0
    %v1633 = vpop.trf.xlu0
    %v1634 = vpop.trf.xlu0
    %v1635 = vpop.trf.xlu0
    %v1636 = vpop.trf.xlu0
    %v1637 = vpop.trf.xlu0
    %v1638 = vpop.trf.xlu0
    %v1639 = vld [vmem:[%s9] sm:$0xff]
    %v1640 = vld [vmem:[%s9 + $0x8] sm:$0xff]
    %v1641 = vld [vmem:[%s9 + $0x10] sm:$0xff]
    %v1642 = vld [vmem:[%s9 + $0x18] sm:$0xff]
    %v1643 = vld [vmem:[%s9 + $0x20] sm:$0xff]
    %v1644 = vld [vmem:[%s9 + $0x28] sm:$0xff]
    %v1645 = vld [vmem:[%s9 + $0x30] sm:$0xff]
    %v1646 = vld [vmem:[%s9 + $0x38] sm:$0xff]
    %v1647 = vld [vmem:[%s9 + $0x40] sm:$0xff]
    %v1648 = vld [vmem:[%s9 + $0x48] sm:$0xff]
    %v1649 = vld [vmem:[%s9 + $0x50] sm:$0xff]
    %v1650 = vld [vmem:[%s9 + $0x58] sm:$0xff]
    %v1651 = vld [vmem:[%s9 + $0x60] sm:$0xff]
    %v1652 = vld [vmem:[%s9 + $0x68] sm:$0xff]
    %v1653 = vld [vmem:[%s9 + $0x70] sm:$0xff]
    %v1654 = vld [vmem:[%s9 + $0x78] sm:$0xff]
    %1656 = vset.pattern.permute.xlu0 0
    %1657 = vperm.xlu0 %1656, %v1639
    %v1658 = vpop.permute.xlu0 %1657
    %1661 = vset.pattern.permute.xlu0 0
    %1662 = vperm.xlu0 %1661, %v1640
    %v1663 = vpop.permute.xlu0 %1662
    %1666 = vset.pattern.permute.xlu0 0
    %1667 = vperm.xlu0 %1666, %v1641
    %v1668 = vpop.permute.xlu0 %1667
    %1671 = vset.pattern.permute.xlu0 0
    %1672 = vperm.xlu0 %1671, %v1642
    %v1673 = vpop.permute.xlu0 %1672
    %1676 = vset.pattern.permute.xlu0 0
    %1677 = vperm.xlu0 %1676, %v1643
    %v1678 = vpop.permute.xlu0 %1677
    %1681 = vset.pattern.permute.xlu0 0
    %1682 = vperm.xlu0 %1681, %v1644
    %v1683 = vpop.permute.xlu0 %1682
    %1686 = vset.pattern.permute.xlu0 0
    %1687 = vperm.xlu0 %1686, %v1645
    %v1688 = vpop.permute.xlu0 %1687
    %1691 = vset.pattern.permute.xlu0 0
    %1692 = vperm.xlu0 %1691, %v1646
    %v1693 = vpop.permute.xlu0 %1692
    %1696 = vset.pattern.permute.xlu0 0
    %1697 = vperm.xlu0 %1696, %v1647
    %v1698 = vpop.permute.xlu0 %1697
    %1701 = vset.pattern.permute.xlu0 0
    %1702 = vperm.xlu0 %1701, %v1648
    %v1703 = vpop.permute.xlu0 %1702
    %1706 = vset.pattern.permute.xlu0 0
    %1707 = vperm.xlu0 %1706, %v1649
    %v1708 = vpop.permute.xlu0 %1707
    %1711 = vset.pattern.permute.xlu0 0
    %1712 = vperm.xlu0 %1711, %v1650
    %v1713 = vpop.permute.xlu0 %1712
    %1716 = vset.pattern.permute.xlu0 0
    %1717 = vperm.xlu0 %1716, %v1651
    %v1718 = vpop.permute.xlu0 %1717
    %1721 = vset.pattern.permute.xlu0 0
    %1722 = vperm.xlu0 %1721, %v1652
    %v1723 = vpop.permute.xlu0 %1722
    %1726 = vset.pattern.permute.xlu0 0
    %1727 = vperm.xlu0 %1726, %v1653
    %v1728 = vpop.permute.xlu0 %1727
    %1731 = vset.pattern.permute.xlu0 0
    %1732 = vperm.xlu0 %1731, %v1654
    %v1733 = vpop.permute.xlu0 %1732
    %v1735 = vmul.f32 %v1623, %v1658
    %v1736 = vmul.f32 %v1624, %v1663
    %v1737 = vmul.f32 %v1625, %v1668
    %v1738 = vmul.f32 %v1626, %v1673
    %v1739 = vmul.f32 %v1627, %v1678
    %v1740 = vmul.f32 %v1628, %v1683
    %v1741 = vmul.f32 %v1629, %v1688
    %v1742 = vmul.f32 %v1630, %v1693
    %v1743 = vmul.f32 %v1631, %v1698
    %v1744 = vmul.f32 %v1632, %v1703
    %v1745 = vmul.f32 %v1633, %v1708
    %v1746 = vmul.f32 %v1634, %v1713
    %v1747 = vmul.f32 %v1635, %v1718
    %v1748 = vmul.f32 %v1636, %v1723
    %v1749 = vmul.f32 %v1637, %v1728
    %v1750 = vmul.f32 %v1638, %v1733
    %v1751 = vadd.f32 %v1735, %v1736
    %v1752 = vadd.f32 %v1751, %v1737
    %v1753 = vadd.f32 %v1752, %v1738
    %v1754 = vadd.f32 %v1753, %v1739
    %v1755 = vadd.f32 %v1754, %v1740
    %v1756 = vadd.f32 %v1755, %v1741
    %v1757 = vadd.f32 %v1756, %v1742
    %v1758 = vadd.f32 %v1757, %v1743
    %v1759 = vadd.f32 %v1758, %v1744
    %v1760 = vadd.f32 %v1759, %v1745
    %v1761 = vadd.f32 %v1760, %v1746
    %v1762 = vadd.f32 %v1761, %v1747
    %v1763 = vadd.f32 %v1762, %v1748
    %v1764 = vadd.f32 %v1763, %v1749
    %v1765 = vadd.f32 %v1764, %v1750
    %v1766 = vrot.slane %v1765, 4
    %v1767 = vadd.f32 %v1765, %v1766
    %v1768 = vrot.slane %v1767, 2
    %v1769 = vadd.f32 %v1767, %v1768
    %v1770 = vrot.slane %v1769, 1
    %v1771 = vadd.f32 %v1769, %v1770
    %v1772 = vld [vmem:[#allocation2] sm:$0x1]
    %1774 = vset.pattern.permute.xlu0 0
    %1775 = vperm.xlu0 %1774, %v1772
    %v1776 = vpop.permute.xlu0 %1775
    %v1778 = vlaneseq
    %v1779 = vshrl.u32 %v1778, 7
    %v1780 = vsub.s32 0, %v1779
    %v1781 = vrot.slane %v1776, %v1780
    %v1782 = vadd.f32 %v1771, %v1781
    %1783 = vst [vmem:[#allocation6] sm:$0x1] %v1782
    // Predicated region
    $region50: #{tpu_custom_call.1} parent=1 // pred_check
      _
    $region51: #{tpu_custom_call.1} parent=1 // pred_check_branch
      %1785 = sbr.rel (0) target = $region53
    $region52: #{tpu_custom_call.1} parent=1 // pred_region
      %s1787 = ssub.s32 16, 16
      %1788 = vsyncadd [#allocation5], %s1787
      %s1790 = sshll.u32 [#allocation6], 4
      %s1791 = int_to_ptr.vmem [resolvable:$true] %s1790
      %1793 = dma.vmem_to_hbm [thread:$0]  %s1791, 16, %s11, [#allocation5]
    $region53: #{tpu_custom_call.1} parent=1 // pred_fallthru
      _
    // Predicated region
    $region54: #{tpu_custom_call.1} parent=1 // pred_check
      _
    $region55: #{tpu_custom_call.1} parent=1 // pred_check_branch
      %1795 = sbr.rel (0) target = $region57
    $region56: #{tpu_custom_call.1} parent=1 // pred_region
      %1796 = dma.done [#allocation5], 16
    $region57: #{tpu_custom_call.1} parent=1 // pred_fallthru
      _
    %1797 = vsyncpa [#allocation4], 1
    %1798 = vsyncpa [#allocation5], 1

// kernel: tpu_custom_call.1
$region0: #{tpu_custom_call.1}
  #allocation0 [shape = 'u32[]', space=smem, size = 0x4, offset = 0x4, fixed_abs, tag = 'smem constant byte address 0x4 - core index']
  #allocation1 [shape = 'u32[144,128]{1,0:T(1,128)}', space=vmem, size = 0x12000, scoped, tag = 'internal scratch']
  #allocation2 [shape = 'f32[1,1]{1,0:T(1,128)S(1)}', space=vmem, size = 0x200, scoped, tag = 'scoped memory for tpu_custom_call.1']
  %s0 = inlined_call_operand.vmem [shape: f32[128,32], index: 0, kind: input, shape index: {}]
  %s1 = inlined_call_operand.vmem [shape: bf16[32,512], index: 1, kind: input, shape index: {}]
  %s2 = inlined_call_operand.vmem [shape: f32[1,512], index: 2, kind: input, shape index: {}]
  %s3 = inlined_call_operand.hbm [shape: bf16[512,256], index: 3, kind: input, shape index: {}]
  %s4 = inlined_call_operand.vmem [shape: f32[1,256], index: 4, kind: input, shape index: {}]
  %s5 = inlined_call_operand.vmem [shape: bf16[256,128], index: 5, kind: input, shape index: {}]
  %s6 = inlined_call_operand.vmem [shape: f32[1,128], index: 6, kind: input, shape index: {}]
  %s7 = inlined_call_operand.vmem [shape: bf16[128,128], index: 7, kind: input, shape index: {}]
  %s8 = inlined_call_operand.vmem [shape: f32[1,128], index: 8, kind: input, shape index: {}]
  %s9 = inlined_call_operand.vmem [shape: f32[128,1], index: 9, kind: input, shape index: {}]
  %s10 = inlined_call_operand.<no memory space> [shape: f32[1,1], index: 10, kind: input, shape index: {}]
  %s11 = inlined_call_operand.hbm [shape: f32[1,128], index: 11, kind: output, shape index: {}]
  %s12 = sld [smem:[#allocation0]]
  $region58: #{tpu_custom_call.1} parent=0
    _
  %s14 = ssub.s32 1, %s12
  %s15 = scalar_select 0, %s14, %s12
  %v16 = vstv %s10
  %17 = vst [vmem:[#allocation2] sm:$0x1] %v16
  $region1: #{tpu_custom_call.1} parent=0
    #allocation3 [shape = 'u8[262144]{0}', space=vmem, size = 0x40000, scoped, tag = 'input window, operand 3, single buffered']
    #allocation4 [shape = 's32[1]{0}', space=sflag, size = 0x4, scoped, tag = 'scoped memory for tpu_custom_call.1']
    #allocation5 [shape = 's32[1]{0}', space=sflag, size = 0x4, scoped, tag = 'scoped memory for tpu_custom_call.1']
    #allocation6 [shape = 'u8[512]{0}', space=vmem, size = 0x400, scoped, tag = 'output window, operand 0, single buffered']
    %18 = vsyncpa [#allocation4], 0
    %19 = vsyncpa [#allocation5], 0
    // Predicated region
    $region2: #{tpu_custom_call.1} parent=1 // pred_check
      _
    $region3: #{tpu_custom_call.1} parent=1 // pred_check_branch
      %21 = sbr.rel (0) target = $region5
    $region4: #{tpu_custom_call.1} parent=1 // pred_region
      _
    $region5: #{tpu_custom_call.1} parent=1 // pred_fallthru
      _
    // Predicated region
    $region6: #{tpu_custom_call.1} parent=1 // pred_check
      _
    $region7: #{tpu_custom_call.1} parent=1 // pred_check_branch
      %23 = sbr.rel (0) target = $region9
    $region8: #{tpu_custom_call.1} parent=1 // pred_region
      _
    $region9: #{tpu_custom_call.1} parent=1 // pred_fallthru
      _
    // Predicated region
    $region10: #{tpu_custom_call.1} parent=1 // pred_check
      _
    $region11: #{tpu_custom_call.1} parent=1 // pred_check_branch
      %25 = sbr.rel (0) target = $region13
    $region12: #{tpu_custom_call.1} parent=1 // pred_region
      _
    $region13: #{tpu_custom_call.1} parent=1 // pred_fallthru
      _
    // Predicated region
    $region14: #{tpu_custom_call.1} parent=1 // pred_check
      _
    $region15: #{tpu_custom_call.1} parent=1 // pred_check_branch
      %27 = sbr.rel (0) target = $region17
    $region16: #{tpu_custom_call.1} parent=1 // pred_region
      %s29 = ssub.s32 8192, 8192
      %30 = vsyncadd [#allocation4], %s29
      %s31 = sshll.u32 [#allocation3], 4
      %s32 = int_to_ptr.vmem [resolvable:$true] %s31
      %37 = dma.hbm_to_vmem [thread:$0]  %s3, 8192, %s32, [#allocation4], 128, 128, 8
    $region17: #{tpu_custom_call.1} parent=1 // pred_fallthru
      _
    // Predicated region
    $region18: #{tpu_custom_call.1} parent=1 // pred_check
      _
    $region19: #{tpu_custom_call.1} parent=1 // pred_check_branch
      %39 = sbr.rel (0) target = $region21
    $region20: #{tpu_custom_call.1} parent=1 // pred_region
      _
    $region21: #{tpu_custom_call.1} parent=1 // pred_fallthru
      _
    // Predicated region
    $region22: #{tpu_custom_call.1} parent=1 // pred_check
      _
    $region23: #{tpu_custom_call.1} parent=1 // pred_check_branch
      %41 = sbr.rel (0) target = $region25
    $region24: #{tpu_custom_call.1} parent=1 // pred_region
      _
    $region25: #{tpu_custom_call.1} parent=1 // pred_fallthru
      _
    // Predicated region
    $region26: #{tpu_custom_call.1} parent=1 // pred_check
      _
    $region27: #{tpu_custom_call.1} parent=1 // pred_check_branch
      %43 = sbr.rel (0) target = $region29
    $region28: #{tpu_custom_call.1} parent=1 // pred_region
      _
    $region29: #{tpu_custom_call.1} parent=1 // pred_fallthru
      _
    // Predicated region
    $region30: #{tpu_custom_call.1} parent=1 // pred_check
      _
    $region31: #{tpu_custom_call.1} parent=1 // pred_check_branch
      %45 = sbr.rel (0) target = $region33
    $region32: #{tpu_custom_call.1} parent=1 // pred_region
      _
    $region33: #{tpu_custom_call.1} parent=1 // pred_fallthru
      _
    // Predicated region
    $region34: #{tpu_custom_call.1} parent=1 // pred_check
      _
    $region35: #{tpu_custom_call.1} parent=1 // pred_check_branch
      %47 = sbr.rel (0) target = $region37
    $region36: #{tpu_custom_call.1} parent=1 // pred_region
      _
    $region37: #{tpu_custom_call.1} parent=1 // pred_fallthru
      _
    // Predicated region
    $region38: #{tpu_custom_call.1} parent=1 // pred_check
      _
    $region39: #{tpu_custom_call.1} parent=1 // pred_check_branch
      %49 = sbr.rel (0) target = $region41
    $region40: #{tpu_custom_call.1} parent=1 // pred_region
      _
    $region41: #{tpu_custom_call.1} parent=1 // pred_fallthru
      _
    // Predicated region
    $region42: #{tpu_custom_call.1} parent=1 // pred_check
      _
    $region43: #{tpu_custom_call.1} parent=1 // pred_check_branch
      %51 = sbr.rel (0) target = $region45
    $region44: #{tpu_custom_call.1} parent=1 // pred_region
      _
    $region45: #{tpu_custom_call.1} parent=1 // pred_fallthru
      _
    // Predicated region
    $region46: #{tpu_custom_call.1} parent=1 // pred_check
      _
    $region47: #{tpu_custom_call.1} parent=1 // pred_check_branch
      %53 = sbr.rel (0) target = $region49
    $region48: #{tpu_custom_call.1} parent=1 // pred_region
      %54 = dma.done [#allocation4], 8192
    $region49: #{tpu_custom_call.1} parent=1 // pred_fallthru
      _
    %v56 = vld [vmem:[%s0] sm:$0xff]
    %v57 = vld [vmem:[%s0 + $0x8] sm:$0xff]
    %v58 = vld [vmem:[%s0 + $0x10] sm:$0xff]
    %v59 = vld [vmem:[%s0 + $0x18] sm:$0xff]
    %v60 = vld [vmem:[%s0 + $0x20] sm:$0xff]
    %v61 = vld [vmem:[%s0 + $0x28] sm:$0xff]
    %v62 = vld [vmem:[%s0 + $0x30] sm:$0xff]
    %v63 = vld [vmem:[%s0 + $0x38] sm:$0xff]
    %v64 = vld [vmem:[%s0 + $0x40] sm:$0xff]
    %v65 = vld [vmem:[%s0 + $0x48] sm:$0xff]
    %v66 = vld [vmem:[%s0 + $0x50] sm:$0xff]
    %v67 = vld [vmem:[%s0 + $0x58] sm:$0xff]
    %v68 = vld [vmem:[%s0 + $0x60] sm:$0xff]
    %v69 = vld [vmem:[%s0 + $0x68] sm:$0xff]
    %v70 = vld [vmem:[%s0 + $0x70] sm:$0xff]
    %v71 = vld [vmem:[%s0 + $0x78] sm:$0xff]
    %v72 = vpack.c.bf16 %v57, %v56
    %v73 = vpack.c.bf16 %v59, %v58
    %v74 = vpack.c.bf16 %v61, %v60
    %v75 = vpack.c.bf16 %v63, %v62
    %v76 = vpack.c.bf16 %v65, %v64
    %v77 = vpack.c.bf16 %v67, %v66
    %v78 = vpack.c.bf16 %v69, %v68
    %v79 = vpack.c.bf16 %v71, %v70
    %v80 = vld [vmem:[%s1] sm:$0xff]
    %v81 = vld [vmem:[%s1 + $0x8] sm:$0xff]
    %v82 = vld [vmem:[%s1 + $0x10] sm:$0xff]
    %v83 = vld [vmem:[%s1 + $0x18] sm:$0xff]
    %v84 = vld [vmem:[%s1 + $0x20] sm:$0xff]
    %v85 = vld [vmem:[%s1 + $0x28] sm:$0xff]
    %v86 = vld [vmem:[%s1 + $0x30] sm:$0xff]
    %v87 = vld [vmem:[%s1 + $0x38] sm:$0xff]
    %v88 = vld [vmem:[%s2] sm:$0xf]
    %v90 = vlaneseq
    %v91 = vshrl.u32 %v90, 7
    %v92 = vsub.s32 0, %v91
    %v93 = vrot.slane %v88, %v92
    %v94 = vlaneseq
    %v95 = vshrl.u32 %v94, 7
    %v96 = vsub.s32 1, %v95
    %v97 = vrot.slane %v88, %v96
    %v98 = vlaneseq
    %v99 = vshrl.u32 %v98, 7
    %v100 = vsub.s32 2, %v99
    %v101 = vrot.slane %v88, %v100
    %v102 = vlaneseq
    %v103 = vshrl.u32 %v102, 7
    %v104 = vsub.s32 3, %v103
    %v105 = vrot.slane %v88, %v104
    %v118 = vunpack.c.l.b16 %v80
    %v119 = vunpack.c.h.b16 %v80
    %v120 = vunpack.c.l.b16 %v81
    %v121 = vunpack.c.h.b16 %v81
    %v122 = vunpack.c.l.b16 %v82
    %v123 = vunpack.c.h.b16 %v82
    %v124 = vunpack.c.l.b16 %v83
    %v125 = vunpack.c.h.b16 %v83
    %v126 = vunpack.c.l.b16 %v84
    %v127 = vunpack.c.h.b16 %v84
    %v128 = vunpack.c.l.b16 %v85
    %v129 = vunpack.c.h.b16 %v85
    %v130 = vunpack.c.l.b16 %v86
    %v131 = vunpack.c.h.b16 %v86
    %v132 = vunpack.c.l.b16 %v87
    %v133 = vunpack.c.h.b16 %v87
    %v134 = vpack.c.b16 %v122, %v118
    %v135 = vpack.c.b16 %v123, %v119
    %v136 = vpack.c.b16 %v124, %v120
    %v137 = vpack.c.b16 %v125, %v121
    %v138 = vpack.c.b16 %v130, %v126
    %v139 = vpack.c.b16 %v131, %v127
    %v140 = vpack.c.b16 %v132, %v128
    %v141 = vpack.c.b16 %v133, %v129
    %vm150 = vcmask 261120
    %v152 = vsel %vm150, %v72, 0
    %v155 = vsel %vm150, %v73, 0
    %v158 = vsel %vm150, %v74, 0
    %v161 = vsel %vm150, %v75, 0
    %v164 = vsel %vm150, %v76, 0
    %v167 = vsel %vm150, %v77, 0
    %v170 = vsel %vm150, %v78, 0
    %v173 = vsel %vm150, %v79, 0
    %175 = vmatprep.subr.bf16.mxu0 %v135
    %176 = vmatpush1.bf16.msra.mxu0 %v134
    %177 = vmatprep.subr.bf16.mxu0 %v139
    %178 = vmatpush1.bf16.msra.mxu0 %v138
    %179 = vmatprep.subr.bf16.mxu0 0
    %180 = vmatpush1.bf16.msra.mxu0 0
    %181 = vmatprep.subr.bf16.mxu0 0
    %182 = vmatpush1.bf16.msra.mxu0 0
    %183 = vmatprep.subr.bf16.mxu0 0
    %184 = vmatpush1.bf16.msra.mxu0 0
    %185 = vmatprep.subr.bf16.mxu0 0
    %186 = vmatpush1.bf16.msra.mxu0 0
    %187 = vmatprep.subr.bf16.mxu0 0
    %188 = vmatpush1.bf16.msra.mxu0 0
    %189 = vmatprep.subr.bf16.mxu0 0
    %190 = vmatpush1.bf16.msra.mxu0 0
    %191 = vmatprep.subr.bf16.mxu0 0
    %192 = vmatpush1.bf16.msra.mxu0 0
    %193 = vmatprep.subr.bf16.mxu0 0
    %194 = vmatpush1.bf16.msra.mxu0 0
    %195 = vmatprep.subr.bf16.mxu0 0
    %196 = vmatpush1.bf16.msra.mxu0 0
    %197 = vmatprep.subr.bf16.mxu0 0
    %198 = vmatpush1.bf16.msra.mxu0 0
    %199 = vmatprep.subr.bf16.mxu0 0
    %200 = vmatpush1.bf16.msra.mxu0 0
    %201 = vmatprep.subr.bf16.mxu0 0
    %202 = vmatpush1.bf16.msra.mxu0 0
    %203 = vmatprep.subr.bf16.mxu0 0
    %204 = vmatpush1.bf16.msra.mxu0 0
    %205 = vmatprep.subr.bf16.mxu0 0
    %206 = vmatpush1.bf16.msra.mxu0 0
    %207 = vmatprep.mubr.bf16.mxu0 0
    %208 = vmatmul.mubr.bf16.gmra.mrb[0].mxu0 %v152
    %v209 = vpop.f32.mrb[0].mxu0
    %v210 = vadd.f32 %v93, %v209
    %v211 = vpop.f32.mrb[0].mxu0
    %v212 = vadd.f32 %v97, %v211
    %v213 = vpop.f32.mrb[0].mxu0
    %v214 = vadd.f32 %v93, %v213
    %v215 = vpop.f32.mrb[0].mxu0
    %v216 = vadd.f32 %v97, %v215
    %217 = vmatprep.mubr.bf16.mxu0 0
    %218 = vmatmul.mubr.bf16.gmra.mrb[0].mxu0 %v155
    %v219 = vpop.f32.mrb[0].mxu0
    %v220 = vadd.f32 %v93, %v219
    %v221 = vpop.f32.mrb[0].mxu0
    %v222 = vadd.f32 %v97, %v221
    %v223 = vpop.f32.mrb[0].mxu0
    %v224 = vadd.f32 %v93, %v223
    %v225 = vpop.f32.mrb[0].mxu0
    %v226 = vadd.f32 %v97, %v225
    %227 = vmatprep.mubr.bf16.mxu0 0
    %228 = vmatmul.mubr.bf16.gmra.mrb[0].mxu0 %v158
    %v229 = vpop.f32.mrb[0].mxu0
    %v230 = vadd.f32 %v93, %v229
    %v231 = vpop.f32.mrb[0].mxu0
    %v232 = vadd.f32 %v97, %v231
    %v233 = vpop.f32.mrb[0].mxu0
    %v234 = vadd.f32 %v93, %v233
    %v235 = vpop.f32.mrb[0].mxu0
    %v236 = vadd.f32 %v97, %v235
    %237 = vmatprep.mubr.bf16.mxu0 0
    %238 = vmatmul.mubr.bf16.gmra.mrb[0].mxu0 %v161
    %v239 = vpop.f32.mrb[0].mxu0
    %v240 = vadd.f32 %v93, %v239
    %v241 = vpop.f32.mrb[0].mxu0
    %v242 = vadd.f32 %v97, %v241
    %v243 = vpop.f32.mrb[0].mxu0
    %v244 = vadd.f32 %v93, %v243
    %v245 = vpop.f32.mrb[0].mxu0
    %v246 = vadd.f32 %v97, %v245
    %247 = vmatprep.mubr.bf16.mxu0 0
    %248 = vmatmul.mubr.bf16.gmra.mrb[0].mxu0 %v164
    %v249 = vpop.f32.mrb[0].mxu0
    %v250 = vadd.f32 %v93, %v249
    %v251 = vpop.f32.mrb[0].mxu0
    %v252 = vadd.f32 %v97, %v251
    %v253 = vpop.f32.mrb[0].mxu0
    %v254 = vadd.f32 %v93, %v253
    %v255 = vpop.f32.mrb[0].mxu0
    %v256 = vadd.f32 %v97, %v255
    %257 = vmatprep.mubr.bf16.mxu0 0
    %258 = vmatmul.mubr.bf16.gmra.mrb[0].mxu0 %v167
    %v259 = vpop.f32.mrb[0].mxu0
    %v260 = vadd.f32 %v93, %v259
    %v261 = vpop.f32.mrb[0].mxu0
    %v262 = vadd.f32 %v97, %v261
    %v263 = vpop.f32.mrb[0].mxu0
    %v264 = vadd.f32 %v93, %v263
    %v265 = vpop.f32.mrb[0].mxu0
    %v266 = vadd.f32 %v97, %v265
    %267 = vmatprep.mubr.bf16.mxu0 0
    %268 = vmatmul.mubr.bf16.gmra.mrb[0].mxu0 %v170
    %v269 = vpop.f32.mrb[0].mxu0
    %v270 = vadd.f32 %v93, %v269
    %v271 = vpop.f32.mrb[0].mxu0
    %v272 = vadd.f32 %v97, %v271
    %v273 = vpop.f32.mrb[0].mxu0
    %v274 = vadd.f32 %v93, %v273
    %v275 = vpop.f32.mrb[0].mxu0
    %v276 = vadd.f32 %v97, %v275
    %277 = vmatprep.mubr.bf16.mxu0 0
    %278 = vmatmul.mubr.bf16.gmra.mrb[0].mxu0 %v173
    %v279 = vpop.f32.mrb[0].mxu0
    %v280 = vadd.f32 %v93, %v279
    %v281 = vpop.f32.mrb[0].mxu0
    %v282 = vadd.f32 %v97, %v281
    %v283 = vpop.f32.mrb[0].mxu0
    %v284 = vadd.f32 %v93, %v283
    %v285 = vpop.f32.mrb[0].mxu0
    %v286 = vadd.f32 %v97, %v285
    %287 = vdwg.mxu0
    %288 = vmatprep.subr.bf16.mxu0 %v137
    %289 = vmatpush1.bf16.msra.mxu0 %v136
    %290 = vmatprep.subr.bf16.mxu0 %v141
    %291 = vmatpush1.bf16.msra.mxu0 %v140
    %292 = vmatprep.subr.bf16.mxu0 0
    %293 = vmatpush1.bf16.msra.mxu0 0
    %294 = vmatprep.subr.bf16.mxu0 0
    %295 = vmatpush1.bf16.msra.mxu0 0
    %296 = vmatprep.subr.bf16.mxu0 0
    %297 = vmatpush1.bf16.msra.mxu0 0
    %298 = vmatprep.subr.bf16.mxu0 0
    %299 = vmatpush1.bf16.msra.mxu0 0
    %300 = vmatprep.subr.bf16.mxu0 0
    %301 = vmatpush1.bf16.msra.mxu0 0
    %302 = vmatprep.subr.bf16.mxu0 0
    %303 = vmatpush1.bf16.msra.mxu0 0
    %304 = vmatprep.subr.bf16.mxu0 0
    %305 = vmatpush1.bf16.msra.mxu0 0
    %306 = vmatprep.subr.bf16.mxu0 0
    %307 = vmatpush1.bf16.msra.mxu0 0
    %308 = vmatprep.subr.bf16.mxu0 0
    %309 = vmatpush1.bf16.msra.mxu0 0
    %310 = vmatprep.subr.bf16.mxu0 0
    %311 = vmatpush1.bf16.msra.mxu0 0
    %312 = vmatprep.subr.bf16.mxu0 0
    %313 = vmatpush1.bf16.msra.mxu0 0
    %314 = vmatprep.subr.bf16.mxu0 0
    %315 = vmatpush1.bf16.msra.mxu0 0
    %316 = vmatprep.subr.bf16.mxu0 0
    %317 = vmatpush1.bf16.msra.mxu0 0
    %318 = vmatprep.subr.bf16.mxu0 0
    %319 = vmatpush1.bf16.msra.mxu0 0
    %320 = vmatprep.mubr.bf16.mxu0 0
    %321 = vmatmul.mubr.bf16.gmra.mrb[0].mxu0 %v152
    %v322 = vpop.f32.mrb[0].mxu0
    %v323 = vadd.f32 %v101, %v322
    %v324 = vpop.f32.mrb[0].mxu0
    %v325 = vadd.f32 %v105, %v324
    %v326 = vpop.f32.mrb[0].mxu0
    %v327 = vadd.f32 %v101, %v326
    %v328 = vpop.f32.mrb[0].mxu0
    %v329 = vadd.f32 %v105, %v328
    %330 = vmatprep.mubr.bf16.mxu0 0
    %331 = vmatmul.mubr.bf16.gmra.mrb[0].mxu0 %v155
    %v332 = vpop.f32.mrb[0].mxu0
    %v333 = vadd.f32 %v101, %v332
    %v334 = vpop.f32.mrb[0].mxu0
    %v335 = vadd.f32 %v105, %v334
    %v336 = vpop.f32.mrb[0].mxu0
    %v337 = vadd.f32 %v101, %v336
    %v338 = vpop.f32.mrb[0].mxu0
    %v339 = vadd.f32 %v105, %v338
    %340 = vmatprep.mubr.bf16.mxu0 0
    %341 = vmatmul.mubr.bf16.gmra.mrb[0].mxu0 %v158
    %v342 = vpop.f32.mrb[0].mxu0
    %v343 = vadd.f32 %v101, %v342
    %v344 = vpop.f32.mrb[0].mxu0
    %v345 = vadd.f32 %v105, %v344
    %v346 = vpop.f32.mrb[0].mxu0
    %v347 = vadd.f32 %v101, %v346
    %v348 = vpop.f32.mrb[0].mxu0
    %v349 = vadd.f32 %v105, %v348
    %350 = vmatprep.mubr.bf16.mxu0 0
    %351 = vmatmul.mubr.bf16.gmra.mrb[0].mxu0 %v161
    %v352 = vpop.f32.mrb[0].mxu0
    %v353 = vadd.f32 %v101, %v352
    %v354 = vpop.f32.mrb[0].mxu0
    %v355 = vadd.f32 %v105, %v354
    %v356 = vpop.f32.mrb[0].mxu0
    %v357 = vadd.f32 %v101, %v356
    %v358 = vpop.f32.mrb[0].mxu0
    %v359 = vadd.f32 %v105, %v358
    %360 = vmatprep.mubr.bf16.mxu0 0
    %361 = vmatmul.mubr.bf16.gmra.mrb[0].mxu0 %v164
    %v362 = vpop.f32.mrb[0].mxu0
    %v363 = vadd.f32 %v101, %v362
    %v364 = vpop.f32.mrb[0].mxu0
    %v365 = vadd.f32 %v105, %v364
    %v366 = vpop.f32.mrb[0].mxu0
    %v367 = vadd.f32 %v101, %v366
    %v368 = vpop.f32.mrb[0].mxu0
    %v369 = vadd.f32 %v105, %v368
    %370 = vmatprep.mubr.bf16.mxu0 0
    %371 = vmatmul.mubr.bf16.gmra.mrb[0].mxu0 %v167
    %v372 = vpop.f32.mrb[0].mxu0
    %v373 = vadd.f32 %v101, %v372
    %v374 = vpop.f32.mrb[0].mxu0
    %v375 = vadd.f32 %v105, %v374
    %v376 = vpop.f32.mrb[0].mxu0
    %v377 = vadd.f32 %v101, %v376
    %v378 = vpop.f32.mrb[0].mxu0
    %v379 = vadd.f32 %v105, %v378
    %380 = vmatprep.mubr.bf16.mxu0 0
    %381 = vmatmul.mubr.bf16.gmra.mrb[0].mxu0 %v170
    %v382 = vpop.f32.mrb[0].mxu0
    %v383 = vadd.f32 %v101, %v382
    %v384 = vpop.f32.mrb[0].mxu0
    %v385 = vadd.f32 %v105, %v384
    %v386 = vpop.f32.mrb[0].mxu0
    %v387 = vadd.f32 %v101, %v386
    %v388 = vpop.f32.mrb[0].mxu0
    %v389 = vadd.f32 %v105, %v388
    %390 = vmatprep.mubr.bf16.mxu0 0
    %391 = vmatmul.mubr.bf16.gmra.mrb[0].mxu0 %v173
    %v392 = vpop.f32.mrb[0].mxu0
    %v393 = vadd.f32 %v101, %v392
    %v394 = vpop.f32.mrb[0].mxu0
    %v395 = vadd.f32 %v105, %v394
    %v396 = vpop.f32.mrb[0].mxu0
    %v397 = vadd.f32 %v101, %v396
    %v398 = vpop.f32.mrb[0].mxu0
    %v399 = vadd.f32 %v105, %v398
    %400 = vdwg.mxu0
    %v401 = vmax.f32 %v210, 0.0
    %v402 = vmax.f32 %v212, 0.0
    %v403 = vmax.f32 %v323, 0.0
    %v404 = vmax.f32 %v325, 0.0
    %v405 = vmax.f32 %v214, 0.0
    %v406 = vmax.f32 %v216, 0.0
    %v407 = vmax.f32 %v327, 0.0
    %v408 = vmax.f32 %v329, 0.0
    %v409 = vmax.f32 %v220, 0.0
    %v410 = vmax.f32 %v222, 0.0
    %v411 = vmax.f32 %v333, 0.0
    %v412 = vmax.f32 %v335, 0.0
    %v413 = vmax.f32 %v224, 0.0
    %v414 = vmax.f32 %v226, 0.0
    %v415 = vmax.f32 %v337, 0.0
    %v416 = vmax.f32 %v339, 0.0
    %v417 = vmax.f32 %v230, 0.0
    %v418 = vmax.f32 %v232, 0.0
    %v419 = vmax.f32 %v343, 0.0
    %v420 = vmax.f32 %v345, 0.0
    %v421 = vmax.f32 %v234, 0.0
    %v422 = vmax.f32 %v236, 0.0
    %v423 = vmax.f32 %v347, 0.0
    %v424 = vmax.f32 %v349, 0.0
    %v425 = vmax.f32 %v240, 0.0
    %v426 = vmax.f32 %v242, 0.0
    %v427 = vmax.f32 %v353, 0.0
    %v428 = vmax.f32 %v355, 0.0
    %v429 = vmax.f32 %v244, 0.0
    %v430 = vmax.f32 %v246, 0.0
    %v431 = vmax.f32 %v357, 0.0
    %v432 = vmax.f32 %v359, 0.0
    %v433 = vmax.f32 %v250, 0.0
    %v434 = vmax.f32 %v252, 0.0
    %v435 = vmax.f32 %v363, 0.0
    %v436 = vmax.f32 %v365, 0.0
    %v437 = vmax.f32 %v254, 0.0
    %v438 = vmax.f32 %v256, 0.0
    %v439 = vmax.f32 %v367, 0.0
    %v440 = vmax.f32 %v369, 0.0
    %v441 = vmax.f32 %v260, 0.0
    %v442 = vmax.f32 %v262, 0.0
    %v443 = vmax.f32 %v373, 0.0
    %v444 = vmax.f32 %v375, 0.0
    %v445 = vmax.f32 %v264, 0.0
    %v446 = vmax.f32 %v266, 0.0
    %v447 = vmax.f32 %v377, 0.0
    %v448 = vmax.f32 %v379, 0.0
    %v449 = vmax.f32 %v270, 0.0
    %v450 = vmax.f32 %v272, 0.0
    %v451 = vmax.f32 %v383, 0.0
    %v452 = vmax.f32 %v385, 0.0
    %v453 = vmax.f32 %v274, 0.0
    %v454 = vmax.f32 %v276, 0.0
    %v455 = vmax.f32 %v387, 0.0
    %v456 = vmax.f32 %v389, 0.0
    %v457 = vmax.f32 %v280, 0.0
    %v458 = vmax.f32 %v282, 0.0
    %v459 = vmax.f32 %v393, 0.0
    %v460 = vmax.f32 %v395, 0.0
    %v461 = vmax.f32 %v284, 0.0
    %v462 = vmax.f32 %v286, 0.0
    %v463 = vmax.f32 %v397, 0.0
    %v464 = vmax.f32 %v399, 0.0
    %v465 = vpack.c.bf16 %v405, %v401
    %v466 = vpack.c.bf16 %v406, %v402
    %v467 = vpack.c.bf16 %v407, %v403
    %v468 = vpack.c.bf16 %v408, %v404
    %v469 = vpack.c.bf16 %v413, %v409
    %v470 = vpack.c.bf16 %v414, %v410
    %v471 = vpack.c.bf16 %v415, %v411
    %v472 = vpack.c.bf16 %v416, %v412
    %v473 = vpack.c.bf16 %v421, %v417
    %v474 = vpack.c.bf16 %v422, %v418
    %v475 = vpack.c.bf16 %v423, %v419
    %v476 = vpack.c.bf16 %v424, %v420
    %v477 = vpack.c.bf16 %v429, %v425
    %v478 = vpack.c.bf16 %v430, %v426
    %v479 = vpack.c.bf16 %v431, %v427
    %v480 = vpack.c.bf16 %v432, %v428
    %v481 = vpack.c.bf16 %v437, %v433
    %v482 = vpack.c.bf16 %v438, %v434
    %v483 = vpack.c.bf16 %v439, %v435
    %v484 = vpack.c.bf16 %v440, %v436
    %v485 = vpack.c.bf16 %v445, %v441
    %v486 = vpack.c.bf16 %v446, %v442
    %v487 = vpack.c.bf16 %v447, %v443
    %v488 = vpack.c.bf16 %v448, %v444
    %v489 = vpack.c.bf16 %v453, %v449
    %v490 = vpack.c.bf16 %v454, %v450
    %v491 = vpack.c.bf16 %v455, %v451
    %v492 = vpack.c.bf16 %v456, %v452
    %v493 = vpack.c.bf16 %v461, %v457
    %v494 = vpack.c.bf16 %v462, %v458
    %v495 = vpack.c.bf16 %v463, %v459
    %v496 = vpack.c.bf16 %v464, %v460
    %v497 = vld [vmem:[#allocation3] sm:$0xff]
    %v498 = vld [vmem:[#allocation3 + $0x8] sm:$0xff]
    %v499 = vld [vmem:[#allocation3 + $0x10] sm:$0xff]
    %v500 = vld [vmem:[#allocation3 + $0x18] sm:$0xff]
    %v501 = vld [vmem:[#allocation3 + $0x20] sm:$0xff]
    %v502 = vld [vmem:[#allocation3 + $0x28] sm:$0xff]
    %v503 = vld [vmem:[#allocation3 + $0x30] sm:$0xff]
    %v504 = vld [vmem:[#allocation3 + $0x38] sm:$0xff]
    %v505 = vld [vmem:[#allocation3 + $0x40] sm:$0xff]
    %v506 = vld [vmem:[#allocation3 + $0x48] sm:$0xff]
    %v507 = vld [vmem:[#allocation3 + $0x50] sm:$0xff]
    %v508 = vld [vmem:[#allocation3 + $0x58] sm:$0xff]
    %v509 = vld [vmem:[#allocation3 + $0x60] sm:$0xff]
    %v510 = vld [vmem:[#allocation3 + $0x68] sm:$0xff]
    %v511 = vld [vmem:[#allocation3 + $0x70] sm:$0xff]
    %v512 = vld [vmem:[#allocation3 + $0x78] sm:$0xff]
    %v513 = vld [vmem:[#allocation3 + $0x80] sm:$0xff]
    %v514 = vld [vmem:[#allocation3 + $0x88] sm:$0xff]
    %v515 = vld [vmem:[#allocation3 + $0x90] sm:$0xff]
    %v516 = vld [vmem:[#allocation3 + $0x98] sm:$0xff]
    %v517 = vld [vmem:[#allocation3 + $0xa0] sm:$0xff]
    %v518 = vld [vmem:[#allocation3 + $0xa8] sm:$0xff]
    %v519 = vld [vmem:[#allocation3 + $0xb0] sm:$0xff]
    %v520 = vld [vmem:[#allocation3 + $0xb8] sm:$0xff]
    %v521 = vld [vmem:[#allocation3 + $0xc0] sm:$0xff]
    %v522 = vld [vmem:[#allocation3 + $0xc8] sm:$0xff]
    %v523 = vld [vmem:[#allocation3 + $0xd0] sm:$0xff]
    %v524 = vld [vmem:[#allocation3 + $0xd8] sm:$0xff]
    %v525 = vld [vmem:[#allocation3 + $0xe0] sm:$0xff]
    %v526 = vld [vmem:[#allocation3 + $0xe8] sm:$0xff]
    %v527 = vld [vmem:[#allocation3 + $0xf0] sm:$0xff]
    %v528 = vld [vmem:[#allocation3 + $0xf8] sm:$0xff]
    %v529 = vld [vmem:[#allocation3 + $0x100] sm:$0xff]
    %v530 = vld [vmem:[#allocation3 + $0x108] sm:$0xff]
    %v531 = vld [vmem:[#allocation3 + $0x110] sm:$0xff]
    %v532 = vld [vmem:[#allocation3 + $0x118] sm:$0xff]
    %v533 = vld [vmem:[#allocation3 + $0x120] sm:$0xff]
    %v534 = vld [vmem:[#allocation3 + $0x128] sm:$0xff]
    %v535 = vld [vmem:[#allocation3 + $0x130] sm:$0xff]
    %v536 = vld [vmem:[#allocation3 + $0x138] sm:$0xff]
    %v537 = vld [vmem:[#allocation3 + $0x140] sm:$0xff]
    %v538 = vld [vmem:[#allocation3 + $0x148] sm:$0xff]
    %v539 = vld [vmem:[#allocation3 + $0x150] sm:$0xff]
    %v540 = vld [vmem:[#allocation3 + $0x158] sm:$0xff]
    %v541 = vld [vmem:[#allocation3 + $0x160] sm:$0xff]
    %v542 = vld [vmem:[#allocation3 + $0x168] sm:$0xff]
    %v543 = vld [vmem:[#allocation3 + $0x170] sm:$0xff]
    %v544 = vld [vmem:[#allocation3 + $0x178] sm:$0xff]
    %v545 = vld [vmem:[#allocation3 + $0x180] sm:$0xff]
    %v546 = vld [vmem:[#allocation3 + $0x188] sm:$0xff]
    %v547 = vld [vmem:[#allocation3 + $0x190] sm:$0xff]
    %v548 = vld [vmem:[#allocation3 + $0x198] sm:$0xff]
    %v549 = vld [vmem:[#allocation3 + $0x1a0] sm:$0xff]
    %v550 = vld [vmem:[#allocation3 + $0x1a8] sm:$0xff]
    %v551 = vld [vmem:[#allocation3 + $0x1b0] sm:$0xff]
    %v552 = vld [vmem:[#allocation3 + $0x1b8] sm:$0xff]
    %v553 = vld [vmem:[#allocation3 + $0x1c0] sm:$0xff]
    %v554 = vld [vmem:[#allocation3 + $0x1c8] sm:$0xff]
    %v555 = vld [vmem:[#allocation3 + $0x1d0] sm:$0xff]
    %v556 = vld [vmem:[#allocation3 + $0x1d8] sm:$0xff]
    %v557 = vld [vmem:[#allocation3 + $0x1e0] sm:$0xff]
    %v558 = vld [vmem:[#allocation3 + $0x1e8] sm:$0xff]
    %v559 = vld [vmem:[#allocation3 + $0x1f0] sm:$0xff]
    %v560 = vld [vmem:[#allocation3 + $0x1f8] sm:$0xff]
    %v561 = vld [vmem:[%s4] sm:$0x3]
    %v563 = vlaneseq
    %v564 = vshrl.u32 %v563, 7
    %v565 = vsub.s32 0, %v564
    %v566 = vrot.slane %v561, %v565
    %v567 = vlaneseq
    %v568 = vshrl.u32 %v567, 7
    %v569 = vsub.s32 1, %v568
    %v570 = vrot.slane %v561, %v569
    %v637 = vunpack.c.l.b16 %v497
    %v638 = vunpack.c.h.b16 %v497
    %v639 = vunpack.c.l.b16 %v498
    %v640 = vunpack.c.h.b16 %v498
    %v641 = vunpack.c.l.b16 %v499
    %v642 = vunpack.c.h.b16 %v499
    %v643 = vunpack.c.l.b16 %v500
    %v644 = vunpack.c.h.b16 %v500
    %v645 = vunpack.c.l.b16 %v501
    %v646 = vunpack.c.h.b16 %v501
    %v647 = vunpack.c.l.b16 %v502
    %v648 = vunpack.c.h.b16 %v502
    %v649 = vunpack.c.l.b16 %v503
    %v650 = vunpack.c.h.b16 %v503
    %v651 = vunpack.c.l.b16 %v504
    %v652 = vunpack.c.h.b16 %v504
    %v653 = vunpack.c.l.b16 %v505
    %v654 = vunpack.c.h.b16 %v505
    %v655 = vunpack.c.l.b16 %v506
    %v656 = vunpack.c.h.b16 %v506
    %v657 = vunpack.c.l.b16 %v507
    %v658 = vunpack.c.h.b16 %v507
    %v659 = vunpack.c.l.b16 %v508
    %v660 = vunpack.c.h.b16 %v508
    %v661 = vunpack.c.l.b16 %v509
    %v662 = vunpack.c.h.b16 %v509
    %v663 = vunpack.c.l.b16 %v510
    %v664 = vunpack.c.h.b16 %v510
    %v665 = vunpack.c.l.b16 %v511
    %v666 = vunpack.c.h.b16 %v511
    %v667 = vunpack.c.l.b16 %v512
    %v668 = vunpack.c.h.b16 %v512
    %v669 = vunpack.c.l.b16 %v513
    %v670 = vunpack.c.h.b16 %v513
    %v671 = vunpack.c.l.b16 %v514
    %v672 = vunpack.c.h.b16 %v514
    %v673 = vunpack.c.l.b16 %v515
    %v674 = vunpack.c.h.b16 %v515
    %v675 = vunpack.c.l.b16 %v516
    %v676 = vunpack.c.h.b16 %v516
    %v677 = vunpack.c.l.b16 %v517
    %v678 = vunpack.c.h.b16 %v517
    %v679 = vunpack.c.l.b16 %v518
    %v680 = vunpack.c.h.b16 %v518
    %v681 = vunpack.c.l.b16 %v519
    %v682 = vunpack.c.h.b16 %v519
    %v683 = vunpack.c.l.b16 %v520
    %v684 = vunpack.c.h.b16 %v520
    %v685 = vunpack.c.l.b16 %v521
    %v686 = vunpack.c.h.b16 %v521
    %v687 = vunpack.c.l.b16 %v522
    %v688 = vunpack.c.h.b16 %v522
    %v689 = vunpack.c.l.b16 %v523
    %v690 = vunpack.c.h.b16 %v523
    %v691 = vunpack.c.l.b16 %v524
    %v692 = vunpack.c.h.b16 %v524
    %v693 = vunpack.c.l.b16 %v525
    %v694 = vunpack.c.h.b16 %v525
    %v695 = vunpack.c.l.b16 %v526
    %v696 = vunpack.c.h.b16 %v526
    %v697 = vunpack.c.l.b16 %v527
    %v698 = vunpack.c.h.b16 %v527
    %v699 = vunpack.c.l.b16 %v528
    %v700 = vunpack.c.h.b16 %v528
    %v701 = vunpack.c.l.b16 %v529
    %v702 = vunpack.c.h.b16 %v529
    %v703 = vunpack.c.l.b16 %v530
    %v704 = vunpack.c.h.b16 %v530
    %v705 = vunpack.c.l.b16 %v531
    %v706 = vunpack.c.h.b16 %v531
    %v707 = vunpack.c.l.b16 %v532
    %v708 = vunpack.c.h.b16 %v532
    %v709 = vunpack.c.l.b16 %v533
    %v710 = vunpack.c.h.b16 %v533
    %v711 = vunpack.c.l.b16 %v534
    %v712 = vunpack.c.h.b16 %v534
    %v713 = vunpack.c.l.b16 %v535
    %v714 = vunpack.c.h.b16 %v535
    %v715 = vunpack.c.l.b16 %v536
    %v716 = vunpack.c.h.b16 %v536
    %v717 = vunpack.c.l.b16 %v537
    %v718 = vunpack.c.h.b16 %v537
    %v719 = vunpack.c.l.b16 %v538
    %v720 = vunpack.c.h.b16 %v538
    %v721 = vunpack.c.l.b16 %v539
    %v722 = vunpack.c.h.b16 %v539
    %v723 = vunpack.c.l.b16 %v540
    %v724 = vunpack.c.h.b16 %v540
    %v725 = vunpack.c.l.b16 %v541
    %v726 = vunpack.c.h.b16 %v541
    %v727 = vunpack.c.l.b16 %v542
    %v728 = vunpack.c.h.b16 %v542
    %v729 = vunpack.c.l.b16 %v543
    %v730 = vunpack.c.h.b16 %v543
    %v731 = vunpack.c.l.b16 %v544
    %v732 = vunpack.c.h.b16 %v544
    %v733 = vunpack.c.l.b16 %v545
    %v734 = vunpack.c.h.b16 %v545
    %v735 = vunpack.c.l.b16 %v546
    %v736 = vunpack.c.h.b16 %v546
    %v737 = vunpack.c.l.b16 %v547
    %v738 = vunpack.c.h.b16 %v547
    %v739 = vunpack.c.l.b16 %v548
    %v740 = vunpack.c.h.b16 %v548
    %v741 = vunpack.c.l.b16 %v549
    %v742 = vunpack.c.h.b16 %v549
    %v743 = vunpack.c.l.b16 %v550
    %v744 = vunpack.c.h.b16 %v550
    %v745 = vunpack.c.l.b16 %v551
    %v746 = vunpack.c.h.b16 %v551
    %v747 = vunpack.c.l.b16 %v552
    %v748 = vunpack.c.h.b16 %v552
    %v749 = vunpack.c.l.b16 %v553
    %v750 = vunpack.c.h.b16 %v553
    %v751 = vunpack.c.l.b16 %v554
    %v752 = vunpack.c.h.b16 %v554
    %v753 = vunpack.c.l.b16 %v555
    %v754 = vunpack.c.h.b16 %v555
    %v755 = vunpack.c.l.b16 %v556
    %v756 = vunpack.c.h.b16 %v556
    %v757 = vunpack.c.l.b16 %v557
    %v758 = vunpack.c.h.b16 %v557
    %v759 = vunpack.c.l.b16 %v558
    %v760 = vunpack.c.h.b16 %v558
    %v761 = vunpack.c.l.b16 %v559
    %v762 = vunpack.c.h.b16 %v559
    %v763 = vunpack.c.l.b16 %v560
    %v764 = vunpack.c.h.b16 %v560
    %v765 = vpack.c.b16 %v639, %v637
    %v766 = vpack.c.b16 %v640, %v638
    %v767 = vpack.c.b16 %v643, %v641
    %v768 = vpack.c.b16 %v644, %v642
    %v769 = vpack.c.b16 %v647, %v645
    %v770 = vpack.c.b16 %v648, %v646
    %v771 = vpack.c.b16 %v651, %v649
    %v772 = vpack.c.b16 %v652, %v650
    %v773 = vpack.c.b16 %v655, %v653
    %v774 = vpack.c.b16 %v656, %v654
    %v775 = vpack.c.b16 %v659, %v657
    %v776 = vpack.c.b16 %v660, %v658
    %v777 = vpack.c.b16 %v663, %v661
    %v778 = vpack.c.b16 %v664, %v662
    %v779 = vpack.c.b16 %v667, %v665
    %v780 = vpack.c.b16 %v668, %v666
    %v781 = vpack.c.b16 %v671, %v669
    %v782 = vpack.c.b16 %v672, %v670
    %v783 = vpack.c.b16 %v675, %v673
    %v784 = vpack.c.b16 %v676, %v674
    %v785 = vpack.c.b16 %v679, %v677
    %v786 = vpack.c.b16 %v680, %v678
    %v787 = vpack.c.b16 %v683, %v681
    %v788 = vpack.c.b16 %v684, %v682
    %v789 = vpack.c.b16 %v687, %v685
    %v790 = vpack.c.b16 %v688, %v686
    %v791 = vpack.c.b16 %v691, %v689
    %v792 = vpack.c.b16 %v692, %v690
    %v793 = vpack.c.b16 %v695, %v693
    %v794 = vpack.c.b16 %v696, %v694
    %v795 = vpack.c.b16 %v699, %v697
    %v796 = vpack.c.b16 %v700, %v698
    %v797 = vpack.c.b16 %v703, %v701
    %v798 = vpack.c.b16 %v704, %v702
    %v799 = vpack.c.b16 %v707, %v705
    %v800 = vpack.c.b16 %v708, %v706
    %v801 = vpack.c.b16 %v711, %v709
    %v802 = vpack.c.b16 %v712, %v710
    %v803 = vpack.c.b16 %v715, %v713
    %v804 = vpack.c.b16 %v716, %v714
    %v805 = vpack.c.b16 %v719, %v717
    %v806 = vpack.c.b16 %v720, %v718
    %v807 = vpack.c.b16 %v723, %v721
    %v808 = vpack.c.b16 %v724, %v722
    %v809 = vpack.c.b16 %v727, %v725
    %v810 = vpack.c.b16 %v728, %v726
    %v811 = vpack.c.b16 %v731, %v729
    %v812 = vpack.c.b16 %v732, %v730
    %v813 = vpack.c.b16 %v735, %v733
    %v814 = vpack.c.b16 %v736, %v734
    %v815 = vpack.c.b16 %v739, %v737
    %v816 = vpack.c.b16 %v740, %v738
    %v817 = vpack.c.b16 %v743, %v741
    %v818 = vpack.c.b16 %v744, %v742
    %v819 = vpack.c.b16 %v747, %v745
    %v820 = vpack.c.b16 %v748, %v746
    %v821 = vpack.c.b16 %v751, %v749
    %v822 = vpack.c.b16 %v752, %v750
    %v823 = vpack.c.b16 %v755, %v753
    %v824 = vpack.c.b16 %v756, %v754
    %v825 = vpack.c.b16 %v759, %v757
    %v826 = vpack.c.b16 %v760, %v758
    %v827 = vpack.c.b16 %v763, %v761
    %v828 = vpack.c.b16 %v764, %v762
    %893 = vmatprep.subr.bf16.mxu0 %v766
    %894 = vmatpush1.bf16.msra.mxu0 %v765
    %895 = vmatprep.subr.bf16.mxu0 %v768
    %896 = vmatpush1.bf16.msra.mxu0 %v767
    %897 = vmatprep.subr.bf16.mxu0 %v770
    %898 = vmatpush1.bf16.msra.mxu0 %v769
    %899 = vmatprep.subr.bf16.mxu0 %v772
    %900 = vmatpush1.bf16.msra.mxu0 %v771
    %901 = vmatprep.subr.bf16.mxu0 %v774
    %902 = vmatpush1.bf16.msra.mxu0 %v773
    %903 = vmatprep.subr.bf16.mxu0 %v776
    %904 = vmatpush1.bf16.msra.mxu0 %v775
    %905 = vmatprep.subr.bf16.mxu0 %v778
    %906 = vmatpush1.bf16.msra.mxu0 %v777
    %907 = vmatprep.subr.bf16.mxu0 %v780
    %908 = vmatpush1.bf16.msra.mxu0 %v779
    %909 = vmatprep.subr.bf16.mxu0 %v782
    %910 = vmatpush1.bf16.msra.mxu0 %v781
    %911 = vmatprep.subr.bf16.mxu0 %v784
    %912 = vmatpush1.bf16.msra.mxu0 %v783
    %913 = vmatprep.subr.bf16.mxu0 %v786
    %914 = vmatpush1.bf16.msra.mxu0 %v785
    %915 = vmatprep.subr.bf16.mxu0 %v788
    %916 = vmatpush1.bf16.msra.mxu0 %v787
    %917 = vmatprep.subr.bf16.mxu0 %v790
    %918 = vmatpush1.bf16.msra.mxu0 %v789
    %919 = vmatprep.subr.bf16.mxu0 %v792
    %920 = vmatpush1.bf16.msra.mxu0 %v791
    %921 = vmatprep.subr.bf16.mxu0 %v794
    %922 = vmatpush1.bf16.msra.mxu0 %v793
    %923 = vmatprep.subr.bf16.mxu0 %v796
    %924 = vmatpush1.bf16.msra.mxu0 %v795
    %925 = vmatprep.mubr.bf16.mxu0 %v466
    %926 = vmatmul.mubr.bf16.gmra.mrb[0].mxu0 %v465
    %v927 = vpop.f32.mrb[0].mxu0
    %v928 = vadd.f32 %v566, %v927
    %v929 = vpop.f32.mrb[0].mxu0
    %v930 = vadd.f32 %v570, %v929
    %v931 = vpop.f32.mrb[0].mxu0
    %v932 = vadd.f32 %v566, %v931
    %v933 = vpop.f32.mrb[0].mxu0
    %v934 = vadd.f32 %v570, %v933
    %935 = vmatprep.mubr.bf16.mxu0 %v470
    %936 = vmatmul.mubr.bf16.gmra.mrb[0].mxu0 %v469
    %v937 = vpop.f32.mrb[0].mxu0
    %v938 = vadd.f32 %v566, %v937
    %v939 = vpop.f32.mrb[0].mxu0
    %v940 = vadd.f32 %v570, %v939
    %v941 = vpop.f32.mrb[0].mxu0
    %v942 = vadd.f32 %v566, %v941
    %v943 = vpop.f32.mrb[0].mxu0
    %v944 = vadd.f32 %v570, %v943
    %945 = vmatprep.mubr.bf16.mxu0 %v474
    %946 = vmatmul.mubr.bf16.gmra.mrb[0].mxu0 %v473
    %v947 = vpop.f32.mrb[0].mxu0
    %v948 = vadd.f32 %v566, %v947
    %v949 = vpop.f32.mrb[0].mxu0
    %v950 = vadd.f32 %v570, %v949
    %v951 = vpop.f32.mrb[0].mxu0
    %v952 = vadd.f32 %v566, %v951
    %v953 = vpop.f32.mrb[0].mxu0
    %v954 = vadd.f32 %v570, %v953
    %955 = vmatprep.mubr.bf16.mxu0 %v478
    %956 = vmatmul.mubr.bf16.gmra.mrb[0].mxu0 %v477
    %v957 = vpop.f32.mrb[0].mxu0
    %v958 = vadd.f32 %v566, %v957
    %v959 = vpop.f32.mrb[0].mxu0
    %v960 = vadd.f32 %v570, %v959
    %v961 = vpop.f32.mrb[0].mxu0
    %v962 = vadd.f32 %v566, %v961
    %v963 = vpop.f32.mrb[0].mxu0
    %v964 = vadd.f32 %v570, %v963
    %965 = vmatprep.mubr.bf16.mxu0 %v482
    %966 = vmatmul.mubr.bf16.gmra.mrb[0].mxu0 %v481
    %v967 = vpop.f32.mrb[0].mxu0
    %v968 = vadd.f32 %v566, %v967
    %v969 = vpop.f32.mrb[0].mxu0
    %v970 = vadd.f32 %v570, %v969
    %v971 = vpop.f32.mrb[0].mxu0
    %v972 = vadd.f32 %v566, %v971
    %v973 = vpop.f32.mrb[0].mxu0
    %v974 = vadd.f32 %v570, %v973
    %975 = vmatprep.mubr.bf16.mxu0 %v486
    %976 = vmatmul.mubr.bf16.gmra.mrb[0].mxu0 %v485
    %v977 = vpop.f32.mrb[0].mxu0
    %v978 = vadd.f32 %v566, %v977
    %v979 = vpop.f32.mrb[0].mxu0
    %v980 = vadd.f32 %v570, %v979
    %v981 = vpop.f32.mrb[0].mxu0
    %v982 = vadd.f32 %v566, %v981
    %v983 = vpop.f32.mrb[0].mxu0
    %v984 = vadd.f32 %v570, %v983
    %985 = vmatprep.mubr.bf16.mxu0 %v490
    %986 = vmatmul.mubr.bf16.gmra.mrb[0].mxu0 %v489
    %v987 = vpop.f32.mrb[0].mxu0
    %v988 = vadd.f32 %v566, %v987
    %v989 = vpop.f32.mrb[0].mxu0
    %v990 = vadd.f32 %v570, %v989
    %v991 = vpop.f32.mrb[0].mxu0
    %v992 = vadd.f32 %v566, %v991
    %v993 = vpop.f32.mrb[0].mxu0
    %v994 = vadd.f32 %v570, %v993
    %995 = vmatprep.mubr.bf16.mxu0 %v494
    %996 = vmatmul.mubr.bf16.gmra.mrb[0].mxu0 %v493
    %v997 = vpop.f32.mrb[0].mxu0
    %v998 = vadd.f32 %v566, %v997
    %v999 = vpop.f32.mrb[0].mxu0
    %v1000 = vadd.f32 %v570, %v999
    %v1001 = vpop.f32.mrb[0].mxu0
    %v1002 = vadd.f32 %v566, %v1001
    %v1003 = vpop.f32.mrb[0].mxu0
    %v1004 = vadd.f32 %v570, %v1003
    %1005 = vdwg.mxu0
    %1006 = vmatprep.subr.bf16.mxu0 %v798
    %1007 = vmatpush1.bf16.msra.mxu0 %v797
    %1008 = vmatprep.subr.bf16.mxu0 %v800
    %1009 = vmatpush1.bf16.msra.mxu0 %v799
    %1010 = vmatprep.subr.bf16.mxu0 %v802
    %1011 = vmatpush1.bf16.msra.mxu0 %v801
    %1012 = vmatprep.subr.bf16.mxu0 %v804
    %1013 = vmatpush1.bf16.msra.mxu0 %v803
    %1014 = vmatprep.subr.bf16.mxu0 %v806
    %1015 = vmatpush1.bf16.msra.mxu0 %v805
    %1016 = vmatprep.subr.bf16.mxu0 %v808
    %1017 = vmatpush1.bf16.msra.mxu0 %v807
    %1018 = vmatprep.subr.bf16.mxu0 %v810
    %1019 = vmatpush1.bf16.msra.mxu0 %v809
    %1020 = vmatprep.subr.bf16.mxu0 %v812
    %1021 = vmatpush1.bf16.msra.mxu0 %v811
    %1022 = vmatprep.subr.bf16.mxu0 %v814
    %1023 = vmatpush1.bf16.msra.mxu0 %v813
    %1024 = vmatprep.subr.bf16.mxu0 %v816
    %1025 = vmatpush1.bf16.msra.mxu0 %v815
    %1026 = vmatprep.subr.bf16.mxu0 %v818
    %1027 = vmatpush1.bf16.msra.mxu0 %v817
    %1028 = vmatprep.subr.bf16.mxu0 %v820
    %1029 = vmatpush1.bf16.msra.mxu0 %v819
    %1030 = vmatprep.subr.bf16.mxu0 %v822
    %1031 = vmatpush1.bf16.msra.mxu0 %v821
    %1032 = vmatprep.subr.bf16.mxu0 %v824
    %1033 = vmatpush1.bf16.msra.mxu0 %v823
    %1034 = vmatprep.subr.bf16.mxu0 %v826
    %1035 = vmatpush1.bf16.msra.mxu0 %v825
    %1036 = vmatprep.subr.bf16.mxu0 %v828
    %1037 = vmatpush1.bf16.msra.mxu0 %v827
    %1038 = vmatprep.mubr.bf16.mxu0 %v468
    %1039 = vmatmul.mubr.bf16.gmra.mrb[0].mxu0 %v467
    %v1040 = vpop.f32.mrb[0].mxu0
    %v1041 = vadd.f32 %v928, %v1040
    %v1042 = vpop.f32.mrb[0].mxu0
    %v1043 = vadd.f32 %v930, %v1042
    %v1044 = vpop.f32.mrb[0].mxu0
    %v1045 = vadd.f32 %v932, %v1044
    %v1046 = vpop.f32.mrb[0].mxu0
    %v1047 = vadd.f32 %v934, %v1046
    %1048 = vmatprep.mubr.bf16.mxu0 %v472
    %1049 = vmatmul.mubr.bf16.gmra.mrb[0].mxu0 %v471
    %v1050 = vpop.f32.mrb[0].mxu0
    %v1051 = vadd.f32 %v938, %v1050
    %v1052 = vpop.f32.mrb[0].mxu0
    %v1053 = vadd.f32 %v940, %v1052
    %v1054 = vpop.f32.mrb[0].mxu0
    %v1055 = vadd.f32 %v942, %v1054
    %v1056 = vpop.f32.mrb[0].mxu0
    %v1057 = vadd.f32 %v944, %v1056
    %1058 = vmatprep.mubr.bf16.mxu0 %v476
    %1059 = vmatmul.mubr.bf16.gmra.mrb[0].mxu0 %v475
    %v1060 = vpop.f32.mrb[0].mxu0
    %v1061 = vadd.f32 %v948, %v1060
    %v1062 = vpop.f32.mrb[0].mxu0
    %v1063 = vadd.f32 %v950, %v1062
    %v1064 = vpop.f32.mrb[0].mxu0
    %v1065 = vadd.f32 %v952, %v1064
    %v1066 = vpop.f32.mrb[0].mxu0
    %v1067 = vadd.f32 %v954, %v1066
    %1068 = vmatprep.mubr.bf16.mxu0 %v480
    %1069 = vmatmul.mubr.bf16.gmra.mrb[0].mxu0 %v479
    %v1070 = vpop.f32.mrb[0].mxu0
    %v1071 = vadd.f32 %v958, %v1070
    %v1072 = vpop.f32.mrb[0].mxu0
    %v1073 = vadd.f32 %v960, %v1072
    %v1074 = vpop.f32.mrb[0].mxu0
    %v1075 = vadd.f32 %v962, %v1074
    %v1076 = vpop.f32.mrb[0].mxu0
    %v1077 = vadd.f32 %v964, %v1076
    %1078 = vmatprep.mubr.bf16.mxu0 %v484
    %1079 = vmatmul.mubr.bf16.gmra.mrb[0].mxu0 %v483
    %v1080 = vpop.f32.mrb[0].mxu0
    %v1081 = vadd.f32 %v968, %v1080
    %v1082 = vpop.f32.mrb[0].mxu0
    %v1083 = vadd.f32 %v970, %v1082
    %v1084 = vpop.f32.mrb[0].mxu0
    %v1085 = vadd.f32 %v972, %v1084
    %v1086 = vpop.f32.mrb[0].mxu0
    %v1087 = vadd.f32 %v974, %v1086
    %1088 = vmatprep.mubr.bf16.mxu0 %v488
    %1089 = vmatmul.mubr.bf16.gmra.mrb[0].mxu0 %v487
    %v1090 = vpop.f32.mrb[0].mxu0
    %v1091 = vadd.f32 %v978, %v1090
    %v1092 = vpop.f32.mrb[0].mxu0
    %v1093 = vadd.f32 %v980, %v1092
    %v1094 = vpop.f32.mrb[0].mxu0
    %v1095 = vadd.f32 %v982, %v1094
    %v1096 = vpop.f32.mrb[0].mxu0
    %v1097 = vadd.f32 %v984, %v1096
    %1098 = vmatprep.mubr.bf16.mxu0 %v492
    %1099 = vmatmul.mubr.bf16.gmra.mrb[0].mxu0 %v491
    %v1100 = vpop.f32.mrb[0].mxu0
    %v1101 = vadd.f32 %v988, %v1100
    %v1102 = vpop.f32.mrb[0].mxu0
    %v1103 = vadd.f32 %v990, %v1102
    %v1104 = vpop.f32.mrb[0].mxu0
    %v1105 = vadd.f32 %v992, %v1104
    %v1106 = vpop.f32.mrb[0].mxu0
    %v1107 = vadd.f32 %v994, %v1106
    %1108 = vmatprep.mubr.bf16.mxu0 %v496
    %1109 = vmatmul.mubr.bf16.gmra.mrb[0].mxu0 %v495
    %v1110 = vpop.f32.mrb[0].mxu0
    %v1111 = vadd.f32 %v998, %v1110
    %v1112 = vpop.f32.mrb[0].mxu0
    %v1113 = vadd.f32 %v1000, %v1112
    %v1114 = vpop.f32.mrb[0].mxu0
    %v1115 = vadd.f32 %v1002, %v1114
    %v1116 = vpop.f32.mrb[0].mxu0
    %v1117 = vadd.f32 %v1004, %v1116
    %1118 = vdwg.mxu0
    %v1119 = vmax.f32 %v1041, 0.0
    %v1120 = vmax.f32 %v1043, 0.0
    %v1121 = vmax.f32 %v1045, 0.0
    %v1122 = vmax.f32 %v1047, 0.0
    %v1123 = vmax.f32 %v1051, 0.0
    %v1124 = vmax.f32 %v1053, 0.0
    %v1125 = vmax.f32 %v1055, 0.0
    %v1126 = vmax.f32 %v1057, 0.0
    %v1127 = vmax.f32 %v1061, 0.0
    %v1128 = vmax.f32 %v1063, 0.0
    %v1129 = vmax.f32 %v1065, 0.0
    %v1130 = vmax.f32 %v1067, 0.0
    %v1131 = vmax.f32 %v1071, 0.0
    %v1132 = vmax.f32 %v1073, 0.0
    %v1133 = vmax.f32 %v1075, 0.0
    %v1134 = vmax.f32 %v1077, 0.0
    %v1135 = vmax.f32 %v1081, 0.0
    %v1136 = vmax.f32 %v1083, 0.0
    %v1137 = vmax.f32 %v1085, 0.0
    %v1138 = vmax.f32 %v1087, 0.0
    %v1139 = vmax.f32 %v1091, 0.0
    %v1140 = vmax.f32 %v1093, 0.0
    %v1141 = vmax.f32 %v1095, 0.0
    %v1142 = vmax.f32 %v1097, 0.0
    %v1143 = vmax.f32 %v1101, 0.0
    %v1144 = vmax.f32 %v1103, 0.0
    %v1145 = vmax.f32 %v1105, 0.0
    %v1146 = vmax.f32 %v1107, 0.0
    %v1147 = vmax.f32 %v1111, 0.0
    %v1148 = vmax.f32 %v1113, 0.0
    %v1149 = vmax.f32 %v1115, 0.0
    %v1150 = vmax.f32 %v1117, 0.0
    %v1151 = vpack.c.bf16 %v1121, %v1119
    %v1152 = vpack.c.bf16 %v1122, %v1120
    %v1153 = vpack.c.bf16 %v1125, %v1123
    %v1154 = vpack.c.bf16 %v1126, %v1124
    %v1155 = vpack.c.bf16 %v1129, %v1127
    %v1156 = vpack.c.bf16 %v1130, %v1128
    %v1157 = vpack.c.bf16 %v1133, %v1131
    %v1158 = vpack.c.bf16 %v1134, %v1132
    %v1159 = vpack.c.bf16 %v1137, %v1135
    %v1160 = vpack.c.bf16 %v1138, %v1136
    %v1161 = vpack.c.bf16 %v1141, %v1139
    %v1162 = vpack.c.bf16 %v1142, %v1140
    %v1163 = vpack.c.bf16 %v1145, %v1143
    %v1164 = vpack.c.bf16 %v1146, %v1144
    %v1165 = vpack.c.bf16 %v1149, %v1147
    %v1166 = vpack.c.bf16 %v1150, %v1148
    %v1167 = vld [vmem:[%s5] sm:$0xf]
    %v1168 = vld [vmem:[%s5 + $0x4] sm:$0xf]
    %v1169 = vld [vmem:[%s5 + $0x8] sm:$0xf]
    %v1170 = vld [vmem:[%s5 + $0xc] sm:$0xf]
    %v1171 = vld [vmem:[%s5 + $0x10] sm:$0xf]
    %v1172 = vld [vmem:[%s5 + $0x14] sm:$0xf]
    %v1173 = vld [vmem:[%s5 + $0x18] sm:$0xf]
    %v1174 = vld [vmem:[%s5 + $0x1c] sm:$0xf]
    %v1175 = vld [vmem:[%s5 + $0x20] sm:$0xf]
    %v1176 = vld [vmem:[%s5 + $0x24] sm:$0xf]
    %v1177 = vld [vmem:[%s5 + $0x28] sm:$0xf]
    %v1178 = vld [vmem:[%s5 + $0x2c] sm:$0xf]
    %v1179 = vld [vmem:[%s5 + $0x30] sm:$0xf]
    %v1180 = vld [vmem:[%s5 + $0x34] sm:$0xf]
    %v1181 = vld [vmem:[%s5 + $0x38] sm:$0xf]
    %v1182 = vld [vmem:[%s5 + $0x3c] sm:$0xf]
    %v1183 = vld [vmem:[%s5 + $0x40] sm:$0xf]
    %v1184 = vld [vmem:[%s5 + $0x44] sm:$0xf]
    %v1185 = vld [vmem:[%s5 + $0x48] sm:$0xf]
    %v1186 = vld [vmem:[%s5 + $0x4c] sm:$0xf]
    %v1187 = vld [vmem:[%s5 + $0x50] sm:$0xf]
    %v1188 = vld [vmem:[%s5 + $0x54] sm:$0xf]
    %v1189 = vld [vmem:[%s5 + $0x58] sm:$0xf]
    %v1190 = vld [vmem:[%s5 + $0x5c] sm:$0xf]
    %v1191 = vld [vmem:[%s5 + $0x60] sm:$0xf]
    %v1192 = vld [vmem:[%s5 + $0x64] sm:$0xf]
    %v1193 = vld [vmem:[%s5 + $0x68] sm:$0xf]
    %v1194 = vld [vmem:[%s5 + $0x6c] sm:$0xf]
    %v1195 = vld [vmem:[%s5 + $0x70] sm:$0xf]
    %v1196 = vld [vmem:[%s5 + $0x74] sm:$0xf]
    %v1197 = vld [vmem:[%s5 + $0x78] sm:$0xf]
    %v1198 = vld [vmem:[%s5 + $0x7c] sm:$0xf]
    %v1199 = vld [vmem:[%s6] sm:$0x1]
    %v1201 = vlaneseq
    %v1202 = vshrl.u32 %v1201, 7
    %v1203 = vsub.s32 0, %v1202
    %v1204 = vrot.slane %v1199, %v1203
    %v1238 = vunpack.c.l.b16 %v1167
    %v1239 = vunpack.c.l.b16 %v1168
    %v1240 = vunpack.c.l.b16 %v1169
    %v1241 = vunpack.c.l.b16 %v1170
    %v1242 = vunpack.c.l.b16 %v1171
    %v1243 = vunpack.c.l.b16 %v1172
    %v1244 = vunpack.c.l.b16 %v1173
    %v1245 = vunpack.c.l.b16 %v1174
    %v1246 = vunpack.c.l.b16 %v1175
    %v1247 = vunpack.c.l.b16 %v1176
    %v1248 = vunpack.c.l.b16 %v1177
    %v1249 = vunpack.c.l.b16 %v1178
    %v1250 = vunpack.c.l.b16 %v1179
    %v1251 = vunpack.c.l.b16 %v1180
    %v1252 = vunpack.c.l.b16 %v1181
    %v1253 = vunpack.c.l.b16 %v1182
    %v1254 = vunpack.c.l.b16 %v1183
    %v1255 = vunpack.c.l.b16 %v1184
    %v1256 = vunpack.c.l.b16 %v1185
    %v1257 = vunpack.c.l.b16 %v1186
    %v1258 = vunpack.c.l.b16 %v1187
    %v1259 = vunpack.c.l.b16 %v1188
    %v1260 = vunpack.c.l.b16 %v1189
    %v1261 = vunpack.c.l.b16 %v1190
    %v1262 = vunpack.c.l.b16 %v1191
    %v1263 = vunpack.c.l.b16 %v1192
    %v1264 = vunpack.c.l.b16 %v1193
    %v1265 = vunpack.c.l.b16 %v1194
    %v1266 = vunpack.c.l.b16 %v1195
    %v1267 = vunpack.c.l.b16 %v1196
    %v1268 = vunpack.c.l.b16 %v1197
    %v1269 = vunpack.c.l.b16 %v1198
    %v1270 = vpack.c.b16 %v1239, %v1238
    %v1271 = vpack.c.b16 %v1241, %v1240
    %v1272 = vpack.c.b16 %v1243, %v1242
    %v1273 = vpack.c.b16 %v1245, %v1244
    %v1274 = vpack.c.b16 %v1247, %v1246
    %v1275 = vpack.c.b16 %v1249, %v1248
    %v1276 = vpack.c.b16 %v1251, %v1250
    %v1277 = vpack.c.b16 %v1253, %v1252
    %v1278 = vpack.c.b16 %v1255, %v1254
    %v1279 = vpack.c.b16 %v1257, %v1256
    %v1280 = vpack.c.b16 %v1259, %v1258
    %v1281 = vpack.c.b16 %v1261, %v1260
    %v1282 = vpack.c.b16 %v1263, %v1262
    %v1283 = vpack.c.b16 %v1265, %v1264
    %v1284 = vpack.c.b16 %v1267, %v1266
    %v1285 = vpack.c.b16 %v1269, %v1268
    %1302 = vmatprep.subr.bf16.mxu0 0
    %1303 = vmatpush1.bf16.msra.mxu0 %v1270
    %1304 = vmatprep.subr.bf16.mxu0 0
    %1305 = vmatpush1.bf16.msra.mxu0 %v1271
    %1306 = vmatprep.subr.bf16.mxu0 0
    %1307 = vmatpush1.bf16.msra.mxu0 %v1272
    %1308 = vmatprep.subr.bf16.mxu0 0
    %1309 = vmatpush1.bf16.msra.mxu0 %v1273
    %1310 = vmatprep.subr.bf16.mxu0 0
    %1311 = vmatpush1.bf16.msra.mxu0 %v1274
    %1312 = vmatprep.subr.bf16.mxu0 0
    %1313 = vmatpush1.bf16.msra.mxu0 %v1275
    %1314 = vmatprep.subr.bf16.mxu0 0
    %1315 = vmatpush1.bf16.msra.mxu0 %v1276
    %1316 = vmatprep.subr.bf16.mxu0 0
    %1317 = vmatpush1.bf16.msra.mxu0 %v1277
    %1318 = vmatprep.subr.bf16.mxu0 0
    %1319 = vmatpush1.bf16.msra.mxu0 %v1278
    %1320 = vmatprep.subr.bf16.mxu0 0
    %1321 = vmatpush1.bf16.msra.mxu0 %v1279
    %1322 = vmatprep.subr.bf16.mxu0 0
    %1323 = vmatpush1.bf16.msra.mxu0 %v1280
    %1324 = vmatprep.subr.bf16.mxu0 0
    %1325 = vmatpush1.bf16.msra.mxu0 %v1281
    %1326 = vmatprep.subr.bf16.mxu0 0
    %1327 = vmatpush1.bf16.msra.mxu0 %v1282
    %1328 = vmatprep.subr.bf16.mxu0 0
    %1329 = vmatpush1.bf16.msra.mxu0 %v1283
    %1330 = vmatprep.subr.bf16.mxu0 0
    %1331 = vmatpush1.bf16.msra.mxu0 %v1284
    %1332 = vmatprep.subr.bf16.mxu0 0
    %1333 = vmatpush1.bf16.msra.mxu0 %v1285
    %1334 = vmatprep.mubr.bf16.mxu0 %v1152
    %1335 = vmatmul.mubr.bf16.gmra.mrb[0].mxu0 %v1151
    %v1336 = vpop.f32.mrb[0].mxu0
    %v1337 = vadd.f32 %v1204, %v1336
    %v1338 = vpop.f32.mrb[0].mxu0
    %v1339 = vpop.f32.mrb[0].mxu0
    %v1340 = vadd.f32 %v1204, %v1339
    %v1341 = vpop.f32.mrb[0].mxu0
    %1342 = vmatprep.mubr.bf16.mxu0 %v1154
    %1343 = vmatmul.mubr.bf16.gmra.mrb[0].mxu0 %v1153
    %v1344 = vpop.f32.mrb[0].mxu0
    %v1345 = vadd.f32 %v1204, %v1344
    %v1346 = vpop.f32.mrb[0].mxu0
    %v1347 = vpop.f32.mrb[0].mxu0
    %v1348 = vadd.f32 %v1204, %v1347
    %v1349 = vpop.f32.mrb[0].mxu0
    %1350 = vmatprep.mubr.bf16.mxu0 %v1156
    %1351 = vmatmul.mubr.bf16.gmra.mrb[0].mxu0 %v1155
    %v1352 = vpop.f32.mrb[0].mxu0
    %v1353 = vadd.f32 %v1204, %v1352
    %v1354 = vpop.f32.mrb[0].mxu0
    %v1355 = vpop.f32.mrb[0].mxu0
    %v1356 = vadd.f32 %v1204, %v1355
    %v1357 = vpop.f32.mrb[0].mxu0
    %1358 = vmatprep.mubr.bf16.mxu0 %v1158
    %1359 = vmatmul.mubr.bf16.gmra.mrb[0].mxu0 %v1157
    %v1360 = vpop.f32.mrb[0].mxu0
    %v1361 = vadd.f32 %v1204, %v1360
    %v1362 = vpop.f32.mrb[0].mxu0
    %v1363 = vpop.f32.mrb[0].mxu0
    %v1364 = vadd.f32 %v1204, %v1363
    %v1365 = vpop.f32.mrb[0].mxu0
    %1366 = vmatprep.mubr.bf16.mxu0 %v1160
    %1367 = vmatmul.mubr.bf16.gmra.mrb[0].mxu0 %v1159
    %v1368 = vpop.f32.mrb[0].mxu0
    %v1369 = vadd.f32 %v1204, %v1368
    %v1370 = vpop.f32.mrb[0].mxu0
    %v1371 = vpop.f32.mrb[0].mxu0
    %v1372 = vadd.f32 %v1204, %v1371
    %v1373 = vpop.f32.mrb[0].mxu0
    %1374 = vmatprep.mubr.bf16.mxu0 %v1162
    %1375 = vmatmul.mubr.bf16.gmra.mrb[0].mxu0 %v1161
    %v1376 = vpop.f32.mrb[0].mxu0
    %v1377 = vadd.f32 %v1204, %v1376
    %v1378 = vpop.f32.mrb[0].mxu0
    %v1379 = vpop.f32.mrb[0].mxu0
    %v1380 = vadd.f32 %v1204, %v1379
    %v1381 = vpop.f32.mrb[0].mxu0
    %1382 = vmatprep.mubr.bf16.mxu0 %v1164
    %1383 = vmatmul.mubr.bf16.gmra.mrb[0].mxu0 %v1163
    %v1384 = vpop.f32.mrb[0].mxu0
    %v1385 = vadd.f32 %v1204, %v1384
    %v1386 = vpop.f32.mrb[0].mxu0
    %v1387 = vpop.f32.mrb[0].mxu0
    %v1388 = vadd.f32 %v1204, %v1387
    %v1389 = vpop.f32.mrb[0].mxu0
    %1390 = vmatprep.mubr.bf16.mxu0 %v1166
    %1391 = vmatmul.mubr.bf16.gmra.mrb[0].mxu0 %v1165
    %v1392 = vpop.f32.mrb[0].mxu0
    %v1393 = vadd.f32 %v1204, %v1392
    %v1394 = vpop.f32.mrb[0].mxu0
    %v1395 = vpop.f32.mrb[0].mxu0
    %v1396 = vadd.f32 %v1204, %v1395
    %v1397 = vpop.f32.mrb[0].mxu0
    %1398 = vdwg.mxu0
    %v1399 = vmax.f32 %v1337, 0.0
    %v1400 = vmax.f32 %v1340, 0.0
    %v1401 = vmax.f32 %v1345, 0.0
    %v1402 = vmax.f32 %v1348, 0.0
    %v1403 = vmax.f32 %v1353, 0.0
    %v1404 = vmax.f32 %v1356, 0.0
    %v1405 = vmax.f32 %v1361, 0.0
    %v1406 = vmax.f32 %v1364, 0.0
    %v1407 = vmax.f32 %v1369, 0.0
    %v1408 = vmax.f32 %v1372, 0.0
    %v1409 = vmax.f32 %v1377, 0.0
    %v1410 = vmax.f32 %v1380, 0.0
    %v1411 = vmax.f32 %v1385, 0.0
    %v1412 = vmax.f32 %v1388, 0.0
    %v1413 = vmax.f32 %v1393, 0.0
    %v1414 = vmax.f32 %v1396, 0.0
    %v1415 = vpack.c.bf16 %v1400, %v1399
    %v1416 = vpack.c.bf16 %v1402, %v1401
    %v1417 = vpack.c.bf16 %v1404, %v1403
    %v1418 = vpack.c.bf16 %v1406, %v1405
    %v1419 = vpack.c.bf16 %v1408, %v1407
    %v1420 = vpack.c.bf16 %v1410, %v1409
    %v1421 = vpack.c.bf16 %v1412, %v1411
    %v1422 = vpack.c.bf16 %v1414, %v1413
    %v1423 = vld [vmem:[%s7] sm:$0xf]
    %v1424 = vld [vmem:[%s7 + $0x4] sm:$0xf]
    %v1425 = vld [vmem:[%s7 + $0x8] sm:$0xf]
    %v1426 = vld [vmem:[%s7 + $0xc] sm:$0xf]
    %v1427 = vld [vmem:[%s7 + $0x10] sm:$0xf]
    %v1428 = vld [vmem:[%s7 + $0x14] sm:$0xf]
    %v1429 = vld [vmem:[%s7 + $0x18] sm:$0xf]
    %v1430 = vld [vmem:[%s7 + $0x1c] sm:$0xf]
    %v1431 = vld [vmem:[%s7 + $0x20] sm:$0xf]
    %v1432 = vld [vmem:[%s7 + $0x24] sm:$0xf]
    %v1433 = vld [vmem:[%s7 + $0x28] sm:$0xf]
    %v1434 = vld [vmem:[%s7 + $0x2c] sm:$0xf]
    %v1435 = vld [vmem:[%s7 + $0x30] sm:$0xf]
    %v1436 = vld [vmem:[%s7 + $0x34] sm:$0xf]
    %v1437 = vld [vmem:[%s7 + $0x38] sm:$0xf]
    %v1438 = vld [vmem:[%s7 + $0x3c] sm:$0xf]
    %v1439 = vld [vmem:[%s8] sm:$0x1]
    %v1441 = vlaneseq
    %v1442 = vshrl.u32 %v1441, 7
    %v1443 = vsub.s32 0, %v1442
    %v1444 = vrot.slane %v1439, %v1443
    %v1462 = vunpack.c.l.b16 %v1423
    %v1463 = vunpack.c.l.b16 %v1424
    %v1464 = vunpack.c.l.b16 %v1425
    %v1465 = vunpack.c.l.b16 %v1426
    %v1466 = vunpack.c.l.b16 %v1427
    %v1467 = vunpack.c.l.b16 %v1428
    %v1468 = vunpack.c.l.b16 %v1429
    %v1469 = vunpack.c.l.b16 %v1430
    %v1470 = vunpack.c.l.b16 %v1431
    %v1471 = vunpack.c.l.b16 %v1432
    %v1472 = vunpack.c.l.b16 %v1433
    %v1473 = vunpack.c.l.b16 %v1434
    %v1474 = vunpack.c.l.b16 %v1435
    %v1475 = vunpack.c.l.b16 %v1436
    %v1476 = vunpack.c.l.b16 %v1437
    %v1477 = vunpack.c.l.b16 %v1438
    %v1478 = vpack.c.b16 %v1463, %v1462
    %v1479 = vpack.c.b16 %v1465, %v1464
    %v1480 = vpack.c.b16 %v1467, %v1466
    %v1481 = vpack.c.b16 %v1469, %v1468
    %v1482 = vpack.c.b16 %v1471, %v1470
    %v1483 = vpack.c.b16 %v1473, %v1472
    %v1484 = vpack.c.b16 %v1475, %v1474
    %v1485 = vpack.c.b16 %v1477, %v1476
    %1494 = vmatprep.subr.bf16.mxu0 0
    %1495 = vmatpush1.bf16.msra.mxu0 %v1478
    %1496 = vmatprep.subr.bf16.mxu0 0
    %1497 = vmatpush1.bf16.msra.mxu0 %v1479
    %1498 = vmatprep.subr.bf16.mxu0 0
    %1499 = vmatpush1.bf16.msra.mxu0 %v1480
    %1500 = vmatprep.subr.bf16.mxu0 0
    %1501 = vmatpush1.bf16.msra.mxu0 %v1481
    %1502 = vmatprep.subr.bf16.mxu0 0
    %1503 = vmatpush1.bf16.msra.mxu0 %v1482
    %1504 = vmatprep.subr.bf16.mxu0 0
    %1505 = vmatpush1.bf16.msra.mxu0 %v1483
    %1506 = vmatprep.subr.bf16.mxu0 0
    %1507 = vmatpush1.bf16.msra.mxu0 %v1484
    %1508 = vmatprep.subr.bf16.mxu0 0
    %1509 = vmatpush1.bf16.msra.mxu0 %v1485
    %1510 = vmatprep.subr.bf16.mxu0 0
    %1511 = vmatpush1.bf16.msra.mxu0 0
    %1512 = vmatprep.subr.bf16.mxu0 0
    %1513 = vmatpush1.bf16.msra.mxu0 0
    %1514 = vmatprep.subr.bf16.mxu0 0
    %1515 = vmatpush1.bf16.msra.mxu0 0
    %1516 = vmatprep.subr.bf16.mxu0 0
    %1517 = vmatpush1.bf16.msra.mxu0 0
    %1518 = vmatprep.subr.bf16.mxu0 0
    %1519 = vmatpush1.bf16.msra.mxu0 0
    %1520 = vmatprep.subr.bf16.mxu0 0
    %1521 = vmatpush1.bf16.msra.mxu0 0
    %1522 = vmatprep.subr.bf16.mxu0 0
    %1523 = vmatpush1.bf16.msra.mxu0 0
    %1524 = vmatprep.subr.bf16.mxu0 0
    %1525 = vmatpush1.bf16.msra.mxu0 0
    %1526 = vmatprep.mubr.bf16.mxu0 0
    %1527 = vmatmul.mubr.bf16.gmra.mrb[0].mxu0 %v1415
    %v1528 = vpop.f32.mrb[0].mxu0
    %v1529 = vadd.f32 %v1444, %v1528
    %v1530 = vpop.f32.mrb[0].mxu0
    %v1531 = vpop.f32.mrb[0].mxu0
    %v1532 = vadd.f32 %v1444, %v1531
    %v1533 = vpop.f32.mrb[0].mxu0
    %1534 = vmatprep.mubr.bf16.mxu0 0
    %1535 = vmatmul.mubr.bf16.gmra.mrb[0].mxu0 %v1416
    %v1536 = vpop.f32.mrb[0].mxu0
    %v1537 = vadd.f32 %v1444, %v1536
    %v1538 = vpop.f32.mrb[0].mxu0
    %v1539 = vpop.f32.mrb[0].mxu0
    %v1540 = vadd.f32 %v1444, %v1539
    %v1541 = vpop.f32.mrb[0].mxu0
    %1542 = vmatprep.mubr.bf16.mxu0 0
    %1543 = vmatmul.mubr.bf16.gmra.mrb[0].mxu0 %v1417
    %v1544 = vpop.f32.mrb[0].mxu0
    %v1545 = vadd.f32 %v1444, %v1544
    %v1546 = vpop.f32.mrb[0].mxu0
    %v1547 = vpop.f32.mrb[0].mxu0
    %v1548 = vadd.f32 %v1444, %v1547
    %v1549 = vpop.f32.mrb[0].mxu0
    %1550 = vmatprep.mubr.bf16.mxu0 0
    %1551 = vmatmul.mubr.bf16.gmra.mrb[0].mxu0 %v1418
    %v1552 = vpop.f32.mrb[0].mxu0
    %v1553 = vadd.f32 %v1444, %v1552
    %v1554 = vpop.f32.mrb[0].mxu0
    %v1555 = vpop.f32.mrb[0].mxu0
    %v1556 = vadd.f32 %v1444, %v1555
    %v1557 = vpop.f32.mrb[0].mxu0
    %1558 = vmatprep.mubr.bf16.mxu0 0
    %1559 = vmatmul.mubr.bf16.gmra.mrb[0].mxu0 %v1419
    %v1560 = vpop.f32.mrb[0].mxu0
    %v1561 = vadd.f32 %v1444, %v1560
    %v1562 = vpop.f32.mrb[0].mxu0
    %v1563 = vpop.f32.mrb[0].mxu0
    %v1564 = vadd.f32 %v1444, %v1563
    %v1565 = vpop.f32.mrb[0].mxu0
    %1566 = vmatprep.mubr.bf16.mxu0 0
    %1567 = vmatmul.mubr.bf16.gmra.mrb[0].mxu0 %v1420
    %v1568 = vpop.f32.mrb[0].mxu0
    %v1569 = vadd.f32 %v1444, %v1568
    %v1570 = vpop.f32.mrb[0].mxu0
    %v1571 = vpop.f32.mrb[0].mxu0
    %v1572 = vadd.f32 %v1444, %v1571
    %v1573 = vpop.f32.mrb[0].mxu0
    %1574 = vmatprep.mubr.bf16.mxu0 0
    %1575 = vmatmul.mubr.bf16.gmra.mrb[0].mxu0 %v1421
    %v1576 = vpop.f32.mrb[0].mxu0
    %v1577 = vadd.f32 %v1444, %v1576
    %v1578 = vpop.f32.mrb[0].mxu0
    %v1579 = vpop.f32.mrb[0].mxu0
    %v1580 = vadd.f32 %v1444, %v1579
    %v1581 = vpop.f32.mrb[0].mxu0
    %1582 = vmatprep.mubr.bf16.mxu0 0
    %1583 = vmatmul.mubr.bf16.gmra.mrb[0].mxu0 %v1422
    %v1584 = vpop.f32.mrb[0].mxu0
    %v1585 = vadd.f32 %v1444, %v1584
    %v1586 = vpop.f32.mrb[0].mxu0
    %v1587 = vpop.f32.mrb[0].mxu0
    %v1588 = vadd.f32 %v1444, %v1587
    %v1589 = vpop.f32.mrb[0].mxu0
    %1590 = vdwg.mxu0
    %v1591 = vmax.f32 %v1529, 0.0
    %v1592 = vmax.f32 %v1532, 0.0
    %v1593 = vmax.f32 %v1537, 0.0
    %v1594 = vmax.f32 %v1540, 0.0
    %v1595 = vmax.f32 %v1545, 0.0
    %v1596 = vmax.f32 %v1548, 0.0
    %v1597 = vmax.f32 %v1553, 0.0
    %v1598 = vmax.f32 %v1556, 0.0
    %v1599 = vmax.f32 %v1561, 0.0
    %v1600 = vmax.f32 %v1564, 0.0
    %v1601 = vmax.f32 %v1569, 0.0
    %v1602 = vmax.f32 %v1572, 0.0
    %v1603 = vmax.f32 %v1577, 0.0
    %v1604 = vmax.f32 %v1580, 0.0
    %v1605 = vmax.f32 %v1585, 0.0
    %v1606 = vmax.f32 %v1588, 0.0
    %1607 = vxpose.xlu0.b32.start [1/16] %v1591, 128
    %1608 = vxpose.xlu0.b32.cont [2/16] %v1592, 128
    %1609 = vxpose.xlu0.b32.cont [3/16] %v1593, 128
    %1610 = vxpose.xlu0.b32.cont [4/16] %v1594, 128
    %1611 = vxpose.xlu0.b32.cont [5/16] %v1595, 128
    %1612 = vxpose.xlu0.b32.cont [6/16] %v1596, 128
    %1613 = vxpose.xlu0.b32.cont [7/16] %v1597, 128
    %1614 = vxpose.xlu0.b32.cont [8/16] %v1598, 128
    %1615 = vxpose.xlu0.b32.cont [9/16] %v1599, 128
    %1616 = vxpose.xlu0.b32.cont [10/16] %v1600, 128
    %1617 = vxpose.xlu0.b32.cont [11/16] %v1601, 128
    %1618 = vxpose.xlu0.b32.cont [12/16] %v1602, 128
    %1619 = vxpose.xlu0.b32.cont [13/16] %v1603, 128
    %1620 = vxpose.xlu0.b32.cont [14/16] %v1604, 128
    %1621 = vxpose.xlu0.b32.cont [15/16] %v1605, 128
    %1622 = vxpose.xlu0.b32.end [16/16] %v1606, 128
    %v1623 = vpop.trf.xlu0
    %v1624 = vpop.trf.xlu0
    %v1625 = vpop.trf.xlu0
    %v1626 = vpop.trf.xlu0
    %v1627 = vpop.trf.xlu0
    %v1628 = vpop.trf.xlu0
    %v1629 = vpop.trf.xlu0
    %v1630 = vpop.trf.xlu0
    %v1631 = vpop.trf.xlu0
    %v1632 = vpop.trf.xlu0
    %v1633 = vpop.trf.xlu0
    %v1634 = vpop.trf.xlu0
    %v1635 = vpop.trf.xlu0
    %v1636 = vpop.trf.xlu0
    %v1637 = vpop.trf.xlu0
    %v1638 = vpop.trf.xlu0
    %v1639 = vld [vmem:[%s9] sm:$0xff]
    %v1640 = vld [vmem:[%s9 + $0x8] sm:$0xff]
    %v1641 = vld [vmem:[%s9 + $0x10] sm:$0xff]
    %v1642 = vld [vmem:[%s9 + $0x18] sm:$0xff]
    %v1643 = vld [vmem:[%s9 + $0x20] sm:$0xff]
    %v1644 = vld [vmem:[%s9 + $0x28] sm:$0xff]
    %v1645 = vld [vmem:[%s9 + $0x30] sm:$0xff]
    %v1646 = vld [vmem:[%s9 + $0x38] sm:$0xff]
    %v1647 = vld [vmem:[%s9 + $0x40] sm:$0xff]
    %v1648 = vld [vmem:[%s9 + $0x48] sm:$0xff]
    %v1649 = vld [vmem:[%s9 + $0x50] sm:$0xff]
    %v1650 = vld [vmem:[%s9 + $0x58] sm:$0xff]
    %v1651 = vld [vmem:[%s9 + $0x60] sm:$0xff]
    %v1652 = vld [vmem:[%s9 + $0x68] sm:$0xff]
    %v1653 = vld [vmem:[%s9 + $0x70] sm:$0xff]
    %v1654 = vld [vmem:[%s9 + $0x78] sm:$0xff]
    %1656 = vset.pattern.permute.xlu0 0
    %1657 = vperm.xlu0 %1656, %v1639
    %v1658 = vpop.permute.xlu0 %1657
    %1661 = vset.pattern.permute.xlu0 0
    %1662 = vperm.xlu0 %1661, %v1640
    %v1663 = vpop.permute.xlu0 %1662
    %1666 = vset.pattern.permute.xlu0 0
    %1667 = vperm.xlu0 %1666, %v1641
    %v1668 = vpop.permute.xlu0 %1667
    %1671 = vset.pattern.permute.xlu0 0
    %1672 = vperm.xlu0 %1671, %v1642
    %v1673 = vpop.permute.xlu0 %1672
    %1676 = vset.pattern.permute.xlu0 0
    %1677 = vperm.xlu0 %1676, %v1643
    %v1678 = vpop.permute.xlu0 %1677
    %1681 = vset.pattern.permute.xlu0 0
    %1682 = vperm.xlu0 %1681, %v1644
    %v1683 = vpop.permute.xlu0 %1682
    %1686 = vset.pattern.permute.xlu0 0
    %1687 = vperm.xlu0 %1686, %v1645
    %v1688 = vpop.permute.xlu0 %1687
    %1691 = vset.pattern.permute.xlu0 0
    %1692 = vperm.xlu0 %1691, %v1646
    %v1693 = vpop.permute.xlu0 %1692
    %1696 = vset.pattern.permute.xlu0 0
    %1697 = vperm.xlu0 %1696, %v1647
    %v1698 = vpop.permute.xlu0 %1697
    %1701 = vset.pattern.permute.xlu0 0
    %1702 = vperm.xlu0 %1701, %v1648
    %v1703 = vpop.permute.xlu0 %1702
    %1706 = vset.pattern.permute.xlu0 0
    %1707 = vperm.xlu0 %1706, %v1649
    %v1708 = vpop.permute.xlu0 %1707
    %1711 = vset.pattern.permute.xlu0 0
    %1712 = vperm.xlu0 %1711, %v1650
    %v1713 = vpop.permute.xlu0 %1712
    %1716 = vset.pattern.permute.xlu0 0
    %1717 = vperm.xlu0 %1716, %v1651
    %v1718 = vpop.permute.xlu0 %1717
    %1721 = vset.pattern.permute.xlu0 0
    %1722 = vperm.xlu0 %1721, %v1652
    %v1723 = vpop.permute.xlu0 %1722
    %1726 = vset.pattern.permute.xlu0 0
    %1727 = vperm.xlu0 %1726, %v1653
    %v1728 = vpop.permute.xlu0 %1727
    %1731 = vset.pattern.permute.xlu0 0
    %1732 = vperm.xlu0 %1731, %v1654
    %v1733 = vpop.permute.xlu0 %1732
    %v1735 = vmul.f32 %v1623, %v1658
    %v1736 = vmul.f32 %v1624, %v1663
    %v1737 = vmul.f32 %v1625, %v1668
    %v1738 = vmul.f32 %v1626, %v1673
    %v1739 = vmul.f32 %v1627, %v1678
    %v1740 = vmul.f32 %v1628, %v1683
    %v1741 = vmul.f32 %v1629, %v1688
    %v1742 = vmul.f32 %v1630, %v1693
    %v1743 = vmul.f32 %v1631, %v1698
    %v1744 = vmul.f32 %v1632, %v1703
    %v1745 = vmul.f32 %v1633, %v1708
    %v1746 = vmul.f32 %v1634, %v1713
    %v1747 = vmul.f32 %v1635, %v1718
    %v1748 = vmul.f32 %v1636, %v1723
    %v1749 = vmul.f32 %v1637, %v1728
    %v1750 = vmul.f32 %v1638, %v1733
    %v1751 = vadd.f32 %v1735, %v1736
    %v1752 = vadd.f32 %v1751, %v1737
    %v1753 = vadd.f32 %v1752, %v1738
    %v1754 = vadd.f32 %v1753, %v1739
    %v1755 = vadd.f32 %v1754, %v1740
    %v1756 = vadd.f32 %v1755, %v1741
    %v1757 = vadd.f32 %v1756, %v1742
    %v1758 = vadd.f32 %v1757, %v1743
    %v1759 = vadd.f32 %v1758, %v1744
    %v1760 = vadd.f32 %v1759, %v1745
    %v1761 = vadd.f32 %v1760, %v1746
    %v1762 = vadd.f32 %v1761, %v1747
    %v1763 = vadd.f32 %v1762, %v1748
    %v1764 = vadd.f32 %v1763, %v1749
    %v1765 = vadd.f32 %v1764, %v1750
    %v1766 = vrot.slane %v1765, 4
    %v1767 = vadd.f32 %v1765, %v1766
    %v1768 = vrot.slane %v1767, 2
    %v1769 = vadd.f32 %v1767, %v1768
    %v1770 = vrot.slane %v1769, 1
    %v1771 = vadd.f32 %v1769, %v1770
    %v1772 = vld [vmem:[#allocation2] sm:$0x1]
    %1774 = vset.pattern.permute.xlu0 0
    %1775 = vperm.xlu0 %1774, %v1772
    %v1776 = vpop.permute.xlu0 %1775
    %v1778 = vlaneseq
    %v1779 = vshrl.u32 %v1778, 7
    %v1780 = vsub.s32 0, %v1779
    %v1781 = vrot.slane %v1776, %v1780
    %v1782 = vadd.f32 %v1771, %v1781
    %1783 = vst [vmem:[#allocation6] sm:$0x1] %v1782
    // Predicated region
    $region50: #{tpu_custom_call.1} parent=1 // pred_check
      _
    $region51: #{tpu_custom_call.1} parent=1 // pred_check_branch
      %1785 = sbr.rel (0) target = $region53
    $region52: #{tpu_custom_call.1} parent=1 // pred_region
      %s1787 = ssub.s32 16, 16
      %1788 = vsyncadd [#allocation5], %s1787
      %s1790 = sshll.u32 [#allocation6], 4
      %s1791 = int_to_ptr.vmem [resolvable:$true] %s1790
      %1793 = dma.vmem_to_hbm [thread:$0]  %s1791, 16, %s11, [#allocation5]
    $region53: #{tpu_custom_call.1} parent=1 // pred_fallthru
      _
    // Predicated region
    $region54: #{tpu_custom_call.1} parent=1 // pred_check
      _
    $region55: #{tpu_custom_call.1} parent=1 // pred_check_branch
      %1795 = sbr.rel (0) target = $region57
    $region56: #{tpu_custom_call.1} parent=1 // pred_region
      %1796 = dma.done [#allocation5], 16
    $region57: #{tpu_custom_call.1} parent=1 // pred_fallthru
      _
    %1797 = vsyncpa [#allocation4], 1
    %1798 = vsyncpa [#allocation5], 1

</llo_original>
